<compile_context>
chip_gen: v6e
topology: v6e:2x2x1
jax: 0.10.0
libtpu: 0.0.40
codegen_flags: <defaults>
</compile_context>

<pallas_src>
import math

import jax
import jax.numpy as jnp
from jax.experimental import pallas as pl
from jax.experimental.pallas import tpu as pltpu

# ----------------------------- configuration --------------------------------
B = 2          # batch of packed sequences
N = 64         # packed sequence length
SIZE = 32      # node feature size ("size")
DIST = 16      # pairwise structure feature size ("distance_size")
ATTN = 32      # attention size per head ("attention_size")
HEADS = 4      # number of heads
HIDDEN = 32    # MLP hidden size
HA = HEADS * ATTN          # 128 -> one full lane width
TILE_I = 16                # query-axis tile; grid = (B, N // TILE_I)
_SCALE = 1.0 / math.sqrt(ATTN)


# ------------------------------ Pallas kernel --------------------------------
def encoder_block_kernel(
    xq_ref,     # (TILE_I, SIZE)    f32  query-row tile of the sequence
    xf_ref,     # (N, SIZE)         f32  full sequence (key/value node part)
    e_ref,      # (TILE_I, N, DIST) bf16 pairwise structure rows of this tile
    wq_ref,     # (SIZE, HA)        bf16 (1/sqrt(ATTN) pre-folded)
    wkv_ref,    # (SIZE, 2*HA)      bf16 fused [Wk_node | Wv_node]
    wedge_ref,  # (DIST, 2*HA)      bf16 fused [Wk_edge | Wv_edge]
    blk_ref,    # (HA, HA)          bf16 indicator: 1 where head(l)==head(l')
    wo_ref,     # (HA, SIZE)        bf16
    wmlp_ref,   # (HIDDEN, 4*HIDDEN) bf16 fused [w0 | w1 | w2 | w3]
    bias_ref,   # (8, HA)           f32  packed biases
    o_ref,      # (TILE_I, SIZE)    f32  output tile
):
  f32 = jnp.float32
  bf16 = jnp.bfloat16

  bias = bias_ref[...]
  bq = bias[0:1, :]                       # already scaled by 1/sqrt(ATTN)
  bk = bias[1:2, :]
  bv = bias[2:3, :]
  bo = bias[3:4, :SIZE]
  b0 = bias[4:5, :HIDDEN]
  b1 = bias[5:6, :HIDDEN]
  b2 = bias[6:7, :HIDDEN]
  b3 = bias[7:8, :SIZE]

  xq = xq_ref[...]                        # (TILE_I, SIZE) f32 (residual path)
  xqb = xq.astype(bf16)
  xfb = xf_ref[...].astype(bf16)          # (N, SIZE)

  # queries (scale folded into wq/bq in the wrapper)
  q = jnp.dot(xqb, wq_ref[...], preferred_element_type=f32) + bq    # (T, HA)

  # node part of keys/values for every key position j (one fused matmul)
  kvx = jnp.dot(xfb, wkv_ref[...], preferred_element_type=f32)      # (N, 2*HA)
  kx = kvx[:, :HA] + bk
  vx = kvx[:, HA:] + bv

  # edge part of keys/values for the (i-tile, all j) pairs, all heads at once
  e_flat = e_ref[...].reshape(TILE_I * N, DIST)
  ekv = jnp.dot(e_flat, wedge_ref[...], preferred_element_type=f32)  # (T*N, 2HA)
  ek = ekv[:, :HA].reshape(TILE_I, N, HA)
  ev = ekv[:, HA:].reshape(TILE_I, N, HA)

  # per-lane q*k products; keys are never materialized separately
  p = q[:, None, :] * (kx[None, :, :] + ek)                          # (T, N, HA)

  # per-head score sums, already broadcast to all lanes of the head via one
  # bf16 MXU matmul against the (HA, HA) block indicator.
  s = jnp.dot(p.reshape(TILE_I * N, HA).astype(bf16), blk_ref[...],
              preferred_element_type=f32).reshape(TILE_I, N, HA)

  # softmax over the key axis (axis=1, whole per grid step)
  m = jnp.max(s, axis=1, keepdims=True)
  pe = jnp.exp(s - m)
  attn = pe * pl.reciprocal(jnp.sum(pe, axis=1, keepdims=True), approx=True)

  # weighted values (attention weights replicated across each head's lanes)
  v = vx[None, :, :] + ev
  o_heads = jnp.sum(attn * v, axis=1)                                # (T, HA)

  attn_out = jnp.dot(o_heads.astype(bf16), wo_ref[...],
                     preferred_element_type=f32) + bo

  # residual 1 (batch_norm=False -> LayerNorm is identity; dropout eval-mode)
  out1 = xq + attn_out

  # local MLP: 3 hidden Linear+ReLU layers + output Linear (one weight slab)
  wmlp = wmlp_ref[...]
  w0 = wmlp[:, 0 * HIDDEN:1 * HIDDEN]
  w1 = wmlp[:, 1 * HIDDEN:2 * HIDDEN]
  w2 = wmlp[:, 2 * HIDDEN:3 * HIDDEN]
  w3 = wmlp[:, 3 * HIDDEN:4 * HIDDEN]
  h = jnp.maximum(
      jnp.dot(out1.astype(bf16), w0, preferred_element_type=f32) + b0, 0.0)
  h = jnp.maximum(
      jnp.dot(h.astype(bf16), w1, preferred_element_type=f32) + b1, 0.0)
  h = jnp.maximum(
      jnp.dot(h.astype(bf16), w2, preferred_element_type=f32) + b2, 0.0)
  local = jnp.dot(h.astype(bf16), w3, preferred_element_type=f32) + b3

  # residual 2
  o_ref[...] = (out1 + local).astype(o_ref.dtype)


# ------------------------------- wrapper -------------------------------------
def encoder_block(features, structure, params):
  b, n, size = features.shape
  assert n == N and size == SIZE and N % TILE_I == 0
  assert structure.shape == (b, N, N, DIST)
  f32, bf16 = jnp.float32, jnp.bfloat16

  # fused / pre-scaled projection weights
  wq = (params["wq"] * _SCALE).astype(bf16)                          # scale folded
  wkv = jnp.concatenate([params["wkx"], params["wvx"]], axis=1).astype(bf16)
  wedge = jnp.concatenate([params["wke"], params["wve"]], axis=1).astype(bf16)
  wo = params["wo"].astype(bf16)
  wmlp = jnp.concatenate(
      [params["w0"], params["w1"], params["w2"], params["w3"]], axis=1
  ).astype(bf16)                                                     # (HIDDEN, 4*HIDDEN)

  # single (HA, HA) block indicator: 1 where lanes belong to the same head
  lane_head = jnp.arange(HA, dtype=jnp.int32) // ATTN
  blk = (lane_head[:, None] == lane_head[None, :]).astype(bf16)      # exact in bf16

  # packed biases -> one (8, HA) f32 tile
  def pad_row(v):
    return jnp.pad(v, ((0, 0), (0, HA - v.shape[1])))

  bias = jnp.concatenate([
      params["bq"] * _SCALE,            # row 0 (scale folded)
      params["bk"],                     # row 1
      params["bv"],                     # row 2
      pad_row(params["bo"]),            # row 3
      pad_row(params["b0"]),            # row 4
      pad_row(params["b1"]),            # row 5
      pad_row(params["b2"]),            # row 6
      pad_row(params["b3"]),            # row 7
  ], axis=0).astype(f32)                                             # (8, HA)

  weights = [wq, wkv, wedge, blk, wo, wmlp, bias]

  def wspec(shape):
    nd = len(shape)
    return pl.BlockSpec(shape, lambda bi, ii, _nd=nd: (0,) * _nd)

  in_specs = [
      pl.BlockSpec((None, TILE_I, SIZE), lambda bi, ii: (bi, ii, 0)),       # query tile
      pl.BlockSpec((None, N, SIZE), lambda bi, ii: (bi, 0, 0)),             # full sequence
      pl.BlockSpec((None, TILE_I, N, DIST), lambda bi, ii: (bi, ii, 0, 0)), # structure rows
  ] + [wspec(w.shape) for w in weights]

  out_specs = pl.BlockSpec((None, TILE_I, SIZE), lambda bi, ii: (bi, ii, 0))

  x32 = features.astype(f32)
  return pl.pallas_call(
      encoder_block_kernel,
      out_shape=jax.ShapeDtypeStruct((b, N, SIZE), jnp.float32),
      grid_spec=pltpu.PrefetchScalarGridSpec(
          num_scalar_prefetch=0,
          grid=(b, N // TILE_I),
          in_specs=in_specs,
          out_specs=out_specs,
      ),
      compiler_params=pltpu.CompilerParams(
          dimension_semantics=("parallel", "parallel"),
          vmem_limit_bytes=16 * 1024 * 1024,
      ),
  )(x32, x32, structure.astype(bf16), *weights)


# --------------------------- parameter init ----------------------------------
def make_params(key):
  shapes = dict(
      wq=(SIZE, HA), bq=(1, HA),
      wkx=(SIZE, HA), wke=(DIST, HA), bk=(1, HA),
      wvx=(SIZE, HA), wve=(DIST, HA), bv=(1, HA),
      wo=(HA, SIZE), bo=(1, SIZE),
      w0=(SIZE, HIDDEN), b0=(1, HIDDEN),
      w1=(HIDDEN, HIDDEN), b1=(1, HIDDEN),
      w2=(HIDDEN, HIDDEN), b2=(1, HIDDEN),
      w3=(HIDDEN, SIZE), b3=(1, SIZE),
  )
  keys = jax.random.split(key, len(shapes))
  return {name: 0.1 * jax.random.normal(k, shp, dtype=jnp.float32)
          for k, (name, shp) in zip(keys, shapes.items())}


# --------------------------- pure-JAX reference -------------------------------
def reference(x, e, p):
  # materialized concat(x_j, e_ij) keys/values (the literal PyTorch semantics)
  q = x @ p["wq"] + p["bq"]                                           # (N, HA)
  k = x[None, :, :] @ p["wkx"] + jnp.einsum("ijd,dh->ijh", e, p["wke"]) + p["bk"]
  v = x[None, :, :] @ p["wvx"] + jnp.einsum("ijd,dh->ijh", e, p["wve"]) + p["bv"]
  qh = q.reshape(N, HEADS, ATTN)
  kh = k.reshape(N, N, HEADS, ATTN)
  vh = v.reshape(N, N, HEADS, ATTN)
  scores = jnp.einsum("iha,ijha->ijh", qh, kh) * _SCALE
  attn = jax.nn.softmax(scores, axis=1)
  oh = jnp.einsum("ijh,ijha->iha", attn, vh).reshape(N, HA)
  attn_out = oh @ p["wo"] + p["bo"]
  out1 = x + attn_out
  h = jax.nn.relu(out1 @ p["w0"] + p["b0"])
  h = jax.nn.relu(h @ p["w1"] + p["b1"])
  h = jax.nn.relu(h @ p["w2"] + p["b2"])
  local = h @ p["w3"] + p["b3"]
  return out1 + local


# --------------------------------- main ---------------------------------------
if __name__ == "__main__":
  key = jax.random.PRNGKey(0)
  k_feat, k_struct, k_param = jax.random.split(key, 3)
  features = jax.random.normal(k_feat, (B, N, SIZE), dtype=jnp.float32)
  structure = jax.random.normal(k_struct, (B, N, N, DIST), dtype=jnp.float32)
  params = make_params(k_param)

  out = jax.block_until_ready(encoder_block(features, structure, params))
  assert out.shape == (B, N, SIZE), out.shape

  ref = jax.vmap(lambda x, e: reference(x, e, params))(features, structure)
  err = float(jnp.max(jnp.abs(out - ref)))
  # bf16 MXU operands with f32 accumulation -> relaxed tolerance vs f32 ref.
  assert err < 1e-1, f"max abs error {err}"
  print("KERNEL_OK")
</pallas_src>

<mosaic_0001>
module attributes {stable_mosaic.version = 11 : i64} {
  func.func @encoder_block_kernel(%arg0: i32, %arg1: i32, %arg2: memref<1x16x32xf32, #tpu.memory_space<vmem>>, %arg3: memref<1x64x32xf32, #tpu.memory_space<vmem>>, %arg4: memref<1x16x64x16xbf16, #tpu.memory_space<vmem>>, %arg5: memref<32x128xbf16, #tpu.memory_space<vmem>>, %arg6: memref<32x256xbf16, #tpu.memory_space<vmem>>, %arg7: memref<16x256xbf16, #tpu.memory_space<vmem>>, %arg8: memref<128x128xbf16, #tpu.memory_space<vmem>>, %arg9: memref<128x32xbf16, #tpu.memory_space<vmem>>, %arg10: memref<32x128xbf16, #tpu.memory_space<vmem>>, %arg11: memref<8x128xf32, #tpu.memory_space<vmem>>, %arg12: memref<1x16x32xf32, #tpu.memory_space<vmem>>) attributes {dimension_semantics = [#tpu.dimension_semantics<parallel>, #tpu.dimension_semantics<parallel>], iteration_bounds = array<i64: 2, 4>, scalar_prefetch = 0 : i64, scratch_operands = 0 : i64, tpu.core_type = #tpu.core_type<tc>, window_params = [{transform_indices = @transform_0, window_bounds = array<i64: 1, 16, 32>}, {transform_indices = @transform_1, window_bounds = array<i64: 1, 64, 32>}, {transform_indices = @transform_2, window_bounds = array<i64: 1, 16, 64, 16>}, {pipeline_mode = #tpu.pipeline_mode<synchronous>, transform_indices = @transform_3, window_bounds = array<i64: 32, 128>}, {pipeline_mode = #tpu.pipeline_mode<synchronous>, transform_indices = @transform_4, window_bounds = array<i64: 32, 256>}, {pipeline_mode = #tpu.pipeline_mode<synchronous>, transform_indices = @transform_5, window_bounds = array<i64: 16, 256>}, {pipeline_mode = #tpu.pipeline_mode<synchronous>, transform_indices = @transform_6, window_bounds = array<i64: 128, 128>}, {pipeline_mode = #tpu.pipeline_mode<synchronous>, transform_indices = @transform_7, window_bounds = array<i64: 128, 32>}, {pipeline_mode = #tpu.pipeline_mode<synchronous>, transform_indices = @transform_8, window_bounds = array<i64: 32, 128>}, {pipeline_mode = #tpu.pipeline_mode<synchronous>, transform_indices = @transform_9, window_bounds = array<i64: 8, 128>}, {transform_indices = @transform_10, window_bounds = array<i64: 1, 16, 32>}]} {
    %c0 = arith.constant 0 : index
    %c0_0 = arith.constant 0 : index
    %0 = vector.load %arg11[%c0, %c0_0] : memref<8x128xf32, #tpu.memory_space<vmem>>, vector<8x128xf32>
    %1 = vector.extract_strided_slice %0 {offsets = [0, 0], sizes = [1, 128], strides = [1, 1]} : vector<8x128xf32> to vector<1x128xf32>
    %2 = vector.extract_strided_slice %0 {offsets = [1, 0], sizes = [1, 128], strides = [1, 1]} : vector<8x128xf32> to vector<1x128xf32>
    %3 = vector.extract_strided_slice %0 {offsets = [2, 0], sizes = [1, 128], strides = [1, 1]} : vector<8x128xf32> to vector<1x128xf32>
    %4 = vector.extract_strided_slice %0 {offsets = [3, 0], sizes = [1, 32], strides = [1, 1]} : vector<8x128xf32> to vector<1x32xf32>
    %5 = vector.extract_strided_slice %0 {offsets = [4, 0], sizes = [1, 32], strides = [1, 1]} : vector<8x128xf32> to vector<1x32xf32>
    %6 = vector.extract_strided_slice %0 {offsets = [5, 0], sizes = [1, 32], strides = [1, 1]} : vector<8x128xf32> to vector<1x32xf32>
    %7 = vector.extract_strided_slice %0 {offsets = [6, 0], sizes = [1, 32], strides = [1, 1]} : vector<8x128xf32> to vector<1x32xf32>
    %8 = vector.extract_strided_slice %0 {offsets = [7, 0], sizes = [1, 32], strides = [1, 1]} : vector<8x128xf32> to vector<1x32xf32>
    %c0_1 = arith.constant 0 : index
    %c0_2 = arith.constant 0 : index
    %c0_3 = arith.constant 0 : index
    %9 = vector.load %arg2[%c0_1, %c0_2, %c0_3] : memref<1x16x32xf32, #tpu.memory_space<vmem>>, vector<1x16x32xf32>
    %10 = vector.shape_cast %9 : vector<1x16x32xf32> to vector<16x32xf32>
    %11 = arith.truncf %10 : vector<16x32xf32> to vector<16x32xbf16>
    %c0_4 = arith.constant 0 : index
    %c0_5 = arith.constant 0 : index
    %c0_6 = arith.constant 0 : index
    %12 = vector.load %arg3[%c0_4, %c0_5, %c0_6] : memref<1x64x32xf32, #tpu.memory_space<vmem>>, vector<1x64x32xf32>
    %13 = vector.shape_cast %12 : vector<1x64x32xf32> to vector<64x32xf32>
    %14 = arith.truncf %13 : vector<64x32xf32> to vector<64x32xbf16>
    %c0_7 = arith.constant 0 : index
    %c0_8 = arith.constant 0 : index
    %15 = vector.load %arg5[%c0_7, %c0_8] : memref<32x128xbf16, #tpu.memory_space<vmem>>, vector<32x128xbf16>
    %cst = arith.constant dense<0.000000e+00> : vector<16x128xf32>
    %16 = tpu.matmul %11, %15, %cst {dimension_numbers = #tpu.dot_dimension_numbers<[1], [0], [0], [1], [0, 0, 1, 1], [], []>} : vector<16x32xbf16>, vector<32x128xbf16>, vector<16x128xf32> -> vector<16x128xf32>
    %17 = vector.broadcast %1 : vector<1x128xf32> to vector<16x128xf32>
    %18 = arith.addf %16, %17 : vector<16x128xf32>
    %c0_9 = arith.constant 0 : index
    %c0_10 = arith.constant 0 : index
    %19 = vector.load %arg6[%c0_9, %c0_10] : memref<32x256xbf16, #tpu.memory_space<vmem>>, vector<32x256xbf16>
    %cst_11 = arith.constant dense<0.000000e+00> : vector<64x256xf32>
    %20 = tpu.matmul %14, %19, %cst_11 {dimension_numbers = #tpu.dot_dimension_numbers<[1], [0], [0], [1], [0, 0, 1, 1], [], []>} : vector<64x32xbf16>, vector<32x256xbf16>, vector<64x256xf32> -> vector<64x256xf32>
    %21 = vector.extract_strided_slice %20 {offsets = [0, 0], sizes = [64, 128], strides = [1, 1]} : vector<64x256xf32> to vector<64x128xf32>
    %22 = vector.broadcast %2 : vector<1x128xf32> to vector<64x128xf32>
    %23 = arith.addf %21, %22 : vector<64x128xf32>
    %24 = vector.extract_strided_slice %20 {offsets = [0, 128], sizes = [64, 128], strides = [1, 1]} : vector<64x256xf32> to vector<64x128xf32>
    %25 = vector.broadcast %3 : vector<1x128xf32> to vector<64x128xf32>
    %26 = arith.addf %24, %25 : vector<64x128xf32>
    %c0_12 = arith.constant 0 : index
    %c0_13 = arith.constant 0 : index
    %c0_14 = arith.constant 0 : index
    %c0_15 = arith.constant 0 : index
    %27 = vector.load %arg4[%c0_12, %c0_13, %c0_14, %c0_15] : memref<1x16x64x16xbf16, #tpu.memory_space<vmem>>, vector<1x16x64x16xbf16>
    %28 = vector.shape_cast %27 : vector<1x16x64x16xbf16> to vector<16x64x16xbf16>
    %29 = vector.shape_cast %28 : vector<16x64x16xbf16> to vector<1024x16xbf16>
    %c0_16 = arith.constant 0 : index
    %c0_17 = arith.constant 0 : index
    %30 = vector.load %arg7[%c0_16, %c0_17] : memref<16x256xbf16, #tpu.memory_space<vmem>>, vector<16x256xbf16>
    %cst_18 = arith.constant dense<0.000000e+00> : vector<1024x256xf32>
    %31 = tpu.matmul %29, %30, %cst_18 {dimension_numbers = #tpu.dot_dimension_numbers<[1], [0], [0], [1], [0, 0, 1, 1], [], []>} : vector<1024x16xbf16>, vector<16x256xbf16>, vector<1024x256xf32> -> vector<1024x256xf32>
    %32 = vector.extract_strided_slice %31 {offsets = [0, 0], sizes = [1024, 128], strides = [1, 1]} : vector<1024x256xf32> to vector<1024x128xf32>
    %33 = vector.shape_cast %32 : vector<1024x128xf32> to vector<16x64x128xf32>
    %34 = vector.extract_strided_slice %31 {offsets = [0, 128], sizes = [1024, 128], strides = [1, 1]} : vector<1024x256xf32> to vector<1024x128xf32>
    %35 = vector.shape_cast %34 : vector<1024x128xf32> to vector<16x64x128xf32>
    %36 = vector.shape_cast %18 : vector<16x128xf32> to vector<16x1x128xf32>
    %37 = vector.shape_cast %23 : vector<64x128xf32> to vector<1x64x128xf32>
    %38 = vector.broadcast %37 : vector<1x64x128xf32> to vector<16x64x128xf32>
    %39 = arith.addf %38, %33 : vector<16x64x128xf32>
    %40 = vector.broadcast %36 : vector<16x1x128xf32> to vector<16x64x128xf32>
    %41 = arith.mulf %40, %39 : vector<16x64x128xf32>
    %42 = vector.shape_cast %41 : vector<16x64x128xf32> to vector<1024x128xf32>
    %43 = arith.truncf %42 : vector<1024x128xf32> to vector<1024x128xbf16>
    %c0_19 = arith.constant 0 : index
    %c0_20 = arith.constant 0 : index
    %44 = vector.load %arg8[%c0_19, %c0_20] : memref<128x128xbf16, #tpu.memory_space<vmem>>, vector<128x128xbf16>
    %cst_21 = arith.constant dense<0.000000e+00> : vector<1024x128xf32>
    %45 = tpu.matmul %43, %44, %cst_21 {dimension_numbers = #tpu.dot_dimension_numbers<[1], [0], [0], [1], [0, 0, 1, 1], [], []>} : vector<1024x128xbf16>, vector<128x128xbf16>, vector<1024x128xf32> -> vector<1024x128xf32>
    %46 = vector.shape_cast %45 : vector<1024x128xf32> to vector<16x64x128xf32>
    %cst_22 = arith.constant dense<0xFF800000> : vector<16x128xf32>
    %47 = vector.multi_reduction <maximumf>, %46, %cst_22 [1] : vector<16x64x128xf32> to vector<16x128xf32>
    %48 = vector.shape_cast %47 : vector<16x128xf32> to vector<16x1x128xf32>
    %49 = vector.broadcast %48 : vector<16x1x128xf32> to vector<16x64x128xf32>
    %50 = arith.subf %46, %49 : vector<16x64x128xf32>
    %51 = math.exp %50 : vector<16x64x128xf32>
    %cst_23 = arith.constant dense<0.000000e+00> : vector<16x128xf32>
    %52 = vector.multi_reduction <add>, %51, %cst_23 [1] : vector<16x64x128xf32> to vector<16x128xf32>
    %53 = vector.shape_cast %52 : vector<16x128xf32> to vector<16x1x128xf32>
    %54 = tpu.reciprocal %53 {approx = true} : vector<16x1x128xf32> -> vector<16x1x128xf32>
    %55 = vector.broadcast %54 : vector<16x1x128xf32> to vector<16x64x128xf32>
    %56 = arith.mulf %51, %55 : vector<16x64x128xf32>
    %57 = vector.shape_cast %26 : vector<64x128xf32> to vector<1x64x128xf32>
    %58 = vector.broadcast %57 : vector<1x64x128xf32> to vector<16x64x128xf32>
    %59 = arith.addf %58, %35 : vector<16x64x128xf32>
    %60 = arith.mulf %56, %59 : vector<16x64x128xf32>
    %cst_24 = arith.constant dense<0.000000e+00> : vector<16x128xf32>
    %61 = vector.multi_reduction <add>, %60, %cst_24 [1] : vector<16x64x128xf32> to vector<16x128xf32>
    %62 = arith.truncf %61 : vector<16x128xf32> to vector<16x128xbf16>
    %c0_25 = arith.constant 0 : index
    %c0_26 = arith.constant 0 : index
    %63 = vector.load %arg9[%c0_25, %c0_26] : memref<128x32xbf16, #tpu.memory_space<vmem>>, vector<128x32xbf16>
    %cst_27 = arith.constant dense<0.000000e+00> : vector<16x32xf32>
    %64 = tpu.matmul %62, %63, %cst_27 {dimension_numbers = #tpu.dot_dimension_numbers<[1], [0], [0], [1], [0, 0, 1, 1], [], []>} : vector<16x128xbf16>, vector<128x32xbf16>, vector<16x32xf32> -> vector<16x32xf32>
    %65 = vector.broadcast %4 : vector<1x32xf32> to vector<16x32xf32>
    %66 = arith.addf %64, %65 : vector<16x32xf32>
    %67 = arith.addf %10, %66 : vector<16x32xf32>
    %c0_28 = arith.constant 0 : index
    %c0_29 = arith.constant 0 : index
    %68 = vector.load %arg10[%c0_28, %c0_29] : memref<32x128xbf16, #tpu.memory_space<vmem>>, vector<32x128xbf16>
    %69 = vector.extract_strided_slice %68 {offsets = [0, 0], sizes = [32, 32], strides = [1, 1]} : vector<32x128xbf16> to vector<32x32xbf16>
    %70 = vector.extract_strided_slice %68 {offsets = [0, 32], sizes = [32, 32], strides = [1, 1]} : vector<32x128xbf16> to vector<32x32xbf16>
    %71 = vector.extract_strided_slice %68 {offsets = [0, 64], sizes = [32, 32], strides = [1, 1]} : vector<32x128xbf16> to vector<32x32xbf16>
    %72 = vector.extract_strided_slice %68 {offsets = [0, 96], sizes = [32, 32], strides = [1, 1]} : vector<32x128xbf16> to vector<32x32xbf16>
    %73 = arith.truncf %67 : vector<16x32xf32> to vector<16x32xbf16>
    %cst_30 = arith.constant dense<0.000000e+00> : vector<16x32xf32>
    %74 = tpu.matmul %73, %69, %cst_30 {dimension_numbers = #tpu.dot_dimension_numbers<[1], [0], [0], [1], [0, 0, 1, 1], [], []>} : vector<16x32xbf16>, vector<32x32xbf16>, vector<16x32xf32> -> vector<16x32xf32>
    %75 = vector.broadcast %5 : vector<1x32xf32> to vector<16x32xf32>
    %76 = arith.addf %74, %75 : vector<16x32xf32>
    %cst_31 = arith.constant 0.000000e+00 : f32
    %77 = vector.broadcast %cst_31 : f32 to vector<16x32xf32>
    %78 = arith.maximumf %76, %77 : vector<16x32xf32>
    %79 = arith.truncf %78 : vector<16x32xf32> to vector<16x32xbf16>
    %cst_32 = arith.constant dense<0.000000e+00> : vector<16x32xf32>
    %80 = tpu.matmul %79, %70, %cst_32 {dimension_numbers = #tpu.dot_dimension_numbers<[1], [0], [0], [1], [0, 0, 1, 1], [], []>} : vector<16x32xbf16>, vector<32x32xbf16>, vector<16x32xf32> -> vector<16x32xf32>
    %81 = vector.broadcast %6 : vector<1x32xf32> to vector<16x32xf32>
    %82 = arith.addf %80, %81 : vector<16x32xf32>
    %cst_33 = arith.constant 0.000000e+00 : f32
    %83 = vector.broadcast %cst_33 : f32 to vector<16x32xf32>
    %84 = arith.maximumf %82, %83 : vector<16x32xf32>
    %85 = arith.truncf %84 : vector<16x32xf32> to vector<16x32xbf16>
    %cst_34 = arith.constant dense<0.000000e+00> : vector<16x32xf32>
    %86 = tpu.matmul %85, %71, %cst_34 {dimension_numbers = #tpu.dot_dimension_numbers<[1], [0], [0], [1], [0, 0, 1, 1], [], []>} : vector<16x32xbf16>, vector<32x32xbf16>, vector<16x32xf32> -> vector<16x32xf32>
    %87 = vector.broadcast %7 : vector<1x32xf32> to vector<16x32xf32>
    %88 = arith.addf %86, %87 : vector<16x32xf32>
    %cst_35 = arith.constant 0.000000e+00 : f32
    %89 = vector.broadcast %cst_35 : f32 to vector<16x32xf32>
    %90 = arith.maximumf %88, %89 : vector<16x32xf32>
    %91 = arith.truncf %90 : vector<16x32xf32> to vector<16x32xbf16>
    %cst_36 = arith.constant dense<0.000000e+00> : vector<16x32xf32>
    %92 = tpu.matmul %91, %72, %cst_36 {dimension_numbers = #tpu.dot_dimension_numbers<[1], [0], [0], [1], [0, 0, 1, 1], [], []>} : vector<16x32xbf16>, vector<32x32xbf16>, vector<16x32xf32> -> vector<16x32xf32>
    %93 = vector.broadcast %8 : vector<1x32xf32> to vector<16x32xf32>
    %94 = arith.addf %92, %93 : vector<16x32xf32>
    %95 = arith.addf %67, %94 : vector<16x32xf32>
    %c0_37 = arith.constant 0 : index
    %c0_38 = arith.constant 0 : index
    %c0_39 = arith.constant 0 : index
    %96 = vector.load %arg12[%c0_37, %c0_38, %c0_39] : memref<1x16x32xf32, #tpu.memory_space<vmem>>, vector<1x16x32xf32>
    %97 = vector.shape_cast %96 : vector<1x16x32xf32> to vector<16x32xf32>
    %98 = vector.shape_cast %95 : vector<16x32xf32> to vector<1x16x32xf32>
    tpu.vector_store %arg12[%c0_37, %c0_38, %c0_39], %98 {strides = array<i32>} : memref<1x16x32xf32, #tpu.memory_space<vmem>>, vector<1x16x32xf32>,
    return
  }
  func.func @transform_0(%arg0: i32, %arg1: i32) -> (i32, i32, i32) {
    %c0_i32 = arith.constant 0 : i32
    %c0_i32_0 = arith.constant 0 : i32
    return %arg0, %arg1, %c0_i32 : i32, i32, i32
  }
  func.func @transform_1(%arg0: i32, %arg1: i32) -> (i32, i32, i32) {
    %c0_i32 = arith.constant 0 : i32
    %c0_i32_0 = arith.constant 0 : i32
    %c0_i32_1 = arith.constant 0 : i32
    return %arg0, %c0_i32, %c0_i32_0 : i32, i32, i32
  }
  func.func @transform_2(%arg0: i32, %arg1: i32) -> (i32, i32, i32, i32) {
    %c0_i32 = arith.constant 0 : i32
    %c0_i32_0 = arith.constant 0 : i32
    %c0_i32_1 = arith.constant 0 : i32
    return %arg0, %arg1, %c0_i32, %c0_i32_0 : i32, i32, i32, i32
  }
  func.func @transform_3(%arg0: i32, %arg1: i32) -> (i32, i32) {
    %c0_i32 = arith.constant 0 : i32
    %c0_i32_0 = arith.constant 0 : i32
    %c0_i32_1 = arith.constant 0 : i32
    return %c0_i32, %c0_i32_0 : i32, i32
  }
  func.func @transform_4(%arg0: i32, %arg1: i32) -> (i32, i32) {
    %c0_i32 = arith.constant 0 : i32
    %c0_i32_0 = arith.constant 0 : i32
    %c0_i32_1 = arith.constant 0 : i32
    return %c0_i32, %c0_i32_0 : i32, i32
  }
  func.func @transform_5(%arg0: i32, %arg1: i32) -> (i32, i32) {
    %c0_i32 = arith.constant 0 : i32
    %c0_i32_0 = arith.constant 0 : i32
    %c0_i32_1 = arith.constant 0 : i32
    return %c0_i32, %c0_i32_0 : i32, i32
  }
  func.func @transform_6(%arg0: i32, %arg1: i32) -> (i32, i32) {
    %c0_i32 = arith.constant 0 : i32
    %c0_i32_0 = arith.constant 0 : i32
    %c0_i32_1 = arith.constant 0 : i32
    return %c0_i32, %c0_i32_0 : i32, i32
  }
  func.func @transform_7(%arg0: i32, %arg1: i32) -> (i32, i32) {
    %c0_i32 = arith.constant 0 : i32
    %c0_i32_0 = arith.constant 0 : i32
    %c0_i32_1 = arith.constant 0 : i32
    return %c0_i32, %c0_i32_0 : i32, i32
  }
  func.func @transform_8(%arg0: i32, %arg1: i32) -> (i32, i32) {
    %c0_i32 = arith.constant 0 : i32
    %c0_i32_0 = arith.constant 0 : i32
    %c0_i32_1 = arith.constant 0 : i32
    return %c0_i32, %c0_i32_0 : i32, i32
  }
  func.func @transform_9(%arg0: i32, %arg1: i32) -> (i32, i32) {
    %c0_i32 = arith.constant 0 : i32
    %c0_i32_0 = arith.constant 0 : i32
    %c0_i32_1 = arith.constant 0 : i32
    return %c0_i32, %c0_i32_0 : i32, i32
  }
  func.func @transform_10(%arg0: i32, %arg1: i32) -> (i32, i32, i32) {
    %c0_i32 = arith.constant 0 : i32
    %c0_i32_0 = arith.constant 0 : i32
    return %arg0, %arg1, %c0_i32 : i32, i32, i32
  }
}

</mosaic_0001>

<llo_original>
// kernel: tpu_custom_call.1
$region0: #{tpu_custom_call.1}
  #allocation0 [shape = 'u32[]', space=smem, size = 0x4, offset = 0x4, fixed_abs, tag = 'smem constant byte address 0x4 - core index']
  #allocation1 [shape = 'u32[144,128]{1,0:T(1,128)}', space=vmem, size = 0x12000, scoped, tag = 'internal scratch']
  %s0 = inlined_call_operand.vmem [shape: f32[2,64,32], index: 0, kind: input, shape index: {}]
  %s1 = inlined_call_operand.vmem [shape: f32[2,64,32], index: 1, kind: input, shape index: {}]
  %s2 = inlined_call_operand.vmem [shape: bf16[2,64,64,16], index: 2, kind: input, shape index: {}]
  %s3 = inlined_call_operand.vmem [shape: bf16[32,128], index: 3, kind: input, shape index: {}]
  %s4 = inlined_call_operand.vmem [shape: bf16[32,256], index: 4, kind: input, shape index: {}]
  %s5 = inlined_call_operand.vmem [shape: bf16[16,256], index: 5, kind: input, shape index: {}]
  %s6 = inlined_call_operand.vmem [shape: bf16[128,128], index: 6, kind: input, shape index: {}]
  %s7 = inlined_call_operand.vmem [shape: bf16[128,32], index: 7, kind: input, shape index: {}]
  %s8 = inlined_call_operand.vmem [shape: bf16[32,128], index: 8, kind: input, shape index: {}]
  %s9 = inlined_call_operand.vmem [shape: f32[8,128], index: 9, kind: input, shape index: {}]
  %s10 = inlined_call_operand.vmem [shape: f32[2,64,32], index: 10, kind: output, shape index: {}]
  %s11 = sld [smem:[#allocation0]]
  $region73: #{tpu_custom_call.1} parent=0
    _
  %s13 = ssub.s32 1, %s11
  %s14 = scalar_select 0, %s13, %s11
  loop: start=0, step=1, limit=10
  $region2: #{tpu_custom_call.1} parent=0 // loop_pre_header
    _
  $region3: #{tpu_custom_call.1} parent=0 // loop_header
    %s16 = sphi 0, %s20
    %p17 = scmp.ge.s32.totalorder %s16, 10
    %s23 = sphi 0, %s35
    %s24 = sphi 0, %s31
    %s25 = sphi 0, %s23
    %s26 = sphi 0, %s24
    %s27 = sphi 0, %s25
    %s28 = sphi 0, %s26
    %s40 = sphi 0, %s42
    %s43 = sphi 0, %s40
    %s44 = sphi 0, %s43
    %s60 = sphi 0, %s44
    %s66 = sphi 0, %s68
    %s69 = sphi 0, %s66
    %s70 = sphi 0, %s69
    %s86 = sphi 0, %s70
    %s94 = sphi 0, %s96
    %s97 = sphi 0, %s94
    %s98 = sphi 0, %s97
    %s114 = sphi 0, %s98
    %s118 = sphi 0, %s118
    %s120 = sphi 0, %s118
    %s121 = sphi 0, %s120
    %s135 = sphi 0, %s121
    %s139 = sphi 0, %s139
    %s141 = sphi 0, %s139
    %s142 = sphi 0, %s141
    %s156 = sphi 0, %s142
    %s160 = sphi 0, %s160
    %s162 = sphi 0, %s160
    %s163 = sphi 0, %s162
    %s177 = sphi 0, %s163
    %s181 = sphi 0, %s181
    %s183 = sphi 0, %s181
    %s184 = sphi 0, %s183
    %s198 = sphi 0, %s184
    %s202 = sphi 0, %s202
    %s204 = sphi 0, %s202
    %s205 = sphi 0, %s204
    %s219 = sphi 0, %s205
    %s223 = sphi 0, %s223
    %s225 = sphi 0, %s223
    %s226 = sphi 0, %s225
    %s240 = sphi 0, %s226
    %s244 = sphi 0, %s244
    %s246 = sphi 0, %s244
    %s247 = sphi 0, %s246
    %s261 = sphi 0, %s247
    %s269 = sphi 0, %s271
    %s272 = sphi 0, %s269
    %s273 = sphi 0, %s272
    %s289 = sphi 0, %s273
  $region4: #{tpu_custom_call.1} parent=0 // loop_header_branch
    %19 = sbr.rel (%p17) target = $region8
  $region5: #{tpu_custom_call.1} parent=0 // loop_body
    %s21 = ssub.s32 %s16, 1
    %s22 = ssub.s32 %s16, 2
    %s29 = sadd.s32 1, %s24
    %p30 = scmp.ge.s32.totalorder %s29, 4
    %s31 = scalar_select %p30, 0, %s29
    %s32 = sadd.s32 1, %s23
    %s33 = scalar_select %p30, %s32, %s23
    %p34 = scmp.ge.s32.totalorder %s33, 2
    %s35 = scalar_select %p34, 0, %s33
    %s36 = ssub.s32 %s23, %s35
    %s37 = ssub.s32 %s24, %s31
    %s38 = sor.u32 %s36, %s37
    %p39 = scmp.eq.s32.totalorder %s38, 0
    %s41 = sadd.s32 %s40, 1
    %s42 = scalar_select %p39, %s40, %s41
    %p45 = pneg %p39
    %p46 = scmp.eq.s32.totalorder %s16, 7
    %p47 = por %p45, %p46
    %p48 = scmp.ne.s32.totalorder %s40, %s43
    %p49 = scmp.eq.s32.totalorder %s16, 0
    %p50 = por %p48, %p49
    %p51 = scmp.ne.s32.totalorder %s40, %s43
    %p52 = scmp.eq.s32.totalorder %s21, 7
    %p53 = por %p51, %p52
    %p54 = scmp.ne.s32.totalorder %s43, %s44
    %p55 = scmp.eq.s32.totalorder %s21, 0
    %p56 = por %p54, %p55
    %p57 = scmp.ne.s32.totalorder %s43, %s44
    %p58 = scmp.eq.s32.totalorder %s22, 7
    %p59 = por %p57, %p58
    %p61 = scmp.ne.s32.totalorder %s44, %s60
    %p62 = scmp.eq.s32.totalorder %s22, 0
    %p63 = por %p61, %p62
    %s64 = ssub.s32 %s23, %s35
    %p65 = scmp.eq.s32.totalorder %s64, 0
    %s67 = sadd.s32 %s66, 1
    %s68 = scalar_select %p65, %s66, %s67
    %p71 = pneg %p65
    %p72 = scmp.eq.s32.totalorder %s16, 7
    %p73 = por %p71, %p72
    %p74 = scmp.ne.s32.totalorder %s66, %s69
    %p75 = scmp.eq.s32.totalorder %s16, 0
    %p76 = por %p74, %p75
    %p77 = scmp.ne.s32.totalorder %s66, %s69
    %p78 = scmp.eq.s32.totalorder %s21, 7
    %p79 = por %p77, %p78
    %p80 = scmp.ne.s32.totalorder %s69, %s70
    %p81 = scmp.eq.s32.totalorder %s21, 0
    %p82 = por %p80, %p81
    %p83 = scmp.ne.s32.totalorder %s69, %s70
    %p84 = scmp.eq.s32.totalorder %s22, 7
    %p85 = por %p83, %p84
    %p87 = scmp.ne.s32.totalorder %s70, %s86
    %p88 = scmp.eq.s32.totalorder %s22, 0
    %p89 = por %p87, %p88
    %s90 = ssub.s32 %s23, %s35
    %s91 = ssub.s32 %s24, %s31
    %s92 = sor.u32 %s90, %s91
    %p93 = scmp.eq.s32.totalorder %s92, 0
    %s95 = sadd.s32 %s94, 1
    %s96 = scalar_select %p93, %s94, %s95
    %p99 = pneg %p93
    %p100 = scmp.eq.s32.totalorder %s16, 7
    %p101 = por %p99, %p100
    %p102 = scmp.ne.s32.totalorder %s94, %s97
    %p103 = scmp.eq.s32.totalorder %s16, 0
    %p104 = por %p102, %p103
    %p105 = scmp.ne.s32.totalorder %s94, %s97
    %p106 = scmp.eq.s32.totalorder %s21, 7
    %p107 = por %p105, %p106
    %p108 = scmp.ne.s32.totalorder %s97, %s98
    %p109 = scmp.eq.s32.totalorder %s21, 0
    %p110 = por %p108, %p109
    %p111 = scmp.ne.s32.totalorder %s97, %s98
    %p112 = scmp.eq.s32.totalorder %s22, 7
    %p113 = por %p111, %p112
    %p115 = scmp.ne.s32.totalorder %s98, %s114
    %p116 = scmp.eq.s32.totalorder %s22, 0
    %p117 = por %p115, %p116
    %s119 = sadd.s32 %s118, 1
    %p122 = scmp.eq.s32.totalorder %s16, 7
    %p123 = scmp.ne.s32.totalorder %s118, %s120
    %p124 = scmp.eq.s32.totalorder %s16, 0
    %p125 = por %p123, %p124
    %p126 = scmp.ne.s32.totalorder %s118, %s120
    %p127 = scmp.eq.s32.totalorder %s21, 7
    %p128 = por %p126, %p127
    %p129 = scmp.ne.s32.totalorder %s120, %s121
    %p130 = scmp.eq.s32.totalorder %s21, 0
    %p131 = por %p129, %p130
    %p132 = scmp.ne.s32.totalorder %s120, %s121
    %p133 = scmp.eq.s32.totalorder %s22, 7
    %p134 = por %p132, %p133
    %p136 = scmp.ne.s32.totalorder %s121, %s135
    %p137 = scmp.eq.s32.totalorder %s22, 0
    %p138 = por %p136, %p137
    %s140 = sadd.s32 %s139, 1
    %p143 = scmp.eq.s32.totalorder %s16, 7
    %p144 = scmp.ne.s32.totalorder %s139, %s141
    %p145 = scmp.eq.s32.totalorder %s16, 0
    %p146 = por %p144, %p145
    %p147 = scmp.ne.s32.totalorder %s139, %s141
    %p148 = scmp.eq.s32.totalorder %s21, 7
    %p149 = por %p147, %p148
    %p150 = scmp.ne.s32.totalorder %s141, %s142
    %p151 = scmp.eq.s32.totalorder %s21, 0
    %p152 = por %p150, %p151
    %p153 = scmp.ne.s32.totalorder %s141, %s142
    %p154 = scmp.eq.s32.totalorder %s22, 7
    %p155 = por %p153, %p154
    %p157 = scmp.ne.s32.totalorder %s142, %s156
    %p158 = scmp.eq.s32.totalorder %s22, 0
    %p159 = por %p157, %p158
    %s161 = sadd.s32 %s160, 1
    %p164 = scmp.eq.s32.totalorder %s16, 7
    %p165 = scmp.ne.s32.totalorder %s160, %s162
    %p166 = scmp.eq.s32.totalorder %s16, 0
    %p167 = por %p165, %p166
    %p168 = scmp.ne.s32.totalorder %s160, %s162
    %p169 = scmp.eq.s32.totalorder %s21, 7
    %p170 = por %p168, %p169
    %p171 = scmp.ne.s32.totalorder %s162, %s163
    %p172 = scmp.eq.s32.totalorder %s21, 0
    %p173 = por %p171, %p172
    %p174 = scmp.ne.s32.totalorder %s162, %s163
    %p175 = scmp.eq.s32.totalorder %s22, 7
    %p176 = por %p174, %p175
    %p178 = scmp.ne.s32.totalorder %s163, %s177
    %p179 = scmp.eq.s32.totalorder %s22, 0
    %p180 = por %p178, %p179
    %s182 = sadd.s32 %s181, 1
    %p185 = scmp.eq.s32.totalorder %s16, 7
    %p186 = scmp.ne.s32.totalorder %s181, %s183
    %p187 = scmp.eq.s32.totalorder %s16, 0
    %p188 = por %p186, %p187
    %p189 = scmp.ne.s32.totalorder %s181, %s183
    %p190 = scmp.eq.s32.totalorder %s21, 7
    %p191 = por %p189, %p190
    %p192 = scmp.ne.s32.totalorder %s183, %s184
    %p193 = scmp.eq.s32.totalorder %s21, 0
    %p194 = por %p192, %p193
    %p195 = scmp.ne.s32.totalorder %s183, %s184
    %p196 = scmp.eq.s32.totalorder %s22, 7
    %p197 = por %p195, %p196
    %p199 = scmp.ne.s32.totalorder %s184, %s198
    %p200 = scmp.eq.s32.totalorder %s22, 0
    %p201 = por %p199, %p200
    %s203 = sadd.s32 %s202, 1
    %p206 = scmp.eq.s32.totalorder %s16, 7
    %p207 = scmp.ne.s32.totalorder %s202, %s204
    %p208 = scmp.eq.s32.totalorder %s16, 0
    %p209 = por %p207, %p208
    %p210 = scmp.ne.s32.totalorder %s202, %s204
    %p211 = scmp.eq.s32.totalorder %s21, 7
    %p212 = por %p210, %p211
    %p213 = scmp.ne.s32.totalorder %s204, %s205
    %p214 = scmp.eq.s32.totalorder %s21, 0
    %p215 = por %p213, %p214
    %p216 = scmp.ne.s32.totalorder %s204, %s205
    %p217 = scmp.eq.s32.totalorder %s22, 7
    %p218 = por %p216, %p217
    %p220 = scmp.ne.s32.totalorder %s205, %s219
    %p221 = scmp.eq.s32.totalorder %s22, 0
    %p222 = por %p220, %p221
    %s224 = sadd.s32 %s223, 1
    %p227 = scmp.eq.s32.totalorder %s16, 7
    %p228 = scmp.ne.s32.totalorder %s223, %s225
    %p229 = scmp.eq.s32.totalorder %s16, 0
    %p230 = por %p228, %p229
    %p231 = scmp.ne.s32.totalorder %s223, %s225
    %p232 = scmp.eq.s32.totalorder %s21, 7
    %p233 = por %p231, %p232
    %p234 = scmp.ne.s32.totalorder %s225, %s226
    %p235 = scmp.eq.s32.totalorder %s21, 0
    %p236 = por %p234, %p235
    %p237 = scmp.ne.s32.totalorder %s225, %s226
    %p238 = scmp.eq.s32.totalorder %s22, 7
    %p239 = por %p237, %p238
    %p241 = scmp.ne.s32.totalorder %s226, %s240
    %p242 = scmp.eq.s32.totalorder %s22, 0
    %p243 = por %p241, %p242
    %s245 = sadd.s32 %s244, 1
    %p248 = scmp.eq.s32.totalorder %s16, 7
    %p249 = scmp.ne.s32.totalorder %s244, %s246
    %p250 = scmp.eq.s32.totalorder %s16, 0
    %p251 = por %p249, %p250
    %p252 = scmp.ne.s32.totalorder %s244, %s246
    %p253 = scmp.eq.s32.totalorder %s21, 7
    %p254 = por %p252, %p253
    %p255 = scmp.ne.s32.totalorder %s246, %s247
    %p256 = scmp.eq.s32.totalorder %s21, 0
    %p257 = por %p255, %p256
    %p258 = scmp.ne.s32.totalorder %s246, %s247
    %p259 = scmp.eq.s32.totalorder %s22, 7
    %p260 = por %p258, %p259
    %p262 = scmp.ne.s32.totalorder %s247, %s261
    %p263 = scmp.eq.s32.totalorder %s22, 0
    %p264 = por %p262, %p263
    %s265 = ssub.s32 %s23, %s35
    %s266 = ssub.s32 %s24, %s31
    %s267 = sor.u32 %s265, %s266
    %p268 = scmp.eq.s32.totalorder %s267, 0
    %s270 = sadd.s32 %s269, 1
    %s271 = scalar_select %p268, %s269, %s270
    %p274 = pneg %p268
    %p275 = scmp.eq.s32.totalorder %s16, 7
    %p276 = por %p274, %p275
    %p277 = scmp.ne.s32.totalorder %s269, %s272
    %p278 = scmp.eq.s32.totalorder %s16, 0
    %p279 = por %p277, %p278
    %p280 = scmp.ne.s32.totalorder %s269, %s272
    %p281 = scmp.eq.s32.totalorder %s21, 7
    %p282 = por %p280, %p281
    %p283 = scmp.ne.s32.totalorder %s272, %s273
    %p284 = scmp.eq.s32.totalorder %s21, 0
    %p285 = por %p283, %p284
    %p286 = scmp.ne.s32.totalorder %s272, %s273
    %p287 = scmp.eq.s32.totalorder %s22, 7
    %p288 = por %p286, %p287
    %p290 = scmp.ne.s32.totalorder %s273, %s289
    %p291 = scmp.eq.s32.totalorder %s22, 0
    %p292 = por %p290, %p291
    %p293 = scmp.le.s32.totalorder 1, %s16
    %p294 = scmp.lt.s32.totalorder %s16, 9
    %p295 = pnand %p293, %p294
    %p296 = pneg %p295
    // Predicated region
    $region9: #{tpu_custom_call.1} parent=5 // pred_check
      _
    $region10: #{tpu_custom_call.1} parent=5 // pred_check_branch
      %298 = sbr.rel (%p295) target = $region12
    $region11: #{tpu_custom_call.1} parent=5 // pred_region
      %s299 = ssub.s32 %s16, 1
      // Predicated region
      $region13: #{tpu_custom_call.1} parent=11 // pred_check
        %p300 = pneg %p131
      $region14: #{tpu_custom_call.1} parent=11 // pred_check_branch
        %302 = sbr.rel (%p300) target = $region16
      $region15: #{tpu_custom_call.1} parent=11 // pred_region
        _
      $region16: #{tpu_custom_call.1} parent=11 // pred_fallthru
        _
      // Predicated region
      $region17: #{tpu_custom_call.1} parent=11 // pred_check
        %p303 = pneg %p152
      $region18: #{tpu_custom_call.1} parent=11 // pred_check_branch
        %305 = sbr.rel (%p303) target = $region20
      $region19: #{tpu_custom_call.1} parent=11 // pred_region
        _
      $region20: #{tpu_custom_call.1} parent=11 // pred_fallthru
        _
      // Predicated region
      $region21: #{tpu_custom_call.1} parent=11 // pred_check
        %p306 = pneg %p173
      $region22: #{tpu_custom_call.1} parent=11 // pred_check_branch
        %308 = sbr.rel (%p306) target = $region24
      $region23: #{tpu_custom_call.1} parent=11 // pred_region
        _
      $region24: #{tpu_custom_call.1} parent=11 // pred_fallthru
        _
      // Predicated region
      $region25: #{tpu_custom_call.1} parent=11 // pred_check
        %p309 = pneg %p194
      $region26: #{tpu_custom_call.1} parent=11 // pred_check_branch
        %311 = sbr.rel (%p309) target = $region28
      $region27: #{tpu_custom_call.1} parent=11 // pred_region
        _
      $region28: #{tpu_custom_call.1} parent=11 // pred_fallthru
        _
      // Predicated region
      $region29: #{tpu_custom_call.1} parent=11 // pred_check
        %p312 = pneg %p215
      $region30: #{tpu_custom_call.1} parent=11 // pred_check_branch
        %314 = sbr.rel (%p312) target = $region32
      $region31: #{tpu_custom_call.1} parent=11 // pred_region
        _
      $region32: #{tpu_custom_call.1} parent=11 // pred_fallthru
        _
      // Predicated region
      $region33: #{tpu_custom_call.1} parent=11 // pred_check
        %p315 = pneg %p236
      $region34: #{tpu_custom_call.1} parent=11 // pred_check_branch
        %317 = sbr.rel (%p315) target = $region36
      $region35: #{tpu_custom_call.1} parent=11 // pred_region
        _
      $region36: #{tpu_custom_call.1} parent=11 // pred_fallthru
        _
      // Predicated region
      $region37: #{tpu_custom_call.1} parent=11 // pred_check
        %p318 = pneg %p257
      $region38: #{tpu_custom_call.1} parent=11 // pred_check_branch
        %320 = sbr.rel (%p318) target = $region40
      $region39: #{tpu_custom_call.1} parent=11 // pred_region
        _
      $region40: #{tpu_custom_call.1} parent=11 // pred_fallthru
        _
    $region12: #{tpu_custom_call.1} parent=5 // pred_fallthru
      _
    %p321 = scmp.lt.s32.totalorder %s16, 8
    // Predicated region
    $region41: #{tpu_custom_call.1} parent=5 // pred_check
      %p322 = pneg %p321
    $region42: #{tpu_custom_call.1} parent=5 // pred_check_branch
      %324 = sbr.rel (%p322) target = $region44
    $region43: #{tpu_custom_call.1} parent=5 // pred_region
      // Predicated region
      $region45: #{tpu_custom_call.1} parent=43 // pred_check
        %p325 = pneg %p50
      $region46: #{tpu_custom_call.1} parent=43 // pred_check_branch
        %327 = sbr.rel (%p325) target = $region48
      $region47: #{tpu_custom_call.1} parent=43 // pred_region
        %s328 = smul.u32 2, %s24
        %p329 = scmp.lt.s32.totalorder %s23, 1
        %s330 = scalar_select %p329, %s23, 1
        %p331 = scmp.lt.s32.totalorder %s328, 7
        %s332 = scalar_select %p331, %s328, 7
        %s333 = smul.addr %s330, 8
        %s334 = sadd.s32 %s332, %s333
        %s335 = smul.addr %s334, 8
        %s336 = scalar_lea.vmem %s0, %s335
        %s337 = smul.u32 2, %s24
      $region48: #{tpu_custom_call.1} parent=43 // pred_fallthru
        _
      // Predicated region
      $region49: #{tpu_custom_call.1} parent=43 // pred_check
        %p338 = pneg %p76
      $region50: #{tpu_custom_call.1} parent=43 // pred_check_branch
        %340 = sbr.rel (%p338) target = $region52
      $region51: #{tpu_custom_call.1} parent=43 // pred_region
        %p341 = scmp.lt.s32.totalorder %s23, 1
        %s342 = scalar_select %p341, %s23, 1
        %s343 = smul.addr %s342, 8
        %s344 = smul.addr %s343, 8
        %s345 = scalar_lea.vmem %s1, %s344
      $region52: #{tpu_custom_call.1} parent=43 // pred_fallthru
        _
      // Predicated region
      $region53: #{tpu_custom_call.1} parent=43 // pred_check
        %p346 = pneg %p104
      $region54: #{tpu_custom_call.1} parent=43 // pred_check_branch
        %348 = sbr.rel (%p346) target = $region56
      $region55: #{tpu_custom_call.1} parent=43 // pred_region
        %s349 = smul.u32 16, %s24
        %p350 = scmp.lt.s32.totalorder %s23, 1
        %s351 = scalar_select %p350, %s23, 1
        %p352 = scmp.lt.s32.totalorder %s349, 63
        %s353 = scalar_select %p352, %s349, 63
        %s354 = smul.addr %s353, 8
        %s355 = smul.addr %s351, 512
        %s356 = sadd.s32 %s354, %s355
        %s357 = smul.addr %s356, 4
        %s358 = scalar_lea.vmem %s2, %s357
        %s359 = smul.u32 16, %s24
      $region56: #{tpu_custom_call.1} parent=43 // pred_fallthru
        _
    $region44: #{tpu_custom_call.1} parent=5 // pred_fallthru
      _
    %p360 = scmp.le.s32.totalorder 1, %s16
    %p361 = scmp.lt.s32.totalorder %s16, 9
    %p362 = pnand %p360, %p361
    %p363 = pneg %p362
    // Predicated region
    $region57: #{tpu_custom_call.1} parent=5 // pred_check
      _
    $region58: #{tpu_custom_call.1} parent=5 // pred_check_branch
      %365 = sbr.rel (%p362) target = $region60
    $region59: #{tpu_custom_call.1} parent=5 // pred_region
      %s366 = ssub.s32 %s16, 1
      %s367 = smul.u32 2, %s26
      %p368 = scmp.lt.s32.totalorder %s25, 1
      %s369 = scalar_select %p368, %s25, 1
      %p370 = scmp.lt.s32.totalorder %s367, 7
      %s371 = scalar_select %p370, %s367, 7
      %s372 = smul.addr %s369, 8
      %s373 = sadd.s32 %s371, %s372
      %s374 = smul.addr %s373, 8
      %s375 = scalar_lea.vmem %s0, %s374
      %p376 = pneg %p56
      %p377 = pneg %p53
      %p378 = scmp.lt.s32.totalorder %s25, 1
      %s379 = scalar_select %p378, %s25, 1
      %s380 = smul.addr %s379, 8
      %s381 = smul.addr %s380, 8
      %s382 = scalar_lea.vmem %s1, %s381
      %p383 = pneg %p82
      %p384 = pneg %p79
      %s385 = smul.u32 16, %s26
      %p386 = scmp.lt.s32.totalorder %s25, 1
      %s387 = scalar_select %p386, %s25, 1
      %p388 = scmp.lt.s32.totalorder %s385, 63
      %s389 = scalar_select %p388, %s385, 63
      %s390 = smul.addr %s389, 8
      %s391 = smul.addr %s387, 512
      %s392 = sadd.s32 %s390, %s391
      %s393 = smul.addr %s392, 4
      %s394 = scalar_lea.vmem %s2, %s393
      %p395 = pneg %p110
      %p396 = pneg %p107
      %p397 = pneg %p131
      %p398 = pneg %p128
      %p399 = pneg %p152
      %p400 = pneg %p149
      %p401 = pneg %p173
      %p402 = pneg %p170
      %p403 = pneg %p194
      %p404 = pneg %p191
      %p405 = pneg %p215
      %p406 = pneg %p212
      %p407 = pneg %p236
      %p408 = pneg %p233
      %p409 = pneg %p257
      %p410 = pneg %p254
      %p411 = pneg %p285
      %p412 = pneg %p282
      %s413 = smul.u32 2, %s26
      %p414 = scmp.lt.s32.totalorder %s25, 1
      %s415 = scalar_select %p414, %s25, 1
      %p416 = scmp.lt.s32.totalorder %s413, 7
      %s417 = scalar_select %p416, %s413, 7
      %s418 = smul.addr %s415, 8
      %s419 = sadd.s32 %s417, %s418
      %s420 = smul.addr %s419, 8
      %s421 = scalar_lea.vmem %s10, %s420
      %s422 = smul.u32 2, %s26
      %p423 = scmp.lt.s32.totalorder %s25, 1
      %s424 = scalar_select %p423, %s25, 1
      %p425 = scmp.lt.s32.totalorder %s422, 7
      %s426 = scalar_select %p425, %s422, 7
      %s427 = smul.addr %s424, 8
      %s428 = sadd.s32 %s426, %s427
      %s429 = smul.addr %s428, 8
      %s430 = scalar_lea.vmem %s0, %s429
      %s431 = smul.u32 2, %s26
      %p432 = scmp.lt.s32.totalorder %s25, 1
      %s433 = scalar_select %p432, %s25, 1
      %s434 = smul.addr %s433, 8
      %s435 = smul.addr %s434, 8
      %s436 = scalar_lea.vmem %s1, %s435
      %s437 = smul.u32 16, %s26
      %p438 = scmp.lt.s32.totalorder %s25, 1
      %s439 = scalar_select %p438, %s25, 1
      %p440 = scmp.lt.s32.totalorder %s437, 63
      %s441 = scalar_select %p440, %s437, 63
      %s442 = smul.addr %s441, 8
      %s443 = smul.addr %s439, 512
      %s444 = sadd.s32 %s442, %s443
      %s445 = smul.addr %s444, 4
      %s446 = scalar_lea.vmem %s2, %s445
      %s447 = smul.u32 16, %s26
      %s448 = smul.u32 2, %s26
      %p449 = scmp.lt.s32.totalorder %s25, 1
      %s450 = scalar_select %p449, %s25, 1
      %p451 = scmp.lt.s32.totalorder %s448, 7
      %s452 = scalar_select %p451, %s448, 7
      %s453 = smul.addr %s450, 8
      %s454 = sadd.s32 %s452, %s453
      %s455 = smul.addr %s454, 8
      %s456 = scalar_lea.vmem %s10, %s455
      %s457 = smul.u32 2, %s26
      %v459 = vld [vmem:[%s9] sm:$0xff]
      %v460 = vld [vmem:[%s430] sm:$0xff]
      %v461 = vld [vmem:[%s430 + $0x8] sm:$0xff]
      %v462 = vpack.c.bf16 %v461, %v460
      %v463 = vld [vmem:[%s436] sm:$0xff]
      %v464 = vld [vmem:[%s436 + $0x8] sm:$0xff]
      %v465 = vld [vmem:[%s436 + $0x10] sm:$0xff]
      %v466 = vld [vmem:[%s436 + $0x18] sm:$0xff]
      %v467 = vld [vmem:[%s436 + $0x20] sm:$0xff]
      %v468 = vld [vmem:[%s436 + $0x28] sm:$0xff]
      %v469 = vld [vmem:[%s436 + $0x30] sm:$0xff]
      %v470 = vld [vmem:[%s436 + $0x38] sm:$0xff]
      %v471 = vpack.c.bf16 %v464, %v463
      %v472 = vpack.c.bf16 %v466, %v465
      %v473 = vpack.c.bf16 %v468, %v467
      %v474 = vpack.c.bf16 %v470, %v469
      %v475 = vld [vmem:[%s3] sm:$0xf]
      %v476 = vld [vmem:[%s3 + $0x4] sm:$0xf]
      %v477 = vld [vmem:[%s3 + $0x8] sm:$0xf]
      %v478 = vld [vmem:[%s3 + $0xc] sm:$0xf]
      %v479 = vlaneseq
      %v480 = vshrl.u32 %v479, 7
      %v481 = vsub.s32 0, %v480
      %v482 = vrot.slane %v459, %v481
      %v487 = vunpack.c.l.b16 %v475
      %v488 = vunpack.c.l.b16 %v476
      %v489 = vunpack.c.l.b16 %v477
      %v490 = vunpack.c.l.b16 %v478
      %v491 = vpack.c.b16 %v488, %v487
      %v492 = vpack.c.b16 %v490, %v489
      %vm495 = vcmask 261120
      %v497 = vsel %vm495, %v462, 0
      %499 = vmatprep.subr.bf16.mxu0 0
      %500 = vmatpush1.bf16.msra.mxu0 0
      %501 = vmatprep.subr.bf16.mxu0 0
      %502 = vmatpush1.bf16.msra.mxu0 0
      %503 = vmatprep.subr.bf16.mxu0 0
      %504 = vmatpush1.bf16.msra.mxu0 0
      %505 = vmatprep.subr.bf16.mxu0 0
      %506 = vmatpush1.bf16.msra.mxu0 0
      %507 = vmatprep.subr.bf16.mxu0 0
      %508 = vmatpush1.bf16.msra.mxu0 0
      %509 = vmatprep.subr.bf16.mxu0 0
      %510 = vmatpush1.bf16.msra.mxu0 0
      %511 = vmatprep.subr.bf16.mxu0 0
      %512 = vmatpush1.bf16.msra.mxu0 %v492
      %513 = vmatprep.subr.bf16.mxu0 0
      %514 = vmatpush1.bf16.msra.mxu0 %v491
      %515 = vmatprep.subr.bf16.mxu0 0
      %516 = vmatpush2.bf16.msra.mxu0 0
      %517 = vmatprep.subr.bf16.mxu0 0
      %518 = vmatpush2.bf16.msra.mxu0 0
      %519 = vmatprep.subr.bf16.mxu0 0
      %520 = vmatpush2.bf16.msra.mxu0 0
      %521 = vmatprep.subr.bf16.mxu0 0
      %522 = vmatpush2.bf16.msra.mxu0 0
      %523 = vmatprep.subr.bf16.mxu0 0
      %524 = vmatpush2.bf16.msra.mxu0 0
      %525 = vmatprep.subr.bf16.mxu0 0
      %526 = vmatpush2.bf16.msra.mxu0 0
      %527 = vmatprep.subr.bf16.mxu0 0
      %528 = vmatpush2.bf16.msra.mxu0 0
      %529 = vmatprep.subr.bf16.mxu0 0
      %530 = vmatpush2.bf16.msra.mxu0 0
      %531 = vmatprep.mubr.bf16.mxu0 0
      %532 = vmatmul.mubr.bf16.gmra.mxu0 %v497
      %v533 = vpop.f32.mrf.mxu0
      %v534 = vadd.f32 %v482, %v533
      %v535 = vpop.f32.mrf.mxu0
      %v536 = vpop.f32.mrf.mxu0
      %v537 = vadd.f32 %v482, %v536
      %v538 = vpop.f32.mrf.mxu0
      %539 = vdwg.mxu0
      %v540 = vld [vmem:[%s4] sm:$0xff]
      %v541 = vld [vmem:[%s4 + $0x8] sm:$0xff]
      %v542 = vld [vmem:[%s4 + $0x10] sm:$0xff]
      %v543 = vld [vmem:[%s4 + $0x18] sm:$0xff]
      %v548 = vunpack.c.l.b16 %v540
      %v549 = vunpack.c.h.b16 %v540
      %v550 = vunpack.c.l.b16 %v541
      %v551 = vunpack.c.h.b16 %v541
      %v552 = vunpack.c.l.b16 %v542
      %v553 = vunpack.c.h.b16 %v542
      %v554 = vunpack.c.l.b16 %v543
      %v555 = vunpack.c.h.b16 %v543
      %v556 = vpack.c.b16 %v550, %v548
      %v557 = vpack.c.b16 %v551, %v549
      %v558 = vpack.c.b16 %v554, %v552
      %v559 = vpack.c.b16 %v555, %v553
      %v565 = vsel %vm495, %v471, 0
      %v568 = vsel %vm495, %v472, 0
      %v571 = vsel %vm495, %v473, 0
      %v574 = vsel %vm495, %v474, 0
      %576 = vmatprep.subr.bf16.mxu0 0
      %577 = vmatpush1.bf16.msra.mxu0 0
      %578 = vmatprep.subr.bf16.mxu0 0
      %579 = vmatpush1.bf16.msra.mxu0 0
      %580 = vmatprep.subr.bf16.mxu0 0
      %581 = vmatpush1.bf16.msra.mxu0 0
      %582 = vmatprep.subr.bf16.mxu0 0
      %583 = vmatpush1.bf16.msra.mxu0 0
      %584 = vmatprep.subr.bf16.mxu0 0
      %585 = vmatpush1.bf16.msra.mxu0 0
      %586 = vmatprep.subr.bf16.mxu0 0
      %587 = vmatpush1.bf16.msra.mxu0 0
      %588 = vmatprep.subr.bf16.mxu0 %v559
      %589 = vmatpush1.bf16.msra.mxu0 %v558
      %590 = vmatprep.subr.bf16.mxu0 %v557
      %591 = vmatpush1.bf16.msra.mxu0 %v556
      %592 = vmatprep.subr.bf16.mxu0 0
      %593 = vmatpush2.bf16.msra.mxu0 0
      %594 = vmatprep.subr.bf16.mxu0 0
      %595 = vmatpush2.bf16.msra.mxu0 0
      %596 = vmatprep.subr.bf16.mxu0 0
      %597 = vmatpush2.bf16.msra.mxu0 0
      %598 = vmatprep.subr.bf16.mxu0 0
      %599 = vmatpush2.bf16.msra.mxu0 0
      %600 = vmatprep.subr.bf16.mxu0 0
      %601 = vmatpush2.bf16.msra.mxu0 0
      %602 = vmatprep.subr.bf16.mxu0 0
      %603 = vmatpush2.bf16.msra.mxu0 0
      %604 = vmatprep.subr.bf16.mxu0 0
      %605 = vmatpush2.bf16.msra.mxu0 0
      %606 = vmatprep.subr.bf16.mxu0 0
      %607 = vmatpush2.bf16.msra.mxu0 0
      %608 = vmatprep.mubr.bf16.mxu0 0
      %609 = vmatmul.mubr.bf16.gmra.mxu0 %v565
      %v610 = vpop.f32.mrf.mxu0
      %v611 = vadd.f32 0.0, %v610
      %v612 = vpop.f32.mrf.mxu0
      %v613 = vadd.f32 0.0, %v612
      %v614 = vpop.f32.mrf.mxu0
      %v615 = vadd.f32 0.0, %v614
      %v616 = vpop.f32.mrf.mxu0
      %v617 = vadd.f32 0.0, %v616
      %618 = vmatprep.mubr.bf16.mxu0 0
      %619 = vmatmul.mubr.bf16.gmra.mxu0 %v568
      %v620 = vpop.f32.mrf.mxu0
      %v621 = vadd.f32 0.0, %v620
      %v622 = vpop.f32.mrf.mxu0
      %v623 = vadd.f32 0.0, %v622
      %v624 = vpop.f32.mrf.mxu0
      %v625 = vadd.f32 0.0, %v624
      %v626 = vpop.f32.mrf.mxu0
      %v627 = vadd.f32 0.0, %v626
      %628 = vmatprep.mubr.bf16.mxu0 0
      %629 = vmatmul.mubr.bf16.gmra.mxu0 %v571
      %v630 = vpop.f32.mrf.mxu0
      %v631 = vadd.f32 0.0, %v630
      %v632 = vpop.f32.mrf.mxu0
      %v633 = vadd.f32 0.0, %v632
      %v634 = vpop.f32.mrf.mxu0
      %v635 = vadd.f32 0.0, %v634
      %v636 = vpop.f32.mrf.mxu0
      %v637 = vadd.f32 0.0, %v636
      %638 = vmatprep.mubr.bf16.mxu0 0
      %639 = vmatmul.mubr.bf16.gmra.mxu0 %v574
      %v640 = vpop.f32.mrf.mxu0
      %v641 = vadd.f32 0.0, %v640
      %v642 = vpop.f32.mrf.mxu0
      %v643 = vadd.f32 0.0, %v642
      %v644 = vpop.f32.mrf.mxu0
      %v645 = vadd.f32 0.0, %v644
      %v646 = vpop.f32.mrf.mxu0
      %v647 = vadd.f32 0.0, %v646
      %648 = vdwg.mxu0
      %v649 = vlaneseq
      %v650 = vshrl.u32 %v649, 7
      %v651 = vsub.s32 1, %v650
      %v652 = vrot.slane %v459, %v651
      %v653 = vadd.f32 %v611, %v652
      %v654 = vadd.f32 %v615, %v652
      %v655 = vadd.f32 %v621, %v652
      %v656 = vadd.f32 %v625, %v652
      %v657 = vadd.f32 %v631, %v652
      %v658 = vadd.f32 %v635, %v652
      %v659 = vadd.f32 %v641, %v652
      %v660 = vadd.f32 %v645, %v652
      %v661 = vlaneseq
      %v662 = vshrl.u32 %v661, 7
      %v663 = vsub.s32 2, %v662
      %v664 = vrot.slane %v459, %v663
      %v665 = vadd.f32 %v613, %v664
      %v666 = vadd.f32 %v617, %v664
      %v667 = vadd.f32 %v623, %v664
      %v668 = vadd.f32 %v627, %v664
      %v669 = vadd.f32 %v633, %v664
      %v670 = vadd.f32 %v637, %v664
      %v671 = vadd.f32 %v643, %v664
      %v672 = vadd.f32 %v647, %v664
      %v673 = vld [vmem:[%s446] sm:$0xf]
      %v674 = vld [vmem:[%s446 + $0x4] sm:$0xf]
      %v675 = vld [vmem:[%s446 + $0x8] sm:$0xf]
      %v676 = vld [vmem:[%s446 + $0xc] sm:$0xf]
      %v677 = vld [vmem:[%s446 + $0x10] sm:$0xf]
      %v678 = vld [vmem:[%s446 + $0x14] sm:$0xf]
      %v679 = vld [vmem:[%s446 + $0x18] sm:$0xf]
      %v680 = vld [vmem:[%s446 + $0x1c] sm:$0xf]
      %v681 = vld [vmem:[%s446 + $0x20] sm:$0xf]
      %v682 = vld [vmem:[%s446 + $0x24] sm:$0xf]
      %v683 = vld [vmem:[%s446 + $0x28] sm:$0xf]
      %v684 = vld [vmem:[%s446 + $0x2c] sm:$0xf]
      %v685 = vld [vmem:[%s446 + $0x30] sm:$0xf]
      %v686 = vld [vmem:[%s446 + $0x34] sm:$0xf]
      %v687 = vld [vmem:[%s446 + $0x38] sm:$0xf]
      %v688 = vld [vmem:[%s446 + $0x3c] sm:$0xf]
      %v689 = vld [vmem:[%s446 + $0x40] sm:$0xf]
      %v690 = vld [vmem:[%s446 + $0x44] sm:$0xf]
      %v691 = vld [vmem:[%s446 + $0x48] sm:$0xf]
      %v692 = vld [vmem:[%s446 + $0x4c] sm:$0xf]
      %v693 = vld [vmem:[%s446 + $0x50] sm:$0xf]
      %v694 = vld [vmem:[%s446 + $0x54] sm:$0xf]
      %v695 = vld [vmem:[%s446 + $0x58] sm:$0xf]
      %v696 = vld [vmem:[%s446 + $0x5c] sm:$0xf]
      %v697 = vld [vmem:[%s446 + $0x60] sm:$0xf]
      %v698 = vld [vmem:[%s446 + $0x64] sm:$0xf]
      %v699 = vld [vmem:[%s446 + $0x68] sm:$0xf]
      %v700 = vld [vmem:[%s446 + $0x6c] sm:$0xf]
      %v701 = vld [vmem:[%s446 + $0x70] sm:$0xf]
      %v702 = vld [vmem:[%s446 + $0x74] sm:$0xf]
      %v703 = vld [vmem:[%s446 + $0x78] sm:$0xf]
      %v704 = vld [vmem:[%s446 + $0x7c] sm:$0xf]
      %v705 = vld [vmem:[%s446 + $0x80] sm:$0xf]
      %v706 = vld [vmem:[%s446 + $0x84] sm:$0xf]
      %v707 = vld [vmem:[%s446 + $0x88] sm:$0xf]
      %v708 = vld [vmem:[%s446 + $0x8c] sm:$0xf]
      %v709 = vld [vmem:[%s446 + $0x90] sm:$0xf]
      %v710 = vld [vmem:[%s446 + $0x94] sm:$0xf]
      %v711 = vld [vmem:[%s446 + $0x98] sm:$0xf]
      %v712 = vld [vmem:[%s446 + $0x9c] sm:$0xf]
      %v713 = vld [vmem:[%s446 + $0xa0] sm:$0xf]
      %v714 = vld [vmem:[%s446 + $0xa4] sm:$0xf]
      %v715 = vld [vmem:[%s446 + $0xa8] sm:$0xf]
      %v716 = vld [vmem:[%s446 + $0xac] sm:$0xf]
      %v717 = vld [vmem:[%s446 + $0xb0] sm:$0xf]
      %v718 = vld [vmem:[%s446 + $0xb4] sm:$0xf]
      %v719 = vld [vmem:[%s446 + $0xb8] sm:$0xf]
      %v720 = vld [vmem:[%s446 + $0xbc] sm:$0xf]
      %v721 = vld [vmem:[%s446 + $0xc0] sm:$0xf]
      %v722 = vld [vmem:[%s446 + $0xc4] sm:$0xf]
      %v723 = vld [vmem:[%s446 + $0xc8] sm:$0xf]
      %v724 = vld [vmem:[%s446 + $0xcc] sm:$0xf]
      %v725 = vld [vmem:[%s446 + $0xd0] sm:$0xf]
      %v726 = vld [vmem:[%s446 + $0xd4] sm:$0xf]
      %v727 = vld [vmem:[%s446 + $0xd8] sm:$0xf]
      %v728 = vld [vmem:[%s446 + $0xdc] sm:$0xf]
      %v729 = vld [vmem:[%s446 + $0xe0] sm:$0xf]
      %v730 = vld [vmem:[%s446 + $0xe4] sm:$0xf]
      %v731 = vld [vmem:[%s446 + $0xe8] sm:$0xf]
      %v732 = vld [vmem:[%s446 + $0xec] sm:$0xf]
      %v733 = vld [vmem:[%s446 + $0xf0] sm:$0xf]
      %v734 = vld [vmem:[%s446 + $0xf4] sm:$0xf]
      %v735 = vld [vmem:[%s446 + $0xf8] sm:$0xf]
      %v736 = vld [vmem:[%s446 + $0xfc] sm:$0xf]
      %v737 = vld [vmem:[%s446 + $0x100] sm:$0xf]
      %v738 = vld [vmem:[%s446 + $0x104] sm:$0xf]
      %v739 = vld [vmem:[%s446 + $0x108] sm:$0xf]
      %v740 = vld [vmem:[%s446 + $0x10c] sm:$0xf]
      %v741 = vld [vmem:[%s446 + $0x110] sm:$0xf]
      %v742 = vld [vmem:[%s446 + $0x114] sm:$0xf]
      %v743 = vld [vmem:[%s446 + $0x118] sm:$0xf]
      %v744 = vld [vmem:[%s446 + $0x11c] sm:$0xf]
      %v745 = vld [vmem:[%s446 + $0x120] sm:$0xf]
      %v746 = vld [vmem:[%s446 + $0x124] sm:$0xf]
      %v747 = vld [vmem:[%s446 + $0x128] sm:$0xf]
      %v748 = vld [vmem:[%s446 + $0x12c] sm:$0xf]
      %v749 = vld [vmem:[%s446 + $0x130] sm:$0xf]
      %v750 = vld [vmem:[%s446 + $0x134] sm:$0xf]
      %v751 = vld [vmem:[%s446 + $0x138] sm:$0xf]
      %v752 = vld [vmem:[%s446 + $0x13c] sm:$0xf]
      %v753 = vld [vmem:[%s446 + $0x140] sm:$0xf]
      %v754 = vld [vmem:[%s446 + $0x144] sm:$0xf]
      %v755 = vld [vmem:[%s446 + $0x148] sm:$0xf]
      %v756 = vld [vmem:[%s446 + $0x14c] sm:$0xf]
      %v757 = vld [vmem:[%s446 + $0x150] sm:$0xf]
      %v758 = vld [vmem:[%s446 + $0x154] sm:$0xf]
      %v759 = vld [vmem:[%s446 + $0x158] sm:$0xf]
      %v760 = vld [vmem:[%s446 + $0x15c] sm:$0xf]
      %v761 = vld [vmem:[%s446 + $0x160] sm:$0xf]
      %v762 = vld [vmem:[%s446 + $0x164] sm:$0xf]
      %v763 = vld [vmem:[%s446 + $0x168] sm:$0xf]
      %v764 = vld [vmem:[%s446 + $0x16c] sm:$0xf]
      %v765 = vld [vmem:[%s446 + $0x170] sm:$0xf]
      %v766 = vld [vmem:[%s446 + $0x174] sm:$0xf]
      %v767 = vld [vmem:[%s446 + $0x178] sm:$0xf]
      %v768 = vld [vmem:[%s446 + $0x17c] sm:$0xf]
      %v769 = vld [vmem:[%s446 + $0x180] sm:$0xf]
      %v770 = vld [vmem:[%s446 + $0x184] sm:$0xf]
      %v771 = vld [vmem:[%s446 + $0x188] sm:$0xf]
      %v772 = vld [vmem:[%s446 + $0x18c] sm:$0xf]
      %v773 = vld [vmem:[%s446 + $0x190] sm:$0xf]
      %v774 = vld [vmem:[%s446 + $0x194] sm:$0xf]
      %v775 = vld [vmem:[%s446 + $0x198] sm:$0xf]
      %v776 = vld [vmem:[%s446 + $0x19c] sm:$0xf]
      %v777 = vld [vmem:[%s446 + $0x1a0] sm:$0xf]
      %v778 = vld [vmem:[%s446 + $0x1a4] sm:$0xf]
      %v779 = vld [vmem:[%s446 + $0x1a8] sm:$0xf]
      %v780 = vld [vmem:[%s446 + $0x1ac] sm:$0xf]
      %v781 = vld [vmem:[%s446 + $0x1b0] sm:$0xf]
      %v782 = vld [vmem:[%s446 + $0x1b4] sm:$0xf]
      %v783 = vld [vmem:[%s446 + $0x1b8] sm:$0xf]
      %v784 = vld [vmem:[%s446 + $0x1bc] sm:$0xf]
      %v785 = vld [vmem:[%s446 + $0x1c0] sm:$0xf]
      %v786 = vld [vmem:[%s446 + $0x1c4] sm:$0xf]
      %v787 = vld [vmem:[%s446 + $0x1c8] sm:$0xf]
      %v788 = vld [vmem:[%s446 + $0x1cc] sm:$0xf]
      %v789 = vld [vmem:[%s446 + $0x1d0] sm:$0xf]
      %v790 = vld [vmem:[%s446 + $0x1d4] sm:$0xf]
      %v791 = vld [vmem:[%s446 + $0x1d8] sm:$0xf]
      %v792 = vld [vmem:[%s446 + $0x1dc] sm:$0xf]
      %v793 = vld [vmem:[%s446 + $0x1e0] sm:$0xf]
      %v794 = vld [vmem:[%s446 + $0x1e4] sm:$0xf]
      %v795 = vld [vmem:[%s446 + $0x1e8] sm:$0xf]
      %v796 = vld [vmem:[%s446 + $0x1ec] sm:$0xf]
      %v797 = vld [vmem:[%s446 + $0x1f0] sm:$0xf]
      %v798 = vld [vmem:[%s446 + $0x1f4] sm:$0xf]
      %v799 = vld [vmem:[%s446 + $0x1f8] sm:$0xf]
      %v800 = vld [vmem:[%s446 + $0x1fc] sm:$0xf]
      %v801 = vld [vmem:[%s5] sm:$0xff]
      %v802 = vld [vmem:[%s5 + $0x8] sm:$0xff]
      %v931 = vunpack.c.l.b16 %v673
      %v932 = vunpack.c.l.b16 %v674
      %v933 = vunpack.c.l.b16 %v675
      %v934 = vunpack.c.l.b16 %v676
      %v935 = vunpack.c.l.b16 %v677
      %v936 = vunpack.c.l.b16 %v678
      %v937 = vunpack.c.l.b16 %v679
      %v938 = vunpack.c.l.b16 %v680
      %v939 = vunpack.c.l.b16 %v681
      %v940 = vunpack.c.l.b16 %v682
      %v941 = vunpack.c.l.b16 %v683
      %v942 = vunpack.c.l.b16 %v684
      %v943 = vunpack.c.l.b16 %v685
      %v944 = vunpack.c.l.b16 %v686
      %v945 = vunpack.c.l.b16 %v687
      %v946 = vunpack.c.l.b16 %v688
      %v947 = vunpack.c.l.b16 %v689
      %v948 = vunpack.c.l.b16 %v690
      %v949 = vunpack.c.l.b16 %v691
      %v950 = vunpack.c.l.b16 %v692
      %v951 = vunpack.c.l.b16 %v693
      %v952 = vunpack.c.l.b16 %v694
      %v953 = vunpack.c.l.b16 %v695
      %v954 = vunpack.c.l.b16 %v696
      %v955 = vunpack.c.l.b16 %v697
      %v956 = vunpack.c.l.b16 %v698
      %v957 = vunpack.c.l.b16 %v699
      %v958 = vunpack.c.l.b16 %v700
      %v959 = vunpack.c.l.b16 %v701
      %v960 = vunpack.c.l.b16 %v702
      %v961 = vunpack.c.l.b16 %v703
      %v962 = vunpack.c.l.b16 %v704
      %v963 = vunpack.c.l.b16 %v705
      %v964 = vunpack.c.l.b16 %v706
      %v965 = vunpack.c.l.b16 %v707
      %v966 = vunpack.c.l.b16 %v708
      %v967 = vunpack.c.l.b16 %v709
      %v968 = vunpack.c.l.b16 %v710
      %v969 = vunpack.c.l.b16 %v711
      %v970 = vunpack.c.l.b16 %v712
      %v971 = vunpack.c.l.b16 %v713
      %v972 = vunpack.c.l.b16 %v714
      %v973 = vunpack.c.l.b16 %v715
      %v974 = vunpack.c.l.b16 %v716
      %v975 = vunpack.c.l.b16 %v717
      %v976 = vunpack.c.l.b16 %v718
      %v977 = vunpack.c.l.b16 %v719
      %v978 = vunpack.c.l.b16 %v720
      %v979 = vunpack.c.l.b16 %v721
      %v980 = vunpack.c.l.b16 %v722
      %v981 = vunpack.c.l.b16 %v723
      %v982 = vunpack.c.l.b16 %v724
      %v983 = vunpack.c.l.b16 %v725
      %v984 = vunpack.c.l.b16 %v726
      %v985 = vunpack.c.l.b16 %v727
      %v986 = vunpack.c.l.b16 %v728
      %v987 = vunpack.c.l.b16 %v729
      %v988 = vunpack.c.l.b16 %v730
      %v989 = vunpack.c.l.b16 %v731
      %v990 = vunpack.c.l.b16 %v732
      %v991 = vunpack.c.l.b16 %v733
      %v992 = vunpack.c.l.b16 %v734
      %v993 = vunpack.c.l.b16 %v735
      %v994 = vunpack.c.l.b16 %v736
      %v995 = vunpack.c.l.b16 %v737
      %v996 = vunpack.c.l.b16 %v738
      %v997 = vunpack.c.l.b16 %v739
      %v998 = vunpack.c.l.b16 %v740
      %v999 = vunpack.c.l.b16 %v741
      %v1000 = vunpack.c.l.b16 %v742
      %v1001 = vunpack.c.l.b16 %v743
      %v1002 = vunpack.c.l.b16 %v744
      %v1003 = vunpack.c.l.b16 %v745
      %v1004 = vunpack.c.l.b16 %v746
      %v1005 = vunpack.c.l.b16 %v747
      %v1006 = vunpack.c.l.b16 %v748
      %v1007 = vunpack.c.l.b16 %v749
      %v1008 = vunpack.c.l.b16 %v750
      %v1009 = vunpack.c.l.b16 %v751
      %v1010 = vunpack.c.l.b16 %v752
      %v1011 = vunpack.c.l.b16 %v753
      %v1012 = vunpack.c.l.b16 %v754
      %v1013 = vunpack.c.l.b16 %v755
      %v1014 = vunpack.c.l.b16 %v756
      %v1015 = vunpack.c.l.b16 %v757
      %v1016 = vunpack.c.l.b16 %v758
      %v1017 = vunpack.c.l.b16 %v759
      %v1018 = vunpack.c.l.b16 %v760
      %v1019 = vunpack.c.l.b16 %v761
      %v1020 = vunpack.c.l.b16 %v762
      %v1021 = vunpack.c.l.b16 %v763
      %v1022 = vunpack.c.l.b16 %v764
      %v1023 = vunpack.c.l.b16 %v765
      %v1024 = vunpack.c.l.b16 %v766
      %v1025 = vunpack.c.l.b16 %v767
      %v1026 = vunpack.c.l.b16 %v768
      %v1027 = vunpack.c.l.b16 %v769
      %v1028 = vunpack.c.l.b16 %v770
      %v1029 = vunpack.c.l.b16 %v771
      %v1030 = vunpack.c.l.b16 %v772
      %v1031 = vunpack.c.l.b16 %v773
      %v1032 = vunpack.c.l.b16 %v774
      %v1033 = vunpack.c.l.b16 %v775
      %v1034 = vunpack.c.l.b16 %v776
      %v1035 = vunpack.c.l.b16 %v777
      %v1036 = vunpack.c.l.b16 %v778
      %v1037 = vunpack.c.l.b16 %v779
      %v1038 = vunpack.c.l.b16 %v780
      %v1039 = vunpack.c.l.b16 %v781
      %v1040 = vunpack.c.l.b16 %v782
      %v1041 = vunpack.c.l.b16 %v783
      %v1042 = vunpack.c.l.b16 %v784
      %v1043 = vunpack.c.l.b16 %v785
      %v1044 = vunpack.c.l.b16 %v786
      %v1045 = vunpack.c.l.b16 %v787
      %v1046 = vunpack.c.l.b16 %v788
      %v1047 = vunpack.c.l.b16 %v789
      %v1048 = vunpack.c.l.b16 %v790
      %v1049 = vunpack.c.l.b16 %v791
      %v1050 = vunpack.c.l.b16 %v792
      %v1051 = vunpack.c.l.b16 %v793
      %v1052 = vunpack.c.l.b16 %v794
      %v1053 = vunpack.c.l.b16 %v795
      %v1054 = vunpack.c.l.b16 %v796
      %v1055 = vunpack.c.l.b16 %v797
      %v1056 = vunpack.c.l.b16 %v798
      %v1057 = vunpack.c.l.b16 %v799
      %v1058 = vunpack.c.l.b16 %v800
      %v1059 = vpack.c.b16 %v932, %v931
      %v1060 = vpack.c.b16 %v934, %v933
      %v1061 = vpack.c.b16 %v936, %v935
      %v1062 = vpack.c.b16 %v938, %v937
      %v1063 = vpack.c.b16 %v940, %v939
      %v1064 = vpack.c.b16 %v942, %v941
      %v1065 = vpack.c.b16 %v944, %v943
      %v1066 = vpack.c.b16 %v946, %v945
      %v1067 = vpack.c.b16 %v948, %v947
      %v1068 = vpack.c.b16 %v950, %v949
      %v1069 = vpack.c.b16 %v952, %v951
      %v1070 = vpack.c.b16 %v954, %v953
      %v1071 = vpack.c.b16 %v956, %v955
      %v1072 = vpack.c.b16 %v958, %v957
      %v1073 = vpack.c.b16 %v960, %v959
      %v1074 = vpack.c.b16 %v962, %v961
      %v1075 = vpack.c.b16 %v964, %v963
      %v1076 = vpack.c.b16 %v966, %v965
      %v1077 = vpack.c.b16 %v968, %v967
      %v1078 = vpack.c.b16 %v970, %v969
      %v1079 = vpack.c.b16 %v972, %v971
      %v1080 = vpack.c.b16 %v974, %v973
      %v1081 = vpack.c.b16 %v976, %v975
      %v1082 = vpack.c.b16 %v978, %v977
      %v1083 = vpack.c.b16 %v980, %v979
      %v1084 = vpack.c.b16 %v982, %v981
      %v1085 = vpack.c.b16 %v984, %v983
      %v1086 = vpack.c.b16 %v986, %v985
      %v1087 = vpack.c.b16 %v988, %v987
      %v1088 = vpack.c.b16 %v990, %v989
      %v1089 = vpack.c.b16 %v992, %v991
      %v1090 = vpack.c.b16 %v994, %v993
      %v1091 = vpack.c.b16 %v996, %v995
      %v1092 = vpack.c.b16 %v998, %v997
      %v1093 = vpack.c.b16 %v1000, %v999
      %v1094 = vpack.c.b16 %v1002, %v1001
      %v1095 = vpack.c.b16 %v1004, %v1003
      %v1096 = vpack.c.b16 %v1006, %v1005
      %v1097 = vpack.c.b16 %v1008, %v1007
      %v1098 = vpack.c.b16 %v1010, %v1009
      %v1099 = vpack.c.b16 %v1012, %v1011
      %v1100 = vpack.c.b16 %v1014, %v1013
      %v1101 = vpack.c.b16 %v1016, %v1015
      %v1102 = vpack.c.b16 %v1018, %v1017
      %v1103 = vpack.c.b16 %v1020, %v1019
      %v1104 = vpack.c.b16 %v1022, %v1021
      %v1105 = vpack.c.b16 %v1024, %v1023
      %v1106 = vpack.c.b16 %v1026, %v1025
      %v1107 = vpack.c.b16 %v1028, %v1027
      %v1108 = vpack.c.b16 %v1030, %v1029
      %v1109 = vpack.c.b16 %v1032, %v1031
      %v1110 = vpack.c.b16 %v1034, %v1033
      %v1111 = vpack.c.b16 %v1036, %v1035
      %v1112 = vpack.c.b16 %v1038, %v1037
      %v1113 = vpack.c.b16 %v1040, %v1039
      %v1114 = vpack.c.b16 %v1042, %v1041
      %v1115 = vpack.c.b16 %v1044, %v1043
      %v1116 = vpack.c.b16 %v1046, %v1045
      %v1117 = vpack.c.b16 %v1048, %v1047
      %v1118 = vpack.c.b16 %v1050, %v1049
      %v1119 = vpack.c.b16 %v1052, %v1051
      %v1120 = vpack.c.b16 %v1054, %v1053
      %v1121 = vpack.c.b16 %v1056, %v1055
      %v1122 = vpack.c.b16 %v1058, %v1057
      %v1125 = vunpack.c.l.b16 %v801
      %v1126 = vunpack.c.h.b16 %v801
      %v1127 = vunpack.c.l.b16 %v802
      %v1128 = vunpack.c.h.b16 %v802
      %v1129 = vpack.c.b16 %v1127, %v1125
      %v1130 = vpack.c.b16 %v1128, %v1126
      %vm1133 = vcmask 130048
      %v1135 = vsel %vm1133, %v1059, 0
      %v1138 = vsel %vm1133, %v1060, 0
      %v1141 = vsel %vm1133, %v1061, 0
      %v1144 = vsel %vm1133, %v1062, 0
      %v1147 = vsel %vm1133, %v1063, 0
      %v1150 = vsel %vm1133, %v1064, 0
      %v1153 = vsel %vm1133, %v1065, 0
      %v1156 = vsel %vm1133, %v1066, 0
      %v1159 = vsel %vm1133, %v1067, 0
      %v1162 = vsel %vm1133, %v1068, 0
      %v1165 = vsel %vm1133, %v1069, 0
      %v1168 = vsel %vm1133, %v1070, 0
      %v1171 = vsel %vm1133, %v1071, 0
      %v1174 = vsel %vm1133, %v1072, 0
      %v1177 = vsel %vm1133, %v1073, 0
      %v1180 = vsel %vm1133, %v1074, 0
      %v1183 = vsel %vm1133, %v1075, 0
      %v1186 = vsel %vm1133, %v1076, 0
      %v1189 = vsel %vm1133, %v1077, 0
      %v1192 = vsel %vm1133, %v1078, 0
      %v1195 = vsel %vm1133, %v1079, 0
      %v1198 = vsel %vm1133, %v1080, 0
      %v1201 = vsel %vm1133, %v1081, 0
      %v1204 = vsel %vm1133, %v1082, 0
      %v1207 = vsel %vm1133, %v1083, 0
      %v1210 = vsel %vm1133, %v1084, 0
      %v1213 = vsel %vm1133, %v1085, 0
      %v1216 = vsel %vm1133, %v1086, 0
      %v1219 = vsel %vm1133, %v1087, 0
      %v1222 = vsel %vm1133, %v1088, 0
      %v1225 = vsel %vm1133, %v1089, 0
      %v1228 = vsel %vm1133, %v1090, 0
      %v1231 = vsel %vm1133, %v1091, 0
      %v1234 = vsel %vm1133, %v1092, 0
      %v1237 = vsel %vm1133, %v1093, 0
      %v1240 = vsel %vm1133, %v1094, 0
      %v1243 = vsel %vm1133, %v1095, 0
      %v1246 = vsel %vm1133, %v1096, 0
      %v1249 = vsel %vm1133, %v1097, 0
      %v1252 = vsel %vm1133, %v1098, 0
      %v1255 = vsel %vm1133, %v1099, 0
      %v1258 = vsel %vm1133, %v1100, 0
      %v1261 = vsel %vm1133, %v1101, 0
      %v1264 = vsel %vm1133, %v1102, 0
      %v1267 = vsel %vm1133, %v1103, 0
      %v1270 = vsel %vm1133, %v1104, 0
      %v1273 = vsel %vm1133, %v1105, 0
      %v1276 = vsel %vm1133, %v1106, 0
      %v1279 = vsel %vm1133, %v1107, 0
      %v1282 = vsel %vm1133, %v1108, 0
      %v1285 = vsel %vm1133, %v1109, 0
      %v1288 = vsel %vm1133, %v1110, 0
      %v1291 = vsel %vm1133, %v1111, 0
      %v1294 = vsel %vm1133, %v1112, 0
      %v1297 = vsel %vm1133, %v1113, 0
      %v1300 = vsel %vm1133, %v1114, 0
      %v1303 = vsel %vm1133, %v1115, 0
      %v1306 = vsel %vm1133, %v1116, 0
      %v1309 = vsel %vm1133, %v1117, 0
      %v1312 = vsel %vm1133, %v1118, 0
      %v1315 = vsel %vm1133, %v1119, 0
      %v1318 = vsel %vm1133, %v1120, 0
      %v1321 = vsel %vm1133, %v1121, 0
      %v1324 = vsel %vm1133, %v1122, 0
      %1326 = vmatprep.subr.bf16.mxu0 0
      %1327 = vmatpush1.bf16.msra.mxu0 0
      %1328 = vmatprep.subr.bf16.mxu0 0
      %1329 = vmatpush1.bf16.msra.mxu0 0
      %1330 = vmatprep.subr.bf16.mxu0 0
      %1331 = vmatpush1.bf16.msra.mxu0 0
      %1332 = vmatprep.subr.bf16.mxu0 0
      %1333 = vmatpush1.bf16.msra.mxu0 0
      %1334 = vmatprep.subr.bf16.mxu0 0
      %1335 = vmatpush1.bf16.msra.mxu0 0
      %1336 = vmatprep.subr.bf16.mxu0 0
      %1337 = vmatpush1.bf16.msra.mxu0 0
      %1338 = vmatprep.subr.bf16.mxu0 0
      %1339 = vmatpush1.bf16.msra.mxu0 0
      %1340 = vmatprep.subr.bf16.mxu0 %v1130
      %1341 = vmatpush1.bf16.msra.mxu0 %v1129
      %1342 = vmatprep.subr.bf16.mxu0 0
      %1343 = vmatpush2.bf16.msra.mxu0 0
      %1344 = vmatprep.subr.bf16.mxu0 0
      %1345 = vmatpush2.bf16.msra.mxu0 0
      %1346 = vmatprep.subr.bf16.mxu0 0
      %1347 = vmatpush2.bf16.msra.mxu0 0
      %1348 = vmatprep.subr.bf16.mxu0 0
      %1349 = vmatpush2.bf16.msra.mxu0 0
      %1350 = vmatprep.subr.bf16.mxu0 0
      %1351 = vmatpush2.bf16.msra.mxu0 0
      %1352 = vmatprep.subr.bf16.mxu0 0
      %1353 = vmatpush2.bf16.msra.mxu0 0
      %1354 = vmatprep.subr.bf16.mxu0 0
      %1355 = vmatpush2.bf16.msra.mxu0 0
      %1356 = vmatprep.subr.bf16.mxu0 0
      %1357 = vmatpush2.bf16.msra.mxu0 0
      %1358 = vmatprep.mubr.bf16.mxu0 0
      %1359 = vmatmul.mubr.bf16.gmra.mxu0 %v1135
      %v1360 = vpop.f32.mrf.mxu0
      %v1361 = vadd.f32 0.0, %v1360
      %v1362 = vpop.f32.mrf.mxu0
      %v1363 = vadd.f32 0.0, %v1362
      %v1364 = vpop.f32.mrf.mxu0
      %v1365 = vadd.f32 0.0, %v1364
      %v1366 = vpop.f32.mrf.mxu0
      %v1367 = vadd.f32 0.0, %v1366
      %1368 = vmatprep.mubr.bf16.mxu0 0
      %1369 = vmatmul.mubr.bf16.gmra.mxu0 %v1138
      %v1370 = vpop.f32.mrf.mxu0
      %v1371 = vadd.f32 0.0, %v1370
      %v1372 = vpop.f32.mrf.mxu0
      %v1373 = vadd.f32 0.0, %v1372
      %v1374 = vpop.f32.mrf.mxu0
      %v1375 = vadd.f32 0.0, %v1374
      %v1376 = vpop.f32.mrf.mxu0
      %v1377 = vadd.f32 0.0, %v1376
      %1378 = vmatprep.mubr.bf16.mxu0 0
      %1379 = vmatmul.mubr.bf16.gmra.mxu0 %v1141
      %v1380 = vpop.f32.mrf.mxu0
      %v1381 = vadd.f32 0.0, %v1380
      %v1382 = vpop.f32.mrf.mxu0
      %v1383 = vadd.f32 0.0, %v1382
      %v1384 = vpop.f32.mrf.mxu0
      %v1385 = vadd.f32 0.0, %v1384
      %v1386 = vpop.f32.mrf.mxu0
      %v1387 = vadd.f32 0.0, %v1386
      %1388 = vmatprep.mubr.bf16.mxu0 0
      %1389 = vmatmul.mubr.bf16.gmra.mxu0 %v1144
      %v1390 = vpop.f32.mrf.mxu0
      %v1391 = vadd.f32 0.0, %v1390
      %v1392 = vpop.f32.mrf.mxu0
      %v1393 = vadd.f32 0.0, %v1392
      %v1394 = vpop.f32.mrf.mxu0
      %v1395 = vadd.f32 0.0, %v1394
      %v1396 = vpop.f32.mrf.mxu0
      %v1397 = vadd.f32 0.0, %v1396
      %1398 = vmatprep.mubr.bf16.mxu0 0
      %1399 = vmatmul.mubr.bf16.gmra.mxu0 %v1147
      %v1400 = vpop.f32.mrf.mxu0
      %v1401 = vadd.f32 0.0, %v1400
      %v1402 = vpop.f32.mrf.mxu0
      %v1403 = vadd.f32 0.0, %v1402
      %v1404 = vpop.f32.mrf.mxu0
      %v1405 = vadd.f32 0.0, %v1404
      %v1406 = vpop.f32.mrf.mxu0
      %v1407 = vadd.f32 0.0, %v1406
      %1408 = vmatprep.mubr.bf16.mxu0 0
      %1409 = vmatmul.mubr.bf16.gmra.mxu0 %v1150
      %v1410 = vpop.f32.mrf.mxu0
      %v1411 = vadd.f32 0.0, %v1410
      %v1412 = vpop.f32.mrf.mxu0
      %v1413 = vadd.f32 0.0, %v1412
      %v1414 = vpop.f32.mrf.mxu0
      %v1415 = vadd.f32 0.0, %v1414
      %v1416 = vpop.f32.mrf.mxu0
      %v1417 = vadd.f32 0.0, %v1416
      %1418 = vmatprep.mubr.bf16.mxu0 0
      %1419 = vmatmul.mubr.bf16.gmra.mxu0 %v1153
      %v1420 = vpop.f32.mrf.mxu0
      %v1421 = vadd.f32 0.0, %v1420
      %v1422 = vpop.f32.mrf.mxu0
      %v1423 = vadd.f32 0.0, %v1422
      %v1424 = vpop.f32.mrf.mxu0
      %v1425 = vadd.f32 0.0, %v1424
      %v1426 = vpop.f32.mrf.mxu0
      %v1427 = vadd.f32 0.0, %v1426
      %1428 = vmatprep.mubr.bf16.mxu0 0
      %1429 = vmatmul.mubr.bf16.gmra.mxu0 %v1156
      %v1430 = vpop.f32.mrf.mxu0
      %v1431 = vadd.f32 0.0, %v1430
      %v1432 = vpop.f32.mrf.mxu0
      %v1433 = vadd.f32 0.0, %v1432
      %v1434 = vpop.f32.mrf.mxu0
      %v1435 = vadd.f32 0.0, %v1434
      %v1436 = vpop.f32.mrf.mxu0
      %v1437 = vadd.f32 0.0, %v1436
      %1438 = vmatprep.mubr.bf16.mxu0 0
      %1439 = vmatmul.mubr.bf16.gmra.mxu0 %v1159
      %v1440 = vpop.f32.mrf.mxu0
      %v1441 = vadd.f32 0.0, %v1440
      %v1442 = vpop.f32.mrf.mxu0
      %v1443 = vadd.f32 0.0, %v1442
      %v1444 = vpop.f32.mrf.mxu0
      %v1445 = vadd.f32 0.0, %v1444
      %v1446 = vpop.f32.mrf.mxu0
      %v1447 = vadd.f32 0.0, %v1446
      %1448 = vmatprep.mubr.bf16.mxu0 0
      %1449 = vmatmul.mubr.bf16.gmra.mxu0 %v1162
      %v1450 = vpop.f32.mrf.mxu0
      %v1451 = vadd.f32 0.0, %v1450
      %v1452 = vpop.f32.mrf.mxu0
      %v1453 = vadd.f32 0.0, %v1452
      %v1454 = vpop.f32.mrf.mxu0
      %v1455 = vadd.f32 0.0, %v1454
      %v1456 = vpop.f32.mrf.mxu0
      %v1457 = vadd.f32 0.0, %v1456
      %1458 = vmatprep.mubr.bf16.mxu0 0
      %1459 = vmatmul.mubr.bf16.gmra.mxu0 %v1165
      %v1460 = vpop.f32.mrf.mxu0
      %v1461 = vadd.f32 0.0, %v1460
      %v1462 = vpop.f32.mrf.mxu0
      %v1463 = vadd.f32 0.0, %v1462
      %v1464 = vpop.f32.mrf.mxu0
      %v1465 = vadd.f32 0.0, %v1464
      %v1466 = vpop.f32.mrf.mxu0
      %v1467 = vadd.f32 0.0, %v1466
      %1468 = vmatprep.mubr.bf16.mxu0 0
      %1469 = vmatmul.mubr.bf16.gmra.mxu0 %v1168
      %v1470 = vpop.f32.mrf.mxu0
      %v1471 = vadd.f32 0.0, %v1470
      %v1472 = vpop.f32.mrf.mxu0
      %v1473 = vadd.f32 0.0, %v1472
      %v1474 = vpop.f32.mrf.mxu0
      %v1475 = vadd.f32 0.0, %v1474
      %v1476 = vpop.f32.mrf.mxu0
      %v1477 = vadd.f32 0.0, %v1476
      %1478 = vmatprep.mubr.bf16.mxu0 0
      %1479 = vmatmul.mubr.bf16.gmra.mxu0 %v1171
      %v1480 = vpop.f32.mrf.mxu0
      %v1481 = vadd.f32 0.0, %v1480
      %v1482 = vpop.f32.mrf.mxu0
      %v1483 = vadd.f32 0.0, %v1482
      %v1484 = vpop.f32.mrf.mxu0
      %v1485 = vadd.f32 0.0, %v1484
      %v1486 = vpop.f32.mrf.mxu0
      %v1487 = vadd.f32 0.0, %v1486
      %1488 = vmatprep.mubr.bf16.mxu0 0
      %1489 = vmatmul.mubr.bf16.gmra.mxu0 %v1174
      %v1490 = vpop.f32.mrf.mxu0
      %v1491 = vadd.f32 0.0, %v1490
      %v1492 = vpop.f32.mrf.mxu0
      %v1493 = vadd.f32 0.0, %v1492
      %v1494 = vpop.f32.mrf.mxu0
      %v1495 = vadd.f32 0.0, %v1494
      %v1496 = vpop.f32.mrf.mxu0
      %v1497 = vadd.f32 0.0, %v1496
      %1498 = vmatprep.mubr.bf16.mxu0 0
      %1499 = vmatmul.mubr.bf16.gmra.mxu0 %v1177
      %v1500 = vpop.f32.mrf.mxu0
      %v1501 = vadd.f32 0.0, %v1500
      %v1502 = vpop.f32.mrf.mxu0
      %v1503 = vadd.f32 0.0, %v1502
      %v1504 = vpop.f32.mrf.mxu0
      %v1505 = vadd.f32 0.0, %v1504
      %v1506 = vpop.f32.mrf.mxu0
      %v1507 = vadd.f32 0.0, %v1506
      %1508 = vmatprep.mubr.bf16.mxu0 0
      %1509 = vmatmul.mubr.bf16.gmra.mxu0 %v1180
      %v1510 = vpop.f32.mrf.mxu0
      %v1511 = vadd.f32 0.0, %v1510
      %v1512 = vpop.f32.mrf.mxu0
      %v1513 = vadd.f32 0.0, %v1512
      %v1514 = vpop.f32.mrf.mxu0
      %v1515 = vadd.f32 0.0, %v1514
      %v1516 = vpop.f32.mrf.mxu0
      %v1517 = vadd.f32 0.0, %v1516
      %1518 = vmatprep.mubr.bf16.mxu0 0
      %1519 = vmatmul.mubr.bf16.gmra.mxu0 %v1183
      %v1520 = vpop.f32.mrf.mxu0
      %v1521 = vadd.f32 0.0, %v1520
      %v1522 = vpop.f32.mrf.mxu0
      %v1523 = vadd.f32 0.0, %v1522
      %v1524 = vpop.f32.mrf.mxu0
      %v1525 = vadd.f32 0.0, %v1524
      %v1526 = vpop.f32.mrf.mxu0
      %v1527 = vadd.f32 0.0, %v1526
      %1528 = vmatprep.mubr.bf16.mxu0 0
      %1529 = vmatmul.mubr.bf16.gmra.mxu0 %v1186
      %v1530 = vpop.f32.mrf.mxu0
      %v1531 = vadd.f32 0.0, %v1530
      %v1532 = vpop.f32.mrf.mxu0
      %v1533 = vadd.f32 0.0, %v1532
      %v1534 = vpop.f32.mrf.mxu0
      %v1535 = vadd.f32 0.0, %v1534
      %v1536 = vpop.f32.mrf.mxu0
      %v1537 = vadd.f32 0.0, %v1536
      %1538 = vmatprep.mubr.bf16.mxu0 0
      %1539 = vmatmul.mubr.bf16.gmra.mxu0 %v1189
      %v1540 = vpop.f32.mrf.mxu0
      %v1541 = vadd.f32 0.0, %v1540
      %v1542 = vpop.f32.mrf.mxu0
      %v1543 = vadd.f32 0.0, %v1542
      %v1544 = vpop.f32.mrf.mxu0
      %v1545 = vadd.f32 0.0, %v1544
      %v1546 = vpop.f32.mrf.mxu0
      %v1547 = vadd.f32 0.0, %v1546
      %1548 = vmatprep.mubr.bf16.mxu0 0
      %1549 = vmatmul.mubr.bf16.gmra.mxu0 %v1192
      %v1550 = vpop.f32.mrf.mxu0
      %v1551 = vadd.f32 0.0, %v1550
      %v1552 = vpop.f32.mrf.mxu0
      %v1553 = vadd.f32 0.0, %v1552
      %v1554 = vpop.f32.mrf.mxu0
      %v1555 = vadd.f32 0.0, %v1554
      %v1556 = vpop.f32.mrf.mxu0
      %v1557 = vadd.f32 0.0, %v1556
      %1558 = vmatprep.mubr.bf16.mxu0 0
      %1559 = vmatmul.mubr.bf16.gmra.mxu0 %v1195
      %v1560 = vpop.f32.mrf.mxu0
      %v1561 = vadd.f32 0.0, %v1560
      %v1562 = vpop.f32.mrf.mxu0
      %v1563 = vadd.f32 0.0, %v1562
      %v1564 = vpop.f32.mrf.mxu0
      %v1565 = vadd.f32 0.0, %v1564
      %v1566 = vpop.f32.mrf.mxu0
      %v1567 = vadd.f32 0.0, %v1566
      %1568 = vmatprep.mubr.bf16.mxu0 0
      %1569 = vmatmul.mubr.bf16.gmra.mxu0 %v1198
      %v1570 = vpop.f32.mrf.mxu0
      %v1571 = vadd.f32 0.0, %v1570
      %v1572 = vpop.f32.mrf.mxu0
      %v1573 = vadd.f32 0.0, %v1572
      %v1574 = vpop.f32.mrf.mxu0
      %v1575 = vadd.f32 0.0, %v1574
      %v1576 = vpop.f32.mrf.mxu0
      %v1577 = vadd.f32 0.0, %v1576
      %1578 = vmatprep.mubr.bf16.mxu0 0
      %1579 = vmatmul.mubr.bf16.gmra.mxu0 %v1201
      %v1580 = vpop.f32.mrf.mxu0
      %v1581 = vadd.f32 0.0, %v1580
      %v1582 = vpop.f32.mrf.mxu0
      %v1583 = vadd.f32 0.0, %v1582
      %v1584 = vpop.f32.mrf.mxu0
      %v1585 = vadd.f32 0.0, %v1584
      %v1586 = vpop.f32.mrf.mxu0
      %v1587 = vadd.f32 0.0, %v1586
      %1588 = vmatprep.mubr.bf16.mxu0 0
      %1589 = vmatmul.mubr.bf16.gmra.mxu0 %v1204
      %v1590 = vpop.f32.mrf.mxu0
      %v1591 = vadd.f32 0.0, %v1590
      %v1592 = vpop.f32.mrf.mxu0
      %v1593 = vadd.f32 0.0, %v1592
      %v1594 = vpop.f32.mrf.mxu0
      %v1595 = vadd.f32 0.0, %v1594
      %v1596 = vpop.f32.mrf.mxu0
      %v1597 = vadd.f32 0.0, %v1596
      %1598 = vmatprep.mubr.bf16.mxu0 0
      %1599 = vmatmul.mubr.bf16.gmra.mxu0 %v1207
      %v1600 = vpop.f32.mrf.mxu0
      %v1601 = vadd.f32 0.0, %v1600
      %v1602 = vpop.f32.mrf.mxu0
      %v1603 = vadd.f32 0.0, %v1602
      %v1604 = vpop.f32.mrf.mxu0
      %v1605 = vadd.f32 0.0, %v1604
      %v1606 = vpop.f32.mrf.mxu0
      %v1607 = vadd.f32 0.0, %v1606
      %1608 = vmatprep.mubr.bf16.mxu0 0
      %1609 = vmatmul.mubr.bf16.gmra.mxu0 %v1210
      %v1610 = vpop.f32.mrf.mxu0
      %v1611 = vadd.f32 0.0, %v1610
      %v1612 = vpop.f32.mrf.mxu0
      %v1613 = vadd.f32 0.0, %v1612
      %v1614 = vpop.f32.mrf.mxu0
      %v1615 = vadd.f32 0.0, %v1614
      %v1616 = vpop.f32.mrf.mxu0
      %v1617 = vadd.f32 0.0, %v1616
      %1618 = vmatprep.mubr.bf16.mxu0 0
      %1619 = vmatmul.mubr.bf16.gmra.mxu0 %v1213
      %v1620 = vpop.f32.mrf.mxu0
      %v1621 = vadd.f32 0.0, %v1620
      %v1622 = vpop.f32.mrf.mxu0
      %v1623 = vadd.f32 0.0, %v1622
      %v1624 = vpop.f32.mrf.mxu0
      %v1625 = vadd.f32 0.0, %v1624
      %v1626 = vpop.f32.mrf.mxu0
      %v1627 = vadd.f32 0.0, %v1626
      %1628 = vmatprep.mubr.bf16.mxu0 0
      %1629 = vmatmul.mubr.bf16.gmra.mxu0 %v1216
      %v1630 = vpop.f32.mrf.mxu0
      %v1631 = vadd.f32 0.0, %v1630
      %v1632 = vpop.f32.mrf.mxu0
      %v1633 = vadd.f32 0.0, %v1632
      %v1634 = vpop.f32.mrf.mxu0
      %v1635 = vadd.f32 0.0, %v1634
      %v1636 = vpop.f32.mrf.mxu0
      %v1637 = vadd.f32 0.0, %v1636
      %1638 = vmatprep.mubr.bf16.mxu0 0
      %1639 = vmatmul.mubr.bf16.gmra.mxu0 %v1219
      %v1640 = vpop.f32.mrf.mxu0
      %v1641 = vadd.f32 0.0, %v1640
      %v1642 = vpop.f32.mrf.mxu0
      %v1643 = vadd.f32 0.0, %v1642
      %v1644 = vpop.f32.mrf.mxu0
      %v1645 = vadd.f32 0.0, %v1644
      %v1646 = vpop.f32.mrf.mxu0
      %v1647 = vadd.f32 0.0, %v1646
      %1648 = vmatprep.mubr.bf16.mxu0 0
      %1649 = vmatmul.mubr.bf16.gmra.mxu0 %v1222
      %v1650 = vpop.f32.mrf.mxu0
      %v1651 = vadd.f32 0.0, %v1650
      %v1652 = vpop.f32.mrf.mxu0
      %v1653 = vadd.f32 0.0, %v1652
      %v1654 = vpop.f32.mrf.mxu0
      %v1655 = vadd.f32 0.0, %v1654
      %v1656 = vpop.f32.mrf.mxu0
      %v1657 = vadd.f32 0.0, %v1656
      %1658 = vmatprep.mubr.bf16.mxu0 0
      %1659 = vmatmul.mubr.bf16.gmra.mxu0 %v1225
      %v1660 = vpop.f32.mrf.mxu0
      %v1661 = vadd.f32 0.0, %v1660
      %v1662 = vpop.f32.mrf.mxu0
      %v1663 = vadd.f32 0.0, %v1662
      %v1664 = vpop.f32.mrf.mxu0
      %v1665 = vadd.f32 0.0, %v1664
      %v1666 = vpop.f32.mrf.mxu0
      %v1667 = vadd.f32 0.0, %v1666
      %1668 = vmatprep.mubr.bf16.mxu0 0
      %1669 = vmatmul.mubr.bf16.gmra.mxu0 %v1228
      %v1670 = vpop.f32.mrf.mxu0
      %v1671 = vadd.f32 0.0, %v1670
      %v1672 = vpop.f32.mrf.mxu0
      %v1673 = vadd.f32 0.0, %v1672
      %v1674 = vpop.f32.mrf.mxu0
      %v1675 = vadd.f32 0.0, %v1674
      %v1676 = vpop.f32.mrf.mxu0
      %v1677 = vadd.f32 0.0, %v1676
      %1678 = vmatprep.mubr.bf16.mxu0 0
      %1679 = vmatmul.mubr.bf16.gmra.mxu0 %v1231
      %v1680 = vpop.f32.mrf.mxu0
      %v1681 = vadd.f32 0.0, %v1680
      %v1682 = vpop.f32.mrf.mxu0
      %v1683 = vadd.f32 0.0, %v1682
      %v1684 = vpop.f32.mrf.mxu0
      %v1685 = vadd.f32 0.0, %v1684
      %v1686 = vpop.f32.mrf.mxu0
      %v1687 = vadd.f32 0.0, %v1686
      %1688 = vmatprep.mubr.bf16.mxu0 0
      %1689 = vmatmul.mubr.bf16.gmra.mxu0 %v1234
      %v1690 = vpop.f32.mrf.mxu0
      %v1691 = vadd.f32 0.0, %v1690
      %v1692 = vpop.f32.mrf.mxu0
      %v1693 = vadd.f32 0.0, %v1692
      %v1694 = vpop.f32.mrf.mxu0
      %v1695 = vadd.f32 0.0, %v1694
      %v1696 = vpop.f32.mrf.mxu0
      %v1697 = vadd.f32 0.0, %v1696
      %1698 = vmatprep.mubr.bf16.mxu0 0
      %1699 = vmatmul.mubr.bf16.gmra.mxu0 %v1237
      %v1700 = vpop.f32.mrf.mxu0
      %v1701 = vadd.f32 0.0, %v1700
      %v1702 = vpop.f32.mrf.mxu0
      %v1703 = vadd.f32 0.0, %v1702
      %v1704 = vpop.f32.mrf.mxu0
      %v1705 = vadd.f32 0.0, %v1704
      %v1706 = vpop.f32.mrf.mxu0
      %v1707 = vadd.f32 0.0, %v1706
      %1708 = vmatprep.mubr.bf16.mxu0 0
      %1709 = vmatmul.mubr.bf16.gmra.mxu0 %v1240
      %v1710 = vpop.f32.mrf.mxu0
      %v1711 = vadd.f32 0.0, %v1710
      %v1712 = vpop.f32.mrf.mxu0
      %v1713 = vadd.f32 0.0, %v1712
      %v1714 = vpop.f32.mrf.mxu0
      %v1715 = vadd.f32 0.0, %v1714
      %v1716 = vpop.f32.mrf.mxu0
      %v1717 = vadd.f32 0.0, %v1716
      %1718 = vmatprep.mubr.bf16.mxu0 0
      %1719 = vmatmul.mubr.bf16.gmra.mxu0 %v1243
      %v1720 = vpop.f32.mrf.mxu0
      %v1721 = vadd.f32 0.0, %v1720
      %v1722 = vpop.f32.mrf.mxu0
      %v1723 = vadd.f32 0.0, %v1722
      %v1724 = vpop.f32.mrf.mxu0
      %v1725 = vadd.f32 0.0, %v1724
      %v1726 = vpop.f32.mrf.mxu0
      %v1727 = vadd.f32 0.0, %v1726
      %1728 = vmatprep.mubr.bf16.mxu0 0
      %1729 = vmatmul.mubr.bf16.gmra.mxu0 %v1246
      %v1730 = vpop.f32.mrf.mxu0
      %v1731 = vadd.f32 0.0, %v1730
      %v1732 = vpop.f32.mrf.mxu0
      %v1733 = vadd.f32 0.0, %v1732
      %v1734 = vpop.f32.mrf.mxu0
      %v1735 = vadd.f32 0.0, %v1734
      %v1736 = vpop.f32.mrf.mxu0
      %v1737 = vadd.f32 0.0, %v1736
      %1738 = vmatprep.mubr.bf16.mxu0 0
      %1739 = vmatmul.mubr.bf16.gmra.mxu0 %v1249
      %v1740 = vpop.f32.mrf.mxu0
      %v1741 = vadd.f32 0.0, %v1740
      %v1742 = vpop.f32.mrf.mxu0
      %v1743 = vadd.f32 0.0, %v1742
      %v1744 = vpop.f32.mrf.mxu0
      %v1745 = vadd.f32 0.0, %v1744
      %v1746 = vpop.f32.mrf.mxu0
      %v1747 = vadd.f32 0.0, %v1746
      %1748 = vmatprep.mubr.bf16.mxu0 0
      %1749 = vmatmul.mubr.bf16.gmra.mxu0 %v1252
      %v1750 = vpop.f32.mrf.mxu0
      %v1751 = vadd.f32 0.0, %v1750
      %v1752 = vpop.f32.mrf.mxu0
      %v1753 = vadd.f32 0.0, %v1752
      %v1754 = vpop.f32.mrf.mxu0
      %v1755 = vadd.f32 0.0, %v1754
      %v1756 = vpop.f32.mrf.mxu0
      %v1757 = vadd.f32 0.0, %v1756
      %1758 = vmatprep.mubr.bf16.mxu0 0
      %1759 = vmatmul.mubr.bf16.gmra.mxu0 %v1255
      %v1760 = vpop.f32.mrf.mxu0
      %v1761 = vadd.f32 0.0, %v1760
      %v1762 = vpop.f32.mrf.mxu0
      %v1763 = vadd.f32 0.0, %v1762
      %v1764 = vpop.f32.mrf.mxu0
      %v1765 = vadd.f32 0.0, %v1764
      %v1766 = vpop.f32.mrf.mxu0
      %v1767 = vadd.f32 0.0, %v1766
      %1768 = vmatprep.mubr.bf16.mxu0 0
      %1769 = vmatmul.mubr.bf16.gmra.mxu0 %v1258
      %v1770 = vpop.f32.mrf.mxu0
      %v1771 = vadd.f32 0.0, %v1770
      %v1772 = vpop.f32.mrf.mxu0
      %v1773 = vadd.f32 0.0, %v1772
      %v1774 = vpop.f32.mrf.mxu0
      %v1775 = vadd.f32 0.0, %v1774
      %v1776 = vpop.f32.mrf.mxu0
      %v1777 = vadd.f32 0.0, %v1776
      %1778 = vmatprep.mubr.bf16.mxu0 0
      %1779 = vmatmul.mubr.bf16.gmra.mxu0 %v1261
      %v1780 = vpop.f32.mrf.mxu0
      %v1781 = vadd.f32 0.0, %v1780
      %v1782 = vpop.f32.mrf.mxu0
      %v1783 = vadd.f32 0.0, %v1782
      %v1784 = vpop.f32.mrf.mxu0
      %v1785 = vadd.f32 0.0, %v1784
      %v1786 = vpop.f32.mrf.mxu0
      %v1787 = vadd.f32 0.0, %v1786
      %1788 = vmatprep.mubr.bf16.mxu0 0
      %1789 = vmatmul.mubr.bf16.gmra.mxu0 %v1264
      %v1790 = vpop.f32.mrf.mxu0
      %v1791 = vadd.f32 0.0, %v1790
      %v1792 = vpop.f32.mrf.mxu0
      %v1793 = vadd.f32 0.0, %v1792
      %v1794 = vpop.f32.mrf.mxu0
      %v1795 = vadd.f32 0.0, %v1794
      %v1796 = vpop.f32.mrf.mxu0
      %v1797 = vadd.f32 0.0, %v1796
      %1798 = vmatprep.mubr.bf16.mxu0 0
      %1799 = vmatmul.mubr.bf16.gmra.mxu0 %v1267
      %v1800 = vpop.f32.mrf.mxu0
      %v1801 = vadd.f32 0.0, %v1800
      %v1802 = vpop.f32.mrf.mxu0
      %v1803 = vadd.f32 0.0, %v1802
      %v1804 = vpop.f32.mrf.mxu0
      %v1805 = vadd.f32 0.0, %v1804
      %v1806 = vpop.f32.mrf.mxu0
      %v1807 = vadd.f32 0.0, %v1806
      %1808 = vmatprep.mubr.bf16.mxu0 0
      %1809 = vmatmul.mubr.bf16.gmra.mxu0 %v1270
      %v1810 = vpop.f32.mrf.mxu0
      %v1811 = vadd.f32 0.0, %v1810
      %v1812 = vpop.f32.mrf.mxu0
      %v1813 = vadd.f32 0.0, %v1812
      %v1814 = vpop.f32.mrf.mxu0
      %v1815 = vadd.f32 0.0, %v1814
      %v1816 = vpop.f32.mrf.mxu0
      %v1817 = vadd.f32 0.0, %v1816
      %1818 = vmatprep.mubr.bf16.mxu0 0
      %1819 = vmatmul.mubr.bf16.gmra.mxu0 %v1273
      %v1820 = vpop.f32.mrf.mxu0
      %v1821 = vadd.f32 0.0, %v1820
      %v1822 = vpop.f32.mrf.mxu0
      %v1823 = vadd.f32 0.0, %v1822
      %v1824 = vpop.f32.mrf.mxu0
      %v1825 = vadd.f32 0.0, %v1824
      %v1826 = vpop.f32.mrf.mxu0
      %v1827 = vadd.f32 0.0, %v1826
      %1828 = vmatprep.mubr.bf16.mxu0 0
      %1829 = vmatmul.mubr.bf16.gmra.mxu0 %v1276
      %v1830 = vpop.f32.mrf.mxu0
      %v1831 = vadd.f32 0.0, %v1830
      %v1832 = vpop.f32.mrf.mxu0
      %v1833 = vadd.f32 0.0, %v1832
      %v1834 = vpop.f32.mrf.mxu0
      %v1835 = vadd.f32 0.0, %v1834
      %v1836 = vpop.f32.mrf.mxu0
      %v1837 = vadd.f32 0.0, %v1836
      %1838 = vmatprep.mubr.bf16.mxu0 0
      %1839 = vmatmul.mubr.bf16.gmra.mxu0 %v1279
      %v1840 = vpop.f32.mrf.mxu0
      %v1841 = vadd.f32 0.0, %v1840
      %v1842 = vpop.f32.mrf.mxu0
      %v1843 = vadd.f32 0.0, %v1842
      %v1844 = vpop.f32.mrf.mxu0
      %v1845 = vadd.f32 0.0, %v1844
      %v1846 = vpop.f32.mrf.mxu0
      %v1847 = vadd.f32 0.0, %v1846
      %1848 = vmatprep.mubr.bf16.mxu0 0
      %1849 = vmatmul.mubr.bf16.gmra.mxu0 %v1282
      %v1850 = vpop.f32.mrf.mxu0
      %v1851 = vadd.f32 0.0, %v1850
      %v1852 = vpop.f32.mrf.mxu0
      %v1853 = vadd.f32 0.0, %v1852
      %v1854 = vpop.f32.mrf.mxu0
      %v1855 = vadd.f32 0.0, %v1854
      %v1856 = vpop.f32.mrf.mxu0
      %v1857 = vadd.f32 0.0, %v1856
      %1858 = vmatprep.mubr.bf16.mxu0 0
      %1859 = vmatmul.mubr.bf16.gmra.mxu0 %v1285
      %v1860 = vpop.f32.mrf.mxu0
      %v1861 = vadd.f32 0.0, %v1860
      %v1862 = vpop.f32.mrf.mxu0
      %v1863 = vadd.f32 0.0, %v1862
      %v1864 = vpop.f32.mrf.mxu0
      %v1865 = vadd.f32 0.0, %v1864
      %v1866 = vpop.f32.mrf.mxu0
      %v1867 = vadd.f32 0.0, %v1866
      %1868 = vmatprep.mubr.bf16.mxu0 0
      %1869 = vmatmul.mubr.bf16.gmra.mxu0 %v1288
      %v1870 = vpop.f32.mrf.mxu0
      %v1871 = vadd.f32 0.0, %v1870
      %v1872 = vpop.f32.mrf.mxu0
      %v1873 = vadd.f32 0.0, %v1872
      %v1874 = vpop.f32.mrf.mxu0
      %v1875 = vadd.f32 0.0, %v1874
      %v1876 = vpop.f32.mrf.mxu0
      %v1877 = vadd.f32 0.0, %v1876
      %1878 = vmatprep.mubr.bf16.mxu0 0
      %1879 = vmatmul.mubr.bf16.gmra.mxu0 %v1291
      %v1880 = vpop.f32.mrf.mxu0
      %v1881 = vadd.f32 0.0, %v1880
      %v1882 = vpop.f32.mrf.mxu0
      %v1883 = vadd.f32 0.0, %v1882
      %v1884 = vpop.f32.mrf.mxu0
      %v1885 = vadd.f32 0.0, %v1884
      %v1886 = vpop.f32.mrf.mxu0
      %v1887 = vadd.f32 0.0, %v1886
      %1888 = vmatprep.mubr.bf16.mxu0 0
      %1889 = vmatmul.mubr.bf16.gmra.mxu0 %v1294
      %v1890 = vpop.f32.mrf.mxu0
      %v1891 = vadd.f32 0.0, %v1890
      %v1892 = vpop.f32.mrf.mxu0
      %v1893 = vadd.f32 0.0, %v1892
      %v1894 = vpop.f32.mrf.mxu0
      %v1895 = vadd.f32 0.0, %v1894
      %v1896 = vpop.f32.mrf.mxu0
      %v1897 = vadd.f32 0.0, %v1896
      %1898 = vmatprep.mubr.bf16.mxu0 0
      %1899 = vmatmul.mubr.bf16.gmra.mxu0 %v1297
      %v1900 = vpop.f32.mrf.mxu0
      %v1901 = vadd.f32 0.0, %v1900
      %v1902 = vpop.f32.mrf.mxu0
      %v1903 = vadd.f32 0.0, %v1902
      %v1904 = vpop.f32.mrf.mxu0
      %v1905 = vadd.f32 0.0, %v1904
      %v1906 = vpop.f32.mrf.mxu0
      %v1907 = vadd.f32 0.0, %v1906
      %1908 = vmatprep.mubr.bf16.mxu0 0
      %1909 = vmatmul.mubr.bf16.gmra.mxu0 %v1300
      %v1910 = vpop.f32.mrf.mxu0
      %v1911 = vadd.f32 0.0, %v1910
      %v1912 = vpop.f32.mrf.mxu0
      %v1913 = vadd.f32 0.0, %v1912
      %v1914 = vpop.f32.mrf.mxu0
      %v1915 = vadd.f32 0.0, %v1914
      %v1916 = vpop.f32.mrf.mxu0
      %v1917 = vadd.f32 0.0, %v1916
      %1918 = vmatprep.mubr.bf16.mxu0 0
      %1919 = vmatmul.mubr.bf16.gmra.mxu0 %v1303
      %v1920 = vpop.f32.mrf.mxu0
      %v1921 = vadd.f32 0.0, %v1920
      %v1922 = vpop.f32.mrf.mxu0
      %v1923 = vadd.f32 0.0, %v1922
      %v1924 = vpop.f32.mrf.mxu0
      %v1925 = vadd.f32 0.0, %v1924
      %v1926 = vpop.f32.mrf.mxu0
      %v1927 = vadd.f32 0.0, %v1926
      %1928 = vmatprep.mubr.bf16.mxu0 0
      %1929 = vmatmul.mubr.bf16.gmra.mxu0 %v1306
      %v1930 = vpop.f32.mrf.mxu0
      %v1931 = vadd.f32 0.0, %v1930
      %v1932 = vpop.f32.mrf.mxu0
      %v1933 = vadd.f32 0.0, %v1932
      %v1934 = vpop.f32.mrf.mxu0
      %v1935 = vadd.f32 0.0, %v1934
      %v1936 = vpop.f32.mrf.mxu0
      %v1937 = vadd.f32 0.0, %v1936
      %1938 = vmatprep.mubr.bf16.mxu0 0
      %1939 = vmatmul.mubr.bf16.gmra.mxu0 %v1309
      %v1940 = vpop.f32.mrf.mxu0
      %v1941 = vadd.f32 0.0, %v1940
      %v1942 = vpop.f32.mrf.mxu0
      %v1943 = vadd.f32 0.0, %v1942
      %v1944 = vpop.f32.mrf.mxu0
      %v1945 = vadd.f32 0.0, %v1944
      %v1946 = vpop.f32.mrf.mxu0
      %v1947 = vadd.f32 0.0, %v1946
      %1948 = vmatprep.mubr.bf16.mxu0 0
      %1949 = vmatmul.mubr.bf16.gmra.mxu0 %v1312
      %v1950 = vpop.f32.mrf.mxu0
      %v1951 = vadd.f32 0.0, %v1950
      %v1952 = vpop.f32.mrf.mxu0
      %v1953 = vadd.f32 0.0, %v1952
      %v1954 = vpop.f32.mrf.mxu0
      %v1955 = vadd.f32 0.0, %v1954
      %v1956 = vpop.f32.mrf.mxu0
      %v1957 = vadd.f32 0.0, %v1956
      %1958 = vmatprep.mubr.bf16.mxu0 0
      %1959 = vmatmul.mubr.bf16.gmra.mxu0 %v1315
      %v1960 = vpop.f32.mrf.mxu0
      %v1961 = vadd.f32 0.0, %v1960
      %v1962 = vpop.f32.mrf.mxu0
      %v1963 = vadd.f32 0.0, %v1962
      %v1964 = vpop.f32.mrf.mxu0
      %v1965 = vadd.f32 0.0, %v1964
      %v1966 = vpop.f32.mrf.mxu0
      %v1967 = vadd.f32 0.0, %v1966
      %1968 = vmatprep.mubr.bf16.mxu0 0
      %1969 = vmatmul.mubr.bf16.gmra.mxu0 %v1318
      %v1970 = vpop.f32.mrf.mxu0
      %v1971 = vadd.f32 0.0, %v1970
      %v1972 = vpop.f32.mrf.mxu0
      %v1973 = vadd.f32 0.0, %v1972
      %v1974 = vpop.f32.mrf.mxu0
      %v1975 = vadd.f32 0.0, %v1974
      %v1976 = vpop.f32.mrf.mxu0
      %v1977 = vadd.f32 0.0, %v1976
      %1978 = vmatprep.mubr.bf16.mxu0 0
      %1979 = vmatmul.mubr.bf16.gmra.mxu0 %v1321
      %v1980 = vpop.f32.mrf.mxu0
      %v1981 = vadd.f32 0.0, %v1980
      %v1982 = vpop.f32.mrf.mxu0
      %v1983 = vadd.f32 0.0, %v1982
      %v1984 = vpop.f32.mrf.mxu0
      %v1985 = vadd.f32 0.0, %v1984
      %v1986 = vpop.f32.mrf.mxu0
      %v1987 = vadd.f32 0.0, %v1986
      %1988 = vmatprep.mubr.bf16.mxu0 0
      %1989 = vmatmul.mubr.bf16.gmra.mxu0 %v1324
      %v1990 = vpop.f32.mrf.mxu0
      %v1991 = vadd.f32 0.0, %v1990
      %v1992 = vpop.f32.mrf.mxu0
      %v1993 = vadd.f32 0.0, %v1992
      %v1994 = vpop.f32.mrf.mxu0
      %v1995 = vadd.f32 0.0, %v1994
      %v1996 = vpop.f32.mrf.mxu0
      %v1997 = vadd.f32 0.0, %v1996
      %1998 = vdwg.mxu0
      %v2001 = vcombine.high %v534, %v534
      %v2003 = vunpack.c.l.s4 1966171168
      %v2004 = vunpack.c.0.s8 %v2003
      %v2005 = vlaneseq
      %v2006 = vshrl.u32 %v2005, 7
      %v2007 = vsub.s32 %v2004, %v2006
      %v2008 = vrot.slane %v534, %v2007
      %v2010 = vunpack.c.l.s4 1966171168
      %v2011 = vunpack.c.0.s8 %v2010
      %v2012 = vlaneseq
      %v2013 = vshrl.u32 %v2012, 7
      %v2014 = vsub.s32 %v2011, %v2013
      %v2015 = vrot.slane %v2001, %v2014
      %v2016 = vcombine.high %v2008, %v2008
      %v2017 = vcombine.high %v2015, %v2015
      %v2019 = vunpack.c.l.s4 1966171168
      %v2020 = vunpack.c.0.s8 %v2019
      %v2021 = vlaneseq
      %v2022 = vshrl.u32 %v2021, 7
      %v2023 = vsub.s32 %v2020, %v2022
      %v2024 = vrot.slane %v2008, %v2023
      %v2026 = vunpack.c.l.s4 1966171168
      %v2027 = vunpack.c.0.s8 %v2026
      %v2028 = vlaneseq
      %v2029 = vshrl.u32 %v2028, 7
      %v2030 = vsub.s32 %v2027, %v2029
      %v2031 = vrot.slane %v2015, %v2030
      %v2033 = vunpack.c.l.s4 1966171168
      %v2034 = vunpack.c.0.s8 %v2033
      %v2035 = vlaneseq
      %v2036 = vshrl.u32 %v2035, 7
      %v2037 = vsub.s32 %v2034, %v2036
      %v2038 = vrot.slane %v2016, %v2037
      %v2040 = vunpack.c.l.s4 1966171168
      %v2041 = vunpack.c.0.s8 %v2040
      %v2042 = vlaneseq
      %v2043 = vshrl.u32 %v2042, 7
      %v2044 = vsub.s32 %v2041, %v2043
      %v2045 = vrot.slane %v2017, %v2044
      %v2046 = vcombine.high %v2024, %v2024
      %v2047 = vcombine.high %v2031, %v2031
      %v2048 = vcombine.high %v2038, %v2038
      %v2049 = vcombine.high %v2045, %v2045
      %v2050 = vcombine.high %v537, %v537
      %v2052 = vunpack.c.l.s4 1966171168
      %v2053 = vunpack.c.0.s8 %v2052
      %v2054 = vlaneseq
      %v2055 = vshrl.u32 %v2054, 7
      %v2056 = vsub.s32 %v2053, %v2055
      %v2057 = vrot.slane %v537, %v2056
      %v2059 = vunpack.c.l.s4 1966171168
      %v2060 = vunpack.c.0.s8 %v2059
      %v2061 = vlaneseq
      %v2062 = vshrl.u32 %v2061, 7
      %v2063 = vsub.s32 %v2060, %v2062
      %v2064 = vrot.slane %v2050, %v2063
      %v2065 = vcombine.high %v2057, %v2057
      %v2066 = vcombine.high %v2064, %v2064
      %v2068 = vunpack.c.l.s4 1966171168
      %v2069 = vunpack.c.0.s8 %v2068
      %v2070 = vlaneseq
      %v2071 = vshrl.u32 %v2070, 7
      %v2072 = vsub.s32 %v2069, %v2071
      %v2073 = vrot.slane %v2057, %v2072
      %v2075 = vunpack.c.l.s4 1966171168
      %v2076 = vunpack.c.0.s8 %v2075
      %v2077 = vlaneseq
      %v2078 = vshrl.u32 %v2077, 7
      %v2079 = vsub.s32 %v2076, %v2078
      %v2080 = vrot.slane %v2064, %v2079
      %v2082 = vunpack.c.l.s4 1966171168
      %v2083 = vunpack.c.0.s8 %v2082
      %v2084 = vlaneseq
      %v2085 = vshrl.u32 %v2084, 7
      %v2086 = vsub.s32 %v2083, %v2085
      %v2087 = vrot.slane %v2065, %v2086
      %v2089 = vunpack.c.l.s4 1966171168
      %v2090 = vunpack.c.0.s8 %v2089
      %v2091 = vlaneseq
      %v2092 = vshrl.u32 %v2091, 7
      %v2093 = vsub.s32 %v2090, %v2092
      %v2094 = vrot.slane %v2066, %v2093
      %v2095 = vcombine.high %v2073, %v2073
      %v2096 = vcombine.high %v2080, %v2080
      %v2097 = vcombine.high %v2087, %v2087
      %v2098 = vcombine.high %v2094, %v2094
      %v2099 = vadd.f32 %v653, %v1361
      %v2100 = vadd.f32 %v654, %v1365
      %v2101 = vadd.f32 %v655, %v1371
      %v2102 = vadd.f32 %v656, %v1375
      %v2103 = vadd.f32 %v657, %v1381
      %v2104 = vadd.f32 %v658, %v1385
      %v2105 = vadd.f32 %v659, %v1391
      %v2106 = vadd.f32 %v660, %v1395
      %v2107 = vadd.f32 %v653, %v1401
      %v2108 = vadd.f32 %v654, %v1405
      %v2109 = vadd.f32 %v655, %v1411
      %v2110 = vadd.f32 %v656, %v1415
      %v2111 = vadd.f32 %v657, %v1421
      %v2112 = vadd.f32 %v658, %v1425
      %v2113 = vadd.f32 %v659, %v1431
      %v2114 = vadd.f32 %v660, %v1435
      %v2115 = vadd.f32 %v653, %v1441
      %v2116 = vadd.f32 %v654, %v1445
      %v2117 = vadd.f32 %v655, %v1451
      %v2118 = vadd.f32 %v656, %v1455
      %v2119 = vadd.f32 %v657, %v1461
      %v2120 = vadd.f32 %v658, %v1465
      %v2121 = vadd.f32 %v659, %v1471
      %v2122 = vadd.f32 %v660, %v1475
      %v2123 = vadd.f32 %v653, %v1481
      %v2124 = vadd.f32 %v654, %v1485
      %v2125 = vadd.f32 %v655, %v1491
      %v2126 = vadd.f32 %v656, %v1495
      %v2127 = vadd.f32 %v657, %v1501
      %v2128 = vadd.f32 %v658, %v1505
      %v2129 = vadd.f32 %v659, %v1511
      %v2130 = vadd.f32 %v660, %v1515
      %v2131 = vadd.f32 %v653, %v1521
      %v2132 = vadd.f32 %v654, %v1525
      %v2133 = vadd.f32 %v655, %v1531
      %v2134 = vadd.f32 %v656, %v1535
      %v2135 = vadd.f32 %v657, %v1541
      %v2136 = vadd.f32 %v658, %v1545
      %v2137 = vadd.f32 %v659, %v1551
      %v2138 = vadd.f32 %v660, %v1555
      %v2139 = vadd.f32 %v653, %v1561
      %v2140 = vadd.f32 %v654, %v1565
      %v2141 = vadd.f32 %v655, %v1571
      %v2142 = vadd.f32 %v656, %v1575
      %v2143 = vadd.f32 %v657, %v1581
      %v2144 = vadd.f32 %v658, %v1585
      %v2145 = vadd.f32 %v659, %v1591
      %v2146 = vadd.f32 %v660, %v1595
      %v2147 = vadd.f32 %v653, %v1601
      %v2148 = vadd.f32 %v654, %v1605
      %v2149 = vadd.f32 %v655, %v1611
      %v2150 = vadd.f32 %v656, %v1615
      %v2151 = vadd.f32 %v657, %v1621
      %v2152 = vadd.f32 %v658, %v1625
      %v2153 = vadd.f32 %v659, %v1631
      %v2154 = vadd.f32 %v660, %v1635
      %v2155 = vadd.f32 %v653, %v1641
      %v2156 = vadd.f32 %v654, %v1645
      %v2157 = vadd.f32 %v655, %v1651
      %v2158 = vadd.f32 %v656, %v1655
      %v2159 = vadd.f32 %v657, %v1661
      %v2160 = vadd.f32 %v658, %v1665
      %v2161 = vadd.f32 %v659, %v1671
      %v2162 = vadd.f32 %v660, %v1675
      %v2163 = vadd.f32 %v653, %v1681
      %v2164 = vadd.f32 %v654, %v1685
      %v2165 = vadd.f32 %v655, %v1691
      %v2166 = vadd.f32 %v656, %v1695
      %v2167 = vadd.f32 %v657, %v1701
      %v2168 = vadd.f32 %v658, %v1705
      %v2169 = vadd.f32 %v659, %v1711
      %v2170 = vadd.f32 %v660, %v1715
      %v2171 = vadd.f32 %v653, %v1721
      %v2172 = vadd.f32 %v654, %v1725
      %v2173 = vadd.f32 %v655, %v1731
      %v2174 = vadd.f32 %v656, %v1735
      %v2175 = vadd.f32 %v657, %v1741
      %v2176 = vadd.f32 %v658, %v1745
      %v2177 = vadd.f32 %v659, %v1751
      %v2178 = vadd.f32 %v660, %v1755
      %v2179 = vadd.f32 %v653, %v1761
      %v2180 = vadd.f32 %v654, %v1765
      %v2181 = vadd.f32 %v655, %v1771
      %v2182 = vadd.f32 %v656, %v1775
      %v2183 = vadd.f32 %v657, %v1781
      %v2184 = vadd.f32 %v658, %v1785
      %v2185 = vadd.f32 %v659, %v1791
      %v2186 = vadd.f32 %v660, %v1795
      %v2187 = vadd.f32 %v653, %v1801
      %v2188 = vadd.f32 %v654, %v1805
      %v2189 = vadd.f32 %v655, %v1811
      %v2190 = vadd.f32 %v656, %v1815
      %v2191 = vadd.f32 %v657, %v1821
      %v2192 = vadd.f32 %v658, %v1825
      %v2193 = vadd.f32 %v659, %v1831
      %v2194 = vadd.f32 %v660, %v1835
      %v2195 = vadd.f32 %v653, %v1841
      %v2196 = vadd.f32 %v654, %v1845
      %v2197 = vadd.f32 %v655, %v1851
      %v2198 = vadd.f32 %v656, %v1855
      %v2199 = vadd.f32 %v657, %v1861
      %v2200 = vadd.f32 %v658, %v1865
      %v2201 = vadd.f32 %v659, %v1871
      %v2202 = vadd.f32 %v660, %v1875
      %v2203 = vadd.f32 %v653, %v1881
      %v2204 = vadd.f32 %v654, %v1885
      %v2205 = vadd.f32 %v655, %v1891
      %v2206 = vadd.f32 %v656, %v1895
      %v2207 = vadd.f32 %v657, %v1901
      %v2208 = vadd.f32 %v658, %v1905
      %v2209 = vadd.f32 %v659, %v1911
      %v2210 = vadd.f32 %v660, %v1915
      %v2211 = vadd.f32 %v653, %v1921
      %v2212 = vadd.f32 %v654, %v1925
      %v2213 = vadd.f32 %v655, %v1931
      %v2214 = vadd.f32 %v656, %v1935
      %v2215 = vadd.f32 %v657, %v1941
      %v2216 = vadd.f32 %v658, %v1945
      %v2217 = vadd.f32 %v659, %v1951
      %v2218 = vadd.f32 %v660, %v1955
      %v2219 = vadd.f32 %v653, %v1961
      %v2220 = vadd.f32 %v654, %v1965
      %v2221 = vadd.f32 %v655, %v1971
      %v2222 = vadd.f32 %v656, %v1975
      %v2223 = vadd.f32 %v657, %v1981
      %v2224 = vadd.f32 %v658, %v1985
      %v2225 = vadd.f32 %v659, %v1991
      %v2226 = vadd.f32 %v660, %v1995
      %v2227 = vlaneseq
      %v2228 = vshrl.u32 %v2227, 7
      %v2229 = vsub.s32 0, %v2228
      %v2230 = vrot.slane %v2024, %v2229
      %v2231 = vlaneseq
      %v2232 = vshrl.u32 %v2231, 7
      %v2233 = vsub.s32 0, %v2232
      %v2234 = vrot.slane %v2038, %v2233
      %v2235 = vlaneseq
      %v2236 = vshrl.u32 %v2235, 7
      %v2237 = vsub.s32 0, %v2236
      %v2238 = vrot.slane %v2046, %v2237
      %v2239 = vlaneseq
      %v2240 = vshrl.u32 %v2239, 7
      %v2241 = vsub.s32 0, %v2240
      %v2242 = vrot.slane %v2048, %v2241
      %v2243 = vlaneseq
      %v2244 = vshrl.u32 %v2243, 7
      %v2245 = vsub.s32 0, %v2244
      %v2246 = vrot.slane %v2031, %v2245
      %v2247 = vlaneseq
      %v2248 = vshrl.u32 %v2247, 7
      %v2249 = vsub.s32 0, %v2248
      %v2250 = vrot.slane %v2045, %v2249
      %v2251 = vlaneseq
      %v2252 = vshrl.u32 %v2251, 7
      %v2253 = vsub.s32 0, %v2252
      %v2254 = vrot.slane %v2047, %v2253
      %v2255 = vlaneseq
      %v2256 = vshrl.u32 %v2255, 7
      %v2257 = vsub.s32 0, %v2256
      %v2258 = vrot.slane %v2049, %v2257
      %v2259 = vlaneseq
      %v2260 = vshrl.u32 %v2259, 7
      %v2261 = vsub.s32 0, %v2260
      %v2262 = vrot.slane %v2073, %v2261
      %v2263 = vlaneseq
      %v2264 = vshrl.u32 %v2263, 7
      %v2265 = vsub.s32 0, %v2264
      %v2266 = vrot.slane %v2087, %v2265
      %v2267 = vlaneseq
      %v2268 = vshrl.u32 %v2267, 7
      %v2269 = vsub.s32 0, %v2268
      %v2270 = vrot.slane %v2095, %v2269
      %v2271 = vlaneseq
      %v2272 = vshrl.u32 %v2271, 7
      %v2273 = vsub.s32 0, %v2272
      %v2274 = vrot.slane %v2097, %v2273
      %v2275 = vlaneseq
      %v2276 = vshrl.u32 %v2275, 7
      %v2277 = vsub.s32 0, %v2276
      %v2278 = vrot.slane %v2080, %v2277
      %v2279 = vlaneseq
      %v2280 = vshrl.u32 %v2279, 7
      %v2281 = vsub.s32 0, %v2280
      %v2282 = vrot.slane %v2094, %v2281
      %v2283 = vlaneseq
      %v2284 = vshrl.u32 %v2283, 7
      %v2285 = vsub.s32 0, %v2284
      %v2286 = vrot.slane %v2096, %v2285
      %v2287 = vlaneseq
      %v2288 = vshrl.u32 %v2287, 7
      %v2289 = vsub.s32 0, %v2288
      %v2290 = vrot.slane %v2098, %v2289
      %v2307 = vmul.f32 %v2230, %v2099
      %v2308 = vmul.f32 %v2230, %v2100
      %v2309 = vmul.f32 %v2230, %v2101
      %v2310 = vmul.f32 %v2230, %v2102
      %v2311 = vmul.f32 %v2230, %v2103
      %v2312 = vmul.f32 %v2230, %v2104
      %v2313 = vmul.f32 %v2230, %v2105
      %v2314 = vmul.f32 %v2230, %v2106
      %v2315 = vmul.f32 %v2234, %v2107
      %v2316 = vmul.f32 %v2234, %v2108
      %v2317 = vmul.f32 %v2234, %v2109
      %v2318 = vmul.f32 %v2234, %v2110
      %v2319 = vmul.f32 %v2234, %v2111
      %v2320 = vmul.f32 %v2234, %v2112
      %v2321 = vmul.f32 %v2234, %v2113
      %v2322 = vmul.f32 %v2234, %v2114
      %v2323 = vmul.f32 %v2238, %v2115
      %v2324 = vmul.f32 %v2238, %v2116
      %v2325 = vmul.f32 %v2238, %v2117
      %v2326 = vmul.f32 %v2238, %v2118
      %v2327 = vmul.f32 %v2238, %v2119
      %v2328 = vmul.f32 %v2238, %v2120
      %v2329 = vmul.f32 %v2238, %v2121
      %v2330 = vmul.f32 %v2238, %v2122
      %v2331 = vmul.f32 %v2242, %v2123
      %v2332 = vmul.f32 %v2242, %v2124
      %v2333 = vmul.f32 %v2242, %v2125
      %v2334 = vmul.f32 %v2242, %v2126
      %v2335 = vmul.f32 %v2242, %v2127
      %v2336 = vmul.f32 %v2242, %v2128
      %v2337 = vmul.f32 %v2242, %v2129
      %v2338 = vmul.f32 %v2242, %v2130
      %v2339 = vmul.f32 %v2246, %v2131
      %v2340 = vmul.f32 %v2246, %v2132
      %v2341 = vmul.f32 %v2246, %v2133
      %v2342 = vmul.f32 %v2246, %v2134
      %v2343 = vmul.f32 %v2246, %v2135
      %v2344 = vmul.f32 %v2246, %v2136
      %v2345 = vmul.f32 %v2246, %v2137
      %v2346 = vmul.f32 %v2246, %v2138
      %v2347 = vmul.f32 %v2250, %v2139
      %v2348 = vmul.f32 %v2250, %v2140
      %v2349 = vmul.f32 %v2250, %v2141
      %v2350 = vmul.f32 %v2250, %v2142
      %v2351 = vmul.f32 %v2250, %v2143
      %v2352 = vmul.f32 %v2250, %v2144
      %v2353 = vmul.f32 %v2250, %v2145
      %v2354 = vmul.f32 %v2250, %v2146
      %v2355 = vmul.f32 %v2254, %v2147
      %v2356 = vmul.f32 %v2254, %v2148
      %v2357 = vmul.f32 %v2254, %v2149
      %v2358 = vmul.f32 %v2254, %v2150
      %v2359 = vmul.f32 %v2254, %v2151
      %v2360 = vmul.f32 %v2254, %v2152
      %v2361 = vmul.f32 %v2254, %v2153
      %v2362 = vmul.f32 %v2254, %v2154
      %v2363 = vmul.f32 %v2258, %v2155
      %v2364 = vmul.f32 %v2258, %v2156
      %v2365 = vmul.f32 %v2258, %v2157
      %v2366 = vmul.f32 %v2258, %v2158
      %v2367 = vmul.f32 %v2258, %v2159
      %v2368 = vmul.f32 %v2258, %v2160
      %v2369 = vmul.f32 %v2258, %v2161
      %v2370 = vmul.f32 %v2258, %v2162
      %v2371 = vmul.f32 %v2262, %v2163
      %v2372 = vmul.f32 %v2262, %v2164
      %v2373 = vmul.f32 %v2262, %v2165
      %v2374 = vmul.f32 %v2262, %v2166
      %v2375 = vmul.f32 %v2262, %v2167
      %v2376 = vmul.f32 %v2262, %v2168
      %v2377 = vmul.f32 %v2262, %v2169
      %v2378 = vmul.f32 %v2262, %v2170
      %v2379 = vmul.f32 %v2266, %v2171
      %v2380 = vmul.f32 %v2266, %v2172
      %v2381 = vmul.f32 %v2266, %v2173
      %v2382 = vmul.f32 %v2266, %v2174
      %v2383 = vmul.f32 %v2266, %v2175
      %v2384 = vmul.f32 %v2266, %v2176
      %v2385 = vmul.f32 %v2266, %v2177
      %v2386 = vmul.f32 %v2266, %v2178
      %v2387 = vmul.f32 %v2270, %v2179
      %v2388 = vmul.f32 %v2270, %v2180
      %v2389 = vmul.f32 %v2270, %v2181
      %v2390 = vmul.f32 %v2270, %v2182
      %v2391 = vmul.f32 %v2270, %v2183
      %v2392 = vmul.f32 %v2270, %v2184
      %v2393 = vmul.f32 %v2270, %v2185
      %v2394 = vmul.f32 %v2270, %v2186
      %v2395 = vmul.f32 %v2274, %v2187
      %v2396 = vmul.f32 %v2274, %v2188
      %v2397 = vmul.f32 %v2274, %v2189
      %v2398 = vmul.f32 %v2274, %v2190
      %v2399 = vmul.f32 %v2274, %v2191
      %v2400 = vmul.f32 %v2274, %v2192
      %v2401 = vmul.f32 %v2274, %v2193
      %v2402 = vmul.f32 %v2274, %v2194
      %v2403 = vmul.f32 %v2278, %v2195
      %v2404 = vmul.f32 %v2278, %v2196
      %v2405 = vmul.f32 %v2278, %v2197
      %v2406 = vmul.f32 %v2278, %v2198
      %v2407 = vmul.f32 %v2278, %v2199
      %v2408 = vmul.f32 %v2278, %v2200
      %v2409 = vmul.f32 %v2278, %v2201
      %v2410 = vmul.f32 %v2278, %v2202
      %v2411 = vmul.f32 %v2282, %v2203
      %v2412 = vmul.f32 %v2282, %v2204
      %v2413 = vmul.f32 %v2282, %v2205
      %v2414 = vmul.f32 %v2282, %v2206
      %v2415 = vmul.f32 %v2282, %v2207
      %v2416 = vmul.f32 %v2282, %v2208
      %v2417 = vmul.f32 %v2282, %v2209
      %v2418 = vmul.f32 %v2282, %v2210
      %v2419 = vmul.f32 %v2286, %v2211
      %v2420 = vmul.f32 %v2286, %v2212
      %v2421 = vmul.f32 %v2286, %v2213
      %v2422 = vmul.f32 %v2286, %v2214
      %v2423 = vmul.f32 %v2286, %v2215
      %v2424 = vmul.f32 %v2286, %v2216
      %v2425 = vmul.f32 %v2286, %v2217
      %v2426 = vmul.f32 %v2286, %v2218
      %v2427 = vmul.f32 %v2290, %v2219
      %v2428 = vmul.f32 %v2290, %v2220
      %v2429 = vmul.f32 %v2290, %v2221
      %v2430 = vmul.f32 %v2290, %v2222
      %v2431 = vmul.f32 %v2290, %v2223
      %v2432 = vmul.f32 %v2290, %v2224
      %v2433 = vmul.f32 %v2290, %v2225
      %v2434 = vmul.f32 %v2290, %v2226
      %v2435 = vpack.c.bf16 %v2308, %v2307
      %v2436 = vpack.c.bf16 %v2310, %v2309
      %v2437 = vpack.c.bf16 %v2312, %v2311
      %v2438 = vpack.c.bf16 %v2314, %v2313
      %v2439 = vpack.c.bf16 %v2316, %v2315
      %v2440 = vpack.c.bf16 %v2318, %v2317
      %v2441 = vpack.c.bf16 %v2320, %v2319
      %v2442 = vpack.c.bf16 %v2322, %v2321
      %v2443 = vpack.c.bf16 %v2324, %v2323
      %v2444 = vpack.c.bf16 %v2326, %v2325
      %v2445 = vpack.c.bf16 %v2328, %v2327
      %v2446 = vpack.c.bf16 %v2330, %v2329
      %v2447 = vpack.c.bf16 %v2332, %v2331
      %v2448 = vpack.c.bf16 %v2334, %v2333
      %v2449 = vpack.c.bf16 %v2336, %v2335
      %v2450 = vpack.c.bf16 %v2338, %v2337
      %v2451 = vpack.c.bf16 %v2340, %v2339
      %v2452 = vpack.c.bf16 %v2342, %v2341
      %v2453 = vpack.c.bf16 %v2344, %v2343
      %v2454 = vpack.c.bf16 %v2346, %v2345
      %v2455 = vpack.c.bf16 %v2348, %v2347
      %v2456 = vpack.c.bf16 %v2350, %v2349
      %v2457 = vpack.c.bf16 %v2352, %v2351
      %v2458 = vpack.c.bf16 %v2354, %v2353
      %v2459 = vpack.c.bf16 %v2356, %v2355
      %v2460 = vpack.c.bf16 %v2358, %v2357
      %v2461 = vpack.c.bf16 %v2360, %v2359
      %v2462 = vpack.c.bf16 %v2362, %v2361
      %v2463 = vpack.c.bf16 %v2364, %v2363
      %v2464 = vpack.c.bf16 %v2366, %v2365
      %v2465 = vpack.c.bf16 %v2368, %v2367
      %v2466 = vpack.c.bf16 %v2370, %v2369
      %v2467 = vpack.c.bf16 %v2372, %v2371
      %v2468 = vpack.c.bf16 %v2374, %v2373
      %v2469 = vpack.c.bf16 %v2376, %v2375
      %v2470 = vpack.c.bf16 %v2378, %v2377
      %v2471 = vpack.c.bf16 %v2380, %v2379
      %v2472 = vpack.c.bf16 %v2382, %v2381
      %v2473 = vpack.c.bf16 %v2384, %v2383
      %v2474 = vpack.c.bf16 %v2386, %v2385
      %v2475 = vpack.c.bf16 %v2388, %v2387
      %v2476 = vpack.c.bf16 %v2390, %v2389
      %v2477 = vpack.c.bf16 %v2392, %v2391
      %v2478 = vpack.c.bf16 %v2394, %v2393
      %v2479 = vpack.c.bf16 %v2396, %v2395
      %v2480 = vpack.c.bf16 %v2398, %v2397
      %v2481 = vpack.c.bf16 %v2400, %v2399
      %v2482 = vpack.c.bf16 %v2402, %v2401
      %v2483 = vpack.c.bf16 %v2404, %v2403
      %v2484 = vpack.c.bf16 %v2406, %v2405
      %v2485 = vpack.c.bf16 %v2408, %v2407
      %v2486 = vpack.c.bf16 %v2410, %v2409
      %v2487 = vpack.c.bf16 %v2412, %v2411
      %v2488 = vpack.c.bf16 %v2414, %v2413
      %v2489 = vpack.c.bf16 %v2416, %v2415
      %v2490 = vpack.c.bf16 %v2418, %v2417
      %v2491 = vpack.c.bf16 %v2420, %v2419
      %v2492 = vpack.c.bf16 %v2422, %v2421
      %v2493 = vpack.c.bf16 %v2424, %v2423
      %v2494 = vpack.c.bf16 %v2426, %v2425
      %v2495 = vpack.c.bf16 %v2428, %v2427
      %v2496 = vpack.c.bf16 %v2430, %v2429
      %v2497 = vpack.c.bf16 %v2432, %v2431
      %v2498 = vpack.c.bf16 %v2434, %v2433
      %v2499 = vld [vmem:[%s6] sm:$0xf]
      %v2500 = vld [vmem:[%s6 + $0x4] sm:$0xf]
      %v2501 = vld [vmem:[%s6 + $0x8] sm:$0xf]
      %v2502 = vld [vmem:[%s6 + $0xc] sm:$0xf]
      %v2503 = vld [vmem:[%s6 + $0x10] sm:$0xf]
      %v2504 = vld [vmem:[%s6 + $0x14] sm:$0xf]
      %v2505 = vld [vmem:[%s6 + $0x18] sm:$0xf]
      %v2506 = vld [vmem:[%s6 + $0x1c] sm:$0xf]
      %v2507 = vld [vmem:[%s6 + $0x20] sm:$0xf]
      %v2508 = vld [vmem:[%s6 + $0x24] sm:$0xf]
      %v2509 = vld [vmem:[%s6 + $0x28] sm:$0xf]
      %v2510 = vld [vmem:[%s6 + $0x2c] sm:$0xf]
      %v2511 = vld [vmem:[%s6 + $0x30] sm:$0xf]
      %v2512 = vld [vmem:[%s6 + $0x34] sm:$0xf]
      %v2513 = vld [vmem:[%s6 + $0x38] sm:$0xf]
      %v2514 = vld [vmem:[%s6 + $0x3c] sm:$0xf]
      %v2531 = vunpack.c.l.b16 %v2499
      %v2532 = vunpack.c.l.b16 %v2500
      %v2533 = vunpack.c.l.b16 %v2501
      %v2534 = vunpack.c.l.b16 %v2502
      %v2535 = vunpack.c.l.b16 %v2503
      %v2536 = vunpack.c.l.b16 %v2504
      %v2537 = vunpack.c.l.b16 %v2505
      %v2538 = vunpack.c.l.b16 %v2506
      %v2539 = vunpack.c.l.b16 %v2507
      %v2540 = vunpack.c.l.b16 %v2508
      %v2541 = vunpack.c.l.b16 %v2509
      %v2542 = vunpack.c.l.b16 %v2510
      %v2543 = vunpack.c.l.b16 %v2511
      %v2544 = vunpack.c.l.b16 %v2512
      %v2545 = vunpack.c.l.b16 %v2513
      %v2546 = vunpack.c.l.b16 %v2514
      %v2547 = vpack.c.b16 %v2532, %v2531
      %v2548 = vpack.c.b16 %v2534, %v2533
      %v2549 = vpack.c.b16 %v2536, %v2535
      %v2550 = vpack.c.b16 %v2538, %v2537
      %v2551 = vpack.c.b16 %v2540, %v2539
      %v2552 = vpack.c.b16 %v2542, %v2541
      %v2553 = vpack.c.b16 %v2544, %v2543
      %v2554 = vpack.c.b16 %v2546, %v2545
      %2563 = vmatprep.subr.bf16.mxu0 0
      %2564 = vmatpush1.bf16.msra.mxu0 %v2554
      %2565 = vmatprep.subr.bf16.mxu0 0
      %2566 = vmatpush1.bf16.msra.mxu0 %v2553
      %2567 = vmatprep.subr.bf16.mxu0 0
      %2568 = vmatpush1.bf16.msra.mxu0 %v2552
      %2569 = vmatprep.subr.bf16.mxu0 0
      %2570 = vmatpush1.bf16.msra.mxu0 %v2551
      %2571 = vmatprep.subr.bf16.mxu0 0
      %2572 = vmatpush1.bf16.msra.mxu0 %v2550
      %2573 = vmatprep.subr.bf16.mxu0 0
      %2574 = vmatpush1.bf16.msra.mxu0 %v2549
      %2575 = vmatprep.subr.bf16.mxu0 0
      %2576 = vmatpush1.bf16.msra.mxu0 %v2548
      %2577 = vmatprep.subr.bf16.mxu0 0
      %2578 = vmatpush1.bf16.msra.mxu0 %v2547
      %2579 = vmatprep.subr.bf16.mxu0 0
      %2580 = vmatpush2.bf16.msra.mxu0 0
      %2581 = vmatprep.subr.bf16.mxu0 0
      %2582 = vmatpush2.bf16.msra.mxu0 0
      %2583 = vmatprep.subr.bf16.mxu0 0
      %2584 = vmatpush2.bf16.msra.mxu0 0
      %2585 = vmatprep.subr.bf16.mxu0 0
      %2586 = vmatpush2.bf16.msra.mxu0 0
      %2587 = vmatprep.subr.bf16.mxu0 0
      %2588 = vmatpush2.bf16.msra.mxu0 0
      %2589 = vmatprep.subr.bf16.mxu0 0
      %2590 = vmatpush2.bf16.msra.mxu0 0
      %2591 = vmatprep.subr.bf16.mxu0 0
      %2592 = vmatpush2.bf16.msra.mxu0 0
      %2593 = vmatprep.subr.bf16.mxu0 0
      %2594 = vmatpush2.bf16.msra.mxu0 0
      %2595 = vmatprep.mubr.bf16.mxu0 0
      %2596 = vmatmul.mubr.bf16.gmra.mxu0 %v2435
      %v2597 = vpop.f32.mrf.mxu0
      %v2598 = vadd.f32 0.0, %v2597
      %v2599 = vpop.f32.mrf.mxu0
      %v2600 = vpop.f32.mrf.mxu0
      %v2601 = vadd.f32 0.0, %v2600
      %v2602 = vpop.f32.mrf.mxu0
      %2603 = vmatprep.mubr.bf16.mxu0 0
      %2604 = vmatmul.mubr.bf16.gmra.mxu0 %v2436
      %v2605 = vpop.f32.mrf.mxu0
      %v2606 = vadd.f32 0.0, %v2605
      %v2607 = vpop.f32.mrf.mxu0
      %v2608 = vpop.f32.mrf.mxu0
      %v2609 = vadd.f32 0.0, %v2608
      %v2610 = vpop.f32.mrf.mxu0
      %2611 = vmatprep.mubr.bf16.mxu0 0
      %2612 = vmatmul.mubr.bf16.gmra.mxu0 %v2437
      %v2613 = vpop.f32.mrf.mxu0
      %v2614 = vadd.f32 0.0, %v2613
      %v2615 = vpop.f32.mrf.mxu0
      %v2616 = vpop.f32.mrf.mxu0
      %v2617 = vadd.f32 0.0, %v2616
      %v2618 = vpop.f32.mrf.mxu0
      %2619 = vmatprep.mubr.bf16.mxu0 0
      %2620 = vmatmul.mubr.bf16.gmra.mxu0 %v2438
      %v2621 = vpop.f32.mrf.mxu0
      %v2622 = vadd.f32 0.0, %v2621
      %v2623 = vpop.f32.mrf.mxu0
      %v2624 = vpop.f32.mrf.mxu0
      %v2625 = vadd.f32 0.0, %v2624
      %v2626 = vpop.f32.mrf.mxu0
      %2627 = vmatprep.mubr.bf16.mxu0 0
      %2628 = vmatmul.mubr.bf16.gmra.mxu0 %v2439
      %v2629 = vpop.f32.mrf.mxu0
      %v2630 = vadd.f32 0.0, %v2629
      %v2631 = vpop.f32.mrf.mxu0
      %v2632 = vpop.f32.mrf.mxu0
      %v2633 = vadd.f32 0.0, %v2632
      %v2634 = vpop.f32.mrf.mxu0
      %2635 = vmatprep.mubr.bf16.mxu0 0
      %2636 = vmatmul.mubr.bf16.gmra.mxu0 %v2440
      %v2637 = vpop.f32.mrf.mxu0
      %v2638 = vadd.f32 0.0, %v2637
      %v2639 = vpop.f32.mrf.mxu0
      %v2640 = vpop.f32.mrf.mxu0
      %v2641 = vadd.f32 0.0, %v2640
      %v2642 = vpop.f32.mrf.mxu0
      %2643 = vmatprep.mubr.bf16.mxu0 0
      %2644 = vmatmul.mubr.bf16.gmra.mxu0 %v2441
      %v2645 = vpop.f32.mrf.mxu0
      %v2646 = vadd.f32 0.0, %v2645
      %v2647 = vpop.f32.mrf.mxu0
      %v2648 = vpop.f32.mrf.mxu0
      %v2649 = vadd.f32 0.0, %v2648
      %v2650 = vpop.f32.mrf.mxu0
      %2651 = vmatprep.mubr.bf16.mxu0 0
      %2652 = vmatmul.mubr.bf16.gmra.mxu0 %v2442
      %v2653 = vpop.f32.mrf.mxu0
      %v2654 = vadd.f32 0.0, %v2653
      %v2655 = vpop.f32.mrf.mxu0
      %v2656 = vpop.f32.mrf.mxu0
      %v2657 = vadd.f32 0.0, %v2656
      %v2658 = vpop.f32.mrf.mxu0
      %2659 = vmatprep.mubr.bf16.mxu0 0
      %2660 = vmatmul.mubr.bf16.gmra.mxu0 %v2443
      %v2661 = vpop.f32.mrf.mxu0
      %v2662 = vadd.f32 0.0, %v2661
      %v2663 = vpop.f32.mrf.mxu0
      %v2664 = vpop.f32.mrf.mxu0
      %v2665 = vadd.f32 0.0, %v2664
      %v2666 = vpop.f32.mrf.mxu0
      %2667 = vmatprep.mubr.bf16.mxu0 0
      %2668 = vmatmul.mubr.bf16.gmra.mxu0 %v2444
      %v2669 = vpop.f32.mrf.mxu0
      %v2670 = vadd.f32 0.0, %v2669
      %v2671 = vpop.f32.mrf.mxu0
      %v2672 = vpop.f32.mrf.mxu0
      %v2673 = vadd.f32 0.0, %v2672
      %v2674 = vpop.f32.mrf.mxu0
      %2675 = vmatprep.mubr.bf16.mxu0 0
      %2676 = vmatmul.mubr.bf16.gmra.mxu0 %v2445
      %v2677 = vpop.f32.mrf.mxu0
      %v2678 = vadd.f32 0.0, %v2677
      %v2679 = vpop.f32.mrf.mxu0
      %v2680 = vpop.f32.mrf.mxu0
      %v2681 = vadd.f32 0.0, %v2680
      %v2682 = vpop.f32.mrf.mxu0
      %2683 = vmatprep.mubr.bf16.mxu0 0
      %2684 = vmatmul.mubr.bf16.gmra.mxu0 %v2446
      %v2685 = vpop.f32.mrf.mxu0
      %v2686 = vadd.f32 0.0, %v2685
      %v2687 = vpop.f32.mrf.mxu0
      %v2688 = vpop.f32.mrf.mxu0
      %v2689 = vadd.f32 0.0, %v2688
      %v2690 = vpop.f32.mrf.mxu0
      %2691 = vmatprep.mubr.bf16.mxu0 0
      %2692 = vmatmul.mubr.bf16.gmra.mxu0 %v2447
      %v2693 = vpop.f32.mrf.mxu0
      %v2694 = vadd.f32 0.0, %v2693
      %v2695 = vpop.f32.mrf.mxu0
      %v2696 = vpop.f32.mrf.mxu0
      %v2697 = vadd.f32 0.0, %v2696
      %v2698 = vpop.f32.mrf.mxu0
      %2699 = vmatprep.mubr.bf16.mxu0 0
      %2700 = vmatmul.mubr.bf16.gmra.mxu0 %v2448
      %v2701 = vpop.f32.mrf.mxu0
      %v2702 = vadd.f32 0.0, %v2701
      %v2703 = vpop.f32.mrf.mxu0
      %v2704 = vpop.f32.mrf.mxu0
      %v2705 = vadd.f32 0.0, %v2704
      %v2706 = vpop.f32.mrf.mxu0
      %2707 = vmatprep.mubr.bf16.mxu0 0
      %2708 = vmatmul.mubr.bf16.gmra.mxu0 %v2449
      %v2709 = vpop.f32.mrf.mxu0
      %v2710 = vadd.f32 0.0, %v2709
      %v2711 = vpop.f32.mrf.mxu0
      %v2712 = vpop.f32.mrf.mxu0
      %v2713 = vadd.f32 0.0, %v2712
      %v2714 = vpop.f32.mrf.mxu0
      %2715 = vmatprep.mubr.bf16.mxu0 0
      %2716 = vmatmul.mubr.bf16.gmra.mxu0 %v2450
      %v2717 = vpop.f32.mrf.mxu0
      %v2718 = vadd.f32 0.0, %v2717
      %v2719 = vpop.f32.mrf.mxu0
      %v2720 = vpop.f32.mrf.mxu0
      %v2721 = vadd.f32 0.0, %v2720
      %v2722 = vpop.f32.mrf.mxu0
      %2723 = vmatprep.mubr.bf16.mxu0 0
      %2724 = vmatmul.mubr.bf16.gmra.mxu0 %v2451
      %v2725 = vpop.f32.mrf.mxu0
      %v2726 = vadd.f32 0.0, %v2725
      %v2727 = vpop.f32.mrf.mxu0
      %v2728 = vpop.f32.mrf.mxu0
      %v2729 = vadd.f32 0.0, %v2728
      %v2730 = vpop.f32.mrf.mxu0
      %2731 = vmatprep.mubr.bf16.mxu0 0
      %2732 = vmatmul.mubr.bf16.gmra.mxu0 %v2452
      %v2733 = vpop.f32.mrf.mxu0
      %v2734 = vadd.f32 0.0, %v2733
      %v2735 = vpop.f32.mrf.mxu0
      %v2736 = vpop.f32.mrf.mxu0
      %v2737 = vadd.f32 0.0, %v2736
      %v2738 = vpop.f32.mrf.mxu0
      %2739 = vmatprep.mubr.bf16.mxu0 0
      %2740 = vmatmul.mubr.bf16.gmra.mxu0 %v2453
      %v2741 = vpop.f32.mrf.mxu0
      %v2742 = vadd.f32 0.0, %v2741
      %v2743 = vpop.f32.mrf.mxu0
      %v2744 = vpop.f32.mrf.mxu0
      %v2745 = vadd.f32 0.0, %v2744
      %v2746 = vpop.f32.mrf.mxu0
      %2747 = vmatprep.mubr.bf16.mxu0 0
      %2748 = vmatmul.mubr.bf16.gmra.mxu0 %v2454
      %v2749 = vpop.f32.mrf.mxu0
      %v2750 = vadd.f32 0.0, %v2749
      %v2751 = vpop.f32.mrf.mxu0
      %v2752 = vpop.f32.mrf.mxu0
      %v2753 = vadd.f32 0.0, %v2752
      %v2754 = vpop.f32.mrf.mxu0
      %2755 = vmatprep.mubr.bf16.mxu0 0
      %2756 = vmatmul.mubr.bf16.gmra.mxu0 %v2455
      %v2757 = vpop.f32.mrf.mxu0
      %v2758 = vadd.f32 0.0, %v2757
      %v2759 = vpop.f32.mrf.mxu0
      %v2760 = vpop.f32.mrf.mxu0
      %v2761 = vadd.f32 0.0, %v2760
      %v2762 = vpop.f32.mrf.mxu0
      %2763 = vmatprep.mubr.bf16.mxu0 0
      %2764 = vmatmul.mubr.bf16.gmra.mxu0 %v2456
      %v2765 = vpop.f32.mrf.mxu0
      %v2766 = vadd.f32 0.0, %v2765
      %v2767 = vpop.f32.mrf.mxu0
      %v2768 = vpop.f32.mrf.mxu0
      %v2769 = vadd.f32 0.0, %v2768
      %v2770 = vpop.f32.mrf.mxu0
      %2771 = vmatprep.mubr.bf16.mxu0 0
      %2772 = vmatmul.mubr.bf16.gmra.mxu0 %v2457
      %v2773 = vpop.f32.mrf.mxu0
      %v2774 = vadd.f32 0.0, %v2773
      %v2775 = vpop.f32.mrf.mxu0
      %v2776 = vpop.f32.mrf.mxu0
      %v2777 = vadd.f32 0.0, %v2776
      %v2778 = vpop.f32.mrf.mxu0
      %2779 = vmatprep.mubr.bf16.mxu0 0
      %2780 = vmatmul.mubr.bf16.gmra.mxu0 %v2458
      %v2781 = vpop.f32.mrf.mxu0
      %v2782 = vadd.f32 0.0, %v2781
      %v2783 = vpop.f32.mrf.mxu0
      %v2784 = vpop.f32.mrf.mxu0
      %v2785 = vadd.f32 0.0, %v2784
      %v2786 = vpop.f32.mrf.mxu0
      %2787 = vmatprep.mubr.bf16.mxu0 0
      %2788 = vmatmul.mubr.bf16.gmra.mxu0 %v2459
      %v2789 = vpop.f32.mrf.mxu0
      %v2790 = vadd.f32 0.0, %v2789
      %v2791 = vpop.f32.mrf.mxu0
      %v2792 = vpop.f32.mrf.mxu0
      %v2793 = vadd.f32 0.0, %v2792
      %v2794 = vpop.f32.mrf.mxu0
      %2795 = vmatprep.mubr.bf16.mxu0 0
      %2796 = vmatmul.mubr.bf16.gmra.mxu0 %v2460
      %v2797 = vpop.f32.mrf.mxu0
      %v2798 = vadd.f32 0.0, %v2797
      %v2799 = vpop.f32.mrf.mxu0
      %v2800 = vpop.f32.mrf.mxu0
      %v2801 = vadd.f32 0.0, %v2800
      %v2802 = vpop.f32.mrf.mxu0
      %2803 = vmatprep.mubr.bf16.mxu0 0
      %2804 = vmatmul.mubr.bf16.gmra.mxu0 %v2461
      %v2805 = vpop.f32.mrf.mxu0
      %v2806 = vadd.f32 0.0, %v2805
      %v2807 = vpop.f32.mrf.mxu0
      %v2808 = vpop.f32.mrf.mxu0
      %v2809 = vadd.f32 0.0, %v2808
      %v2810 = vpop.f32.mrf.mxu0
      %2811 = vmatprep.mubr.bf16.mxu0 0
      %2812 = vmatmul.mubr.bf16.gmra.mxu0 %v2462
      %v2813 = vpop.f32.mrf.mxu0
      %v2814 = vadd.f32 0.0, %v2813
      %v2815 = vpop.f32.mrf.mxu0
      %v2816 = vpop.f32.mrf.mxu0
      %v2817 = vadd.f32 0.0, %v2816
      %v2818 = vpop.f32.mrf.mxu0
      %2819 = vmatprep.mubr.bf16.mxu0 0
      %2820 = vmatmul.mubr.bf16.gmra.mxu0 %v2463
      %v2821 = vpop.f32.mrf.mxu0
      %v2822 = vadd.f32 0.0, %v2821
      %v2823 = vpop.f32.mrf.mxu0
      %v2824 = vpop.f32.mrf.mxu0
      %v2825 = vadd.f32 0.0, %v2824
      %v2826 = vpop.f32.mrf.mxu0
      %2827 = vmatprep.mubr.bf16.mxu0 0
      %2828 = vmatmul.mubr.bf16.gmra.mxu0 %v2464
      %v2829 = vpop.f32.mrf.mxu0
      %v2830 = vadd.f32 0.0, %v2829
      %v2831 = vpop.f32.mrf.mxu0
      %v2832 = vpop.f32.mrf.mxu0
      %v2833 = vadd.f32 0.0, %v2832
      %v2834 = vpop.f32.mrf.mxu0
      %2835 = vmatprep.mubr.bf16.mxu0 0
      %2836 = vmatmul.mubr.bf16.gmra.mxu0 %v2465
      %v2837 = vpop.f32.mrf.mxu0
      %v2838 = vadd.f32 0.0, %v2837
      %v2839 = vpop.f32.mrf.mxu0
      %v2840 = vpop.f32.mrf.mxu0
      %v2841 = vadd.f32 0.0, %v2840
      %v2842 = vpop.f32.mrf.mxu0
      %2843 = vmatprep.mubr.bf16.mxu0 0
      %2844 = vmatmul.mubr.bf16.gmra.mxu0 %v2466
      %v2845 = vpop.f32.mrf.mxu0
      %v2846 = vadd.f32 0.0, %v2845
      %v2847 = vpop.f32.mrf.mxu0
      %v2848 = vpop.f32.mrf.mxu0
      %v2849 = vadd.f32 0.0, %v2848
      %v2850 = vpop.f32.mrf.mxu0
      %2851 = vmatprep.mubr.bf16.mxu0 0
      %2852 = vmatmul.mubr.bf16.gmra.mxu0 %v2467
      %v2853 = vpop.f32.mrf.mxu0
      %v2854 = vadd.f32 0.0, %v2853
      %v2855 = vpop.f32.mrf.mxu0
      %v2856 = vpop.f32.mrf.mxu0
      %v2857 = vadd.f32 0.0, %v2856
      %v2858 = vpop.f32.mrf.mxu0
      %2859 = vmatprep.mubr.bf16.mxu0 0
      %2860 = vmatmul.mubr.bf16.gmra.mxu0 %v2468
      %v2861 = vpop.f32.mrf.mxu0
      %v2862 = vadd.f32 0.0, %v2861
      %v2863 = vpop.f32.mrf.mxu0
      %v2864 = vpop.f32.mrf.mxu0
      %v2865 = vadd.f32 0.0, %v2864
      %v2866 = vpop.f32.mrf.mxu0
      %2867 = vmatprep.mubr.bf16.mxu0 0
      %2868 = vmatmul.mubr.bf16.gmra.mxu0 %v2469
      %v2869 = vpop.f32.mrf.mxu0
      %v2870 = vadd.f32 0.0, %v2869
      %v2871 = vpop.f32.mrf.mxu0
      %v2872 = vpop.f32.mrf.mxu0
      %v2873 = vadd.f32 0.0, %v2872
      %v2874 = vpop.f32.mrf.mxu0
      %2875 = vmatprep.mubr.bf16.mxu0 0
      %2876 = vmatmul.mubr.bf16.gmra.mxu0 %v2470
      %v2877 = vpop.f32.mrf.mxu0
      %v2878 = vadd.f32 0.0, %v2877
      %v2879 = vpop.f32.mrf.mxu0
      %v2880 = vpop.f32.mrf.mxu0
      %v2881 = vadd.f32 0.0, %v2880
      %v2882 = vpop.f32.mrf.mxu0
      %2883 = vmatprep.mubr.bf16.mxu0 0
      %2884 = vmatmul.mubr.bf16.gmra.mxu0 %v2471
      %v2885 = vpop.f32.mrf.mxu0
      %v2886 = vadd.f32 0.0, %v2885
      %v2887 = vpop.f32.mrf.mxu0
      %v2888 = vpop.f32.mrf.mxu0
      %v2889 = vadd.f32 0.0, %v2888
      %v2890 = vpop.f32.mrf.mxu0
      %2891 = vmatprep.mubr.bf16.mxu0 0
      %2892 = vmatmul.mubr.bf16.gmra.mxu0 %v2472
      %v2893 = vpop.f32.mrf.mxu0
      %v2894 = vadd.f32 0.0, %v2893
      %v2895 = vpop.f32.mrf.mxu0
      %v2896 = vpop.f32.mrf.mxu0
      %v2897 = vadd.f32 0.0, %v2896
      %v2898 = vpop.f32.mrf.mxu0
      %2899 = vmatprep.mubr.bf16.mxu0 0
      %2900 = vmatmul.mubr.bf16.gmra.mxu0 %v2473
      %v2901 = vpop.f32.mrf.mxu0
      %v2902 = vadd.f32 0.0, %v2901
      %v2903 = vpop.f32.mrf.mxu0
      %v2904 = vpop.f32.mrf.mxu0
      %v2905 = vadd.f32 0.0, %v2904
      %v2906 = vpop.f32.mrf.mxu0
      %2907 = vmatprep.mubr.bf16.mxu0 0
      %2908 = vmatmul.mubr.bf16.gmra.mxu0 %v2474
      %v2909 = vpop.f32.mrf.mxu0
      %v2910 = vadd.f32 0.0, %v2909
      %v2911 = vpop.f32.mrf.mxu0
      %v2912 = vpop.f32.mrf.mxu0
      %v2913 = vadd.f32 0.0, %v2912
      %v2914 = vpop.f32.mrf.mxu0
      %2915 = vmatprep.mubr.bf16.mxu0 0
      %2916 = vmatmul.mubr.bf16.gmra.mxu0 %v2475
      %v2917 = vpop.f32.mrf.mxu0
      %v2918 = vadd.f32 0.0, %v2917
      %v2919 = vpop.f32.mrf.mxu0
      %v2920 = vpop.f32.mrf.mxu0
      %v2921 = vadd.f32 0.0, %v2920
      %v2922 = vpop.f32.mrf.mxu0
      %2923 = vmatprep.mubr.bf16.mxu0 0
      %2924 = vmatmul.mubr.bf16.gmra.mxu0 %v2476
      %v2925 = vpop.f32.mrf.mxu0
      %v2926 = vadd.f32 0.0, %v2925
      %v2927 = vpop.f32.mrf.mxu0
      %v2928 = vpop.f32.mrf.mxu0
      %v2929 = vadd.f32 0.0, %v2928
      %v2930 = vpop.f32.mrf.mxu0
      %2931 = vmatprep.mubr.bf16.mxu0 0
      %2932 = vmatmul.mubr.bf16.gmra.mxu0 %v2477
      %v2933 = vpop.f32.mrf.mxu0
      %v2934 = vadd.f32 0.0, %v2933
      %v2935 = vpop.f32.mrf.mxu0
      %v2936 = vpop.f32.mrf.mxu0
      %v2937 = vadd.f32 0.0, %v2936
      %v2938 = vpop.f32.mrf.mxu0
      %2939 = vmatprep.mubr.bf16.mxu0 0
      %2940 = vmatmul.mubr.bf16.gmra.mxu0 %v2478
      %v2941 = vpop.f32.mrf.mxu0
      %v2942 = vadd.f32 0.0, %v2941
      %v2943 = vpop.f32.mrf.mxu0
      %v2944 = vpop.f32.mrf.mxu0
      %v2945 = vadd.f32 0.0, %v2944
      %v2946 = vpop.f32.mrf.mxu0
      %2947 = vmatprep.mubr.bf16.mxu0 0
      %2948 = vmatmul.mubr.bf16.gmra.mxu0 %v2479
      %v2949 = vpop.f32.mrf.mxu0
      %v2950 = vadd.f32 0.0, %v2949
      %v2951 = vpop.f32.mrf.mxu0
      %v2952 = vpop.f32.mrf.mxu0
      %v2953 = vadd.f32 0.0, %v2952
      %v2954 = vpop.f32.mrf.mxu0
      %2955 = vmatprep.mubr.bf16.mxu0 0
      %2956 = vmatmul.mubr.bf16.gmra.mxu0 %v2480
      %v2957 = vpop.f32.mrf.mxu0
      %v2958 = vadd.f32 0.0, %v2957
      %v2959 = vpop.f32.mrf.mxu0
      %v2960 = vpop.f32.mrf.mxu0
      %v2961 = vadd.f32 0.0, %v2960
      %v2962 = vpop.f32.mrf.mxu0
      %2963 = vmatprep.mubr.bf16.mxu0 0
      %2964 = vmatmul.mubr.bf16.gmra.mxu0 %v2481
      %v2965 = vpop.f32.mrf.mxu0
      %v2966 = vadd.f32 0.0, %v2965
      %v2967 = vpop.f32.mrf.mxu0
      %v2968 = vpop.f32.mrf.mxu0
      %v2969 = vadd.f32 0.0, %v2968
      %v2970 = vpop.f32.mrf.mxu0
      %2971 = vmatprep.mubr.bf16.mxu0 0
      %2972 = vmatmul.mubr.bf16.gmra.mxu0 %v2482
      %v2973 = vpop.f32.mrf.mxu0
      %v2974 = vadd.f32 0.0, %v2973
      %v2975 = vpop.f32.mrf.mxu0
      %v2976 = vpop.f32.mrf.mxu0
      %v2977 = vadd.f32 0.0, %v2976
      %v2978 = vpop.f32.mrf.mxu0
      %2979 = vmatprep.mubr.bf16.mxu0 0
      %2980 = vmatmul.mubr.bf16.gmra.mxu0 %v2483
      %v2981 = vpop.f32.mrf.mxu0
      %v2982 = vadd.f32 0.0, %v2981
      %v2983 = vpop.f32.mrf.mxu0
      %v2984 = vpop.f32.mrf.mxu0
      %v2985 = vadd.f32 0.0, %v2984
      %v2986 = vpop.f32.mrf.mxu0
      %2987 = vmatprep.mubr.bf16.mxu0 0
      %2988 = vmatmul.mubr.bf16.gmra.mxu0 %v2484
      %v2989 = vpop.f32.mrf.mxu0
      %v2990 = vadd.f32 0.0, %v2989
      %v2991 = vpop.f32.mrf.mxu0
      %v2992 = vpop.f32.mrf.mxu0
      %v2993 = vadd.f32 0.0, %v2992
      %v2994 = vpop.f32.mrf.mxu0
      %2995 = vmatprep.mubr.bf16.mxu0 0
      %2996 = vmatmul.mubr.bf16.gmra.mxu0 %v2485
      %v2997 = vpop.f32.mrf.mxu0
      %v2998 = vadd.f32 0.0, %v2997
      %v2999 = vpop.f32.mrf.mxu0
      %v3000 = vpop.f32.mrf.mxu0
      %v3001 = vadd.f32 0.0, %v3000
      %v3002 = vpop.f32.mrf.mxu0
      %3003 = vmatprep.mubr.bf16.mxu0 0
      %3004 = vmatmul.mubr.bf16.gmra.mxu0 %v2486
      %v3005 = vpop.f32.mrf.mxu0
      %v3006 = vadd.f32 0.0, %v3005
      %v3007 = vpop.f32.mrf.mxu0
      %v3008 = vpop.f32.mrf.mxu0
      %v3009 = vadd.f32 0.0, %v3008
      %v3010 = vpop.f32.mrf.mxu0
      %3011 = vmatprep.mubr.bf16.mxu0 0
      %3012 = vmatmul.mubr.bf16.gmra.mxu0 %v2487
      %v3013 = vpop.f32.mrf.mxu0
      %v3014 = vadd.f32 0.0, %v3013
      %v3015 = vpop.f32.mrf.mxu0
      %v3016 = vpop.f32.mrf.mxu0
      %v3017 = vadd.f32 0.0, %v3016
      %v3018 = vpop.f32.mrf.mxu0
      %3019 = vmatprep.mubr.bf16.mxu0 0
      %3020 = vmatmul.mubr.bf16.gmra.mxu0 %v2488
      %v3021 = vpop.f32.mrf.mxu0
      %v3022 = vadd.f32 0.0, %v3021
      %v3023 = vpop.f32.mrf.mxu0
      %v3024 = vpop.f32.mrf.mxu0
      %v3025 = vadd.f32 0.0, %v3024
      %v3026 = vpop.f32.mrf.mxu0
      %3027 = vmatprep.mubr.bf16.mxu0 0
      %3028 = vmatmul.mubr.bf16.gmra.mxu0 %v2489
      %v3029 = vpop.f32.mrf.mxu0
      %v3030 = vadd.f32 0.0, %v3029
      %v3031 = vpop.f32.mrf.mxu0
      %v3032 = vpop.f32.mrf.mxu0
      %v3033 = vadd.f32 0.0, %v3032
      %v3034 = vpop.f32.mrf.mxu0
      %3035 = vmatprep.mubr.bf16.mxu0 0
      %3036 = vmatmul.mubr.bf16.gmra.mxu0 %v2490
      %v3037 = vpop.f32.mrf.mxu0
      %v3038 = vadd.f32 0.0, %v3037
      %v3039 = vpop.f32.mrf.mxu0
      %v3040 = vpop.f32.mrf.mxu0
      %v3041 = vadd.f32 0.0, %v3040
      %v3042 = vpop.f32.mrf.mxu0
      %3043 = vmatprep.mubr.bf16.mxu0 0
      %3044 = vmatmul.mubr.bf16.gmra.mxu0 %v2491
      %v3045 = vpop.f32.mrf.mxu0
      %v3046 = vadd.f32 0.0, %v3045
      %v3047 = vpop.f32.mrf.mxu0
      %v3048 = vpop.f32.mrf.mxu0
      %v3049 = vadd.f32 0.0, %v3048
      %v3050 = vpop.f32.mrf.mxu0
      %3051 = vmatprep.mubr.bf16.mxu0 0
      %3052 = vmatmul.mubr.bf16.gmra.mxu0 %v2492
      %v3053 = vpop.f32.mrf.mxu0
      %v3054 = vadd.f32 0.0, %v3053
      %v3055 = vpop.f32.mrf.mxu0
      %v3056 = vpop.f32.mrf.mxu0
      %v3057 = vadd.f32 0.0, %v3056
      %v3058 = vpop.f32.mrf.mxu0
      %3059 = vmatprep.mubr.bf16.mxu0 0
      %3060 = vmatmul.mubr.bf16.gmra.mxu0 %v2493
      %v3061 = vpop.f32.mrf.mxu0
      %v3062 = vadd.f32 0.0, %v3061
      %v3063 = vpop.f32.mrf.mxu0
      %v3064 = vpop.f32.mrf.mxu0
      %v3065 = vadd.f32 0.0, %v3064
      %v3066 = vpop.f32.mrf.mxu0
      %3067 = vmatprep.mubr.bf16.mxu0 0
      %3068 = vmatmul.mubr.bf16.gmra.mxu0 %v2494
      %v3069 = vpop.f32.mrf.mxu0
      %v3070 = vadd.f32 0.0, %v3069
      %v3071 = vpop.f32.mrf.mxu0
      %v3072 = vpop.f32.mrf.mxu0
      %v3073 = vadd.f32 0.0, %v3072
      %v3074 = vpop.f32.mrf.mxu0
      %3075 = vmatprep.mubr.bf16.mxu0 0
      %3076 = vmatmul.mubr.bf16.gmra.mxu0 %v2495
      %v3077 = vpop.f32.mrf.mxu0
      %v3078 = vadd.f32 0.0, %v3077
      %v3079 = vpop.f32.mrf.mxu0
      %v3080 = vpop.f32.mrf.mxu0
      %v3081 = vadd.f32 0.0, %v3080
      %v3082 = vpop.f32.mrf.mxu0
      %3083 = vmatprep.mubr.bf16.mxu0 0
      %3084 = vmatmul.mubr.bf16.gmra.mxu0 %v2496
      %v3085 = vpop.f32.mrf.mxu0
      %v3086 = vadd.f32 0.0, %v3085
      %v3087 = vpop.f32.mrf.mxu0
      %v3088 = vpop.f32.mrf.mxu0
      %v3089 = vadd.f32 0.0, %v3088
      %v3090 = vpop.f32.mrf.mxu0
      %3091 = vmatprep.mubr.bf16.mxu0 0
      %3092 = vmatmul.mubr.bf16.gmra.mxu0 %v2497
      %v3093 = vpop.f32.mrf.mxu0
      %v3094 = vadd.f32 0.0, %v3093
      %v3095 = vpop.f32.mrf.mxu0
      %v3096 = vpop.f32.mrf.mxu0
      %v3097 = vadd.f32 0.0, %v3096
      %v3098 = vpop.f32.mrf.mxu0
      %3099 = vmatprep.mubr.bf16.mxu0 0
      %3100 = vmatmul.mubr.bf16.gmra.mxu0 %v2498
      %v3101 = vpop.f32.mrf.mxu0
      %v3102 = vadd.f32 0.0, %v3101
      %v3103 = vpop.f32.mrf.mxu0
      %v3104 = vpop.f32.mrf.mxu0
      %v3105 = vadd.f32 0.0, %v3104
      %v3106 = vpop.f32.mrf.mxu0
      %3107 = vdwg.mxu0
      %v3108 = vmax.f32 %v2598, %v2601
      %v3109 = vmax.f32 %v3108, %v2606
      %v3110 = vmax.f32 %v3109, %v2609
      %v3111 = vmax.f32 %v3110, %v2614
      %v3112 = vmax.f32 %v3111, %v2617
      %v3113 = vmax.f32 %v3112, %v2622
      %v3114 = vmax.f32 %v3113, %v2625
      %v3115 = vrot.slane %v3114, 4
      %v3116 = vmax.f32 %v3114, %v3115
      %v3117 = vrot.slane %v3116, 2
      %v3118 = vmax.f32 %v3116, %v3117
      %v3119 = vrot.slane %v3118, 1
      %v3120 = vmax.f32 %v3118, %v3119
      %v3121 = vmax.f32 %v2630, %v2633
      %v3122 = vmax.f32 %v3121, %v2638
      %v3123 = vmax.f32 %v3122, %v2641
      %v3124 = vmax.f32 %v3123, %v2646
      %v3125 = vmax.f32 %v3124, %v2649
      %v3126 = vmax.f32 %v3125, %v2654
      %v3127 = vmax.f32 %v3126, %v2657
      %v3128 = vrot.slane %v3127, 4
      %v3129 = vmax.f32 %v3127, %v3128
      %v3130 = vrot.slane %v3129, 2
      %v3131 = vmax.f32 %v3129, %v3130
      %v3132 = vrot.slane %v3131, 1
      %v3133 = vmax.f32 %v3131, %v3132
      %v3134 = vmax.f32 %v2662, %v2665
      %v3135 = vmax.f32 %v3134, %v2670
      %v3136 = vmax.f32 %v3135, %v2673
      %v3137 = vmax.f32 %v3136, %v2678
      %v3138 = vmax.f32 %v3137, %v2681
      %v3139 = vmax.f32 %v3138, %v2686
      %v3140 = vmax.f32 %v3139, %v2689
      %v3141 = vrot.slane %v3140, 4
      %v3142 = vmax.f32 %v3140, %v3141
      %v3143 = vrot.slane %v3142, 2
      %v3144 = vmax.f32 %v3142, %v3143
      %v3145 = vrot.slane %v3144, 1
      %v3146 = vmax.f32 %v3144, %v3145
      %v3147 = vmax.f32 %v2694, %v2697
      %v3148 = vmax.f32 %v3147, %v2702
      %v3149 = vmax.f32 %v3148, %v2705
      %v3150 = vmax.f32 %v3149, %v2710
      %v3151 = vmax.f32 %v3150, %v2713
      %v3152 = vmax.f32 %v3151, %v2718
      %v3153 = vmax.f32 %v3152, %v2721
      %v3154 = vrot.slane %v3153, 4
      %v3155 = vmax.f32 %v3153, %v3154
      %v3156 = vrot.slane %v3155, 2
      %v3157 = vmax.f32 %v3155, %v3156
      %v3158 = vrot.slane %v3157, 1
      %v3159 = vmax.f32 %v3157, %v3158
      %v3160 = vmax.f32 %v2726, %v2729
      %v3161 = vmax.f32 %v3160, %v2734
      %v3162 = vmax.f32 %v3161, %v2737
      %v3163 = vmax.f32 %v3162, %v2742
      %v3164 = vmax.f32 %v3163, %v2745
      %v3165 = vmax.f32 %v3164, %v2750
      %v3166 = vmax.f32 %v3165, %v2753
      %v3167 = vrot.slane %v3166, 4
      %v3168 = vmax.f32 %v3166, %v3167
      %v3169 = vrot.slane %v3168, 2
      %v3170 = vmax.f32 %v3168, %v3169
      %v3171 = vrot.slane %v3170, 1
      %v3172 = vmax.f32 %v3170, %v3171
      %v3173 = vmax.f32 %v2758, %v2761
      %v3174 = vmax.f32 %v3173, %v2766
      %v3175 = vmax.f32 %v3174, %v2769
      %v3176 = vmax.f32 %v3175, %v2774
      %v3177 = vmax.f32 %v3176, %v2777
      %v3178 = vmax.f32 %v3177, %v2782
      %v3179 = vmax.f32 %v3178, %v2785
      %v3180 = vrot.slane %v3179, 4
      %v3181 = vmax.f32 %v3179, %v3180
      %v3182 = vrot.slane %v3181, 2
      %v3183 = vmax.f32 %v3181, %v3182
      %v3184 = vrot.slane %v3183, 1
      %v3185 = vmax.f32 %v3183, %v3184
      %v3186 = vmax.f32 %v2790, %v2793
      %v3187 = vmax.f32 %v3186, %v2798
      %v3188 = vmax.f32 %v3187, %v2801
      %v3189 = vmax.f32 %v3188, %v2806
      %v3190 = vmax.f32 %v3189, %v2809
      %v3191 = vmax.f32 %v3190, %v2814
      %v3192 = vmax.f32 %v3191, %v2817
      %v3193 = vrot.slane %v3192, 4
      %v3194 = vmax.f32 %v3192, %v3193
      %v3195 = vrot.slane %v3194, 2
      %v3196 = vmax.f32 %v3194, %v3195
      %v3197 = vrot.slane %v3196, 1
      %v3198 = vmax.f32 %v3196, %v3197
      %v3199 = vmax.f32 %v2822, %v2825
      %v3200 = vmax.f32 %v3199, %v2830
      %v3201 = vmax.f32 %v3200, %v2833
      %v3202 = vmax.f32 %v3201, %v2838
      %v3203 = vmax.f32 %v3202, %v2841
      %v3204 = vmax.f32 %v3203, %v2846
      %v3205 = vmax.f32 %v3204, %v2849
      %v3206 = vrot.slane %v3205, 4
      %v3207 = vmax.f32 %v3205, %v3206
      %v3208 = vrot.slane %v3207, 2
      %v3209 = vmax.f32 %v3207, %v3208
      %v3210 = vrot.slane %v3209, 1
      %v3211 = vmax.f32 %v3209, %v3210
      %v3212 = vmax.f32 %v2854, %v2857
      %v3213 = vmax.f32 %v3212, %v2862
      %v3214 = vmax.f32 %v3213, %v2865
      %v3215 = vmax.f32 %v3214, %v2870
      %v3216 = vmax.f32 %v3215, %v2873
      %v3217 = vmax.f32 %v3216, %v2878
      %v3218 = vmax.f32 %v3217, %v2881
      %v3219 = vrot.slane %v3218, 4
      %v3220 = vmax.f32 %v3218, %v3219
      %v3221 = vrot.slane %v3220, 2
      %v3222 = vmax.f32 %v3220, %v3221
      %v3223 = vrot.slane %v3222, 1
      %v3224 = vmax.f32 %v3222, %v3223
      %v3225 = vmax.f32 %v2886, %v2889
      %v3226 = vmax.f32 %v3225, %v2894
      %v3227 = vmax.f32 %v3226, %v2897
      %v3228 = vmax.f32 %v3227, %v2902
      %v3229 = vmax.f32 %v3228, %v2905
      %v3230 = vmax.f32 %v3229, %v2910
      %v3231 = vmax.f32 %v3230, %v2913
      %v3232 = vrot.slane %v3231, 4
      %v3233 = vmax.f32 %v3231, %v3232
      %v3234 = vrot.slane %v3233, 2
      %v3235 = vmax.f32 %v3233, %v3234
      %v3236 = vrot.slane %v3235, 1
      %v3237 = vmax.f32 %v3235, %v3236
      %v3238 = vmax.f32 %v2918, %v2921
      %v3239 = vmax.f32 %v3238, %v2926
      %v3240 = vmax.f32 %v3239, %v2929
      %v3241 = vmax.f32 %v3240, %v2934
      %v3242 = vmax.f32 %v3241, %v2937
      %v3243 = vmax.f32 %v3242, %v2942
      %v3244 = vmax.f32 %v3243, %v2945
      %v3245 = vrot.slane %v3244, 4
      %v3246 = vmax.f32 %v3244, %v3245
      %v3247 = vrot.slane %v3246, 2
      %v3248 = vmax.f32 %v3246, %v3247
      %v3249 = vrot.slane %v3248, 1
      %v3250 = vmax.f32 %v3248, %v3249
      %v3251 = vmax.f32 %v2950, %v2953
      %v3252 = vmax.f32 %v3251, %v2958
      %v3253 = vmax.f32 %v3252, %v2961
      %v3254 = vmax.f32 %v3253, %v2966
      %v3255 = vmax.f32 %v3254, %v2969
      %v3256 = vmax.f32 %v3255, %v2974
      %v3257 = vmax.f32 %v3256, %v2977
      %v3258 = vrot.slane %v3257, 4
      %v3259 = vmax.f32 %v3257, %v3258
      %v3260 = vrot.slane %v3259, 2
      %v3261 = vmax.f32 %v3259, %v3260
      %v3262 = vrot.slane %v3261, 1
      %v3263 = vmax.f32 %v3261, %v3262
      %v3264 = vmax.f32 %v2982, %v2985
      %v3265 = vmax.f32 %v3264, %v2990
      %v3266 = vmax.f32 %v3265, %v2993
      %v3267 = vmax.f32 %v3266, %v2998
      %v3268 = vmax.f32 %v3267, %v3001
      %v3269 = vmax.f32 %v3268, %v3006
      %v3270 = vmax.f32 %v3269, %v3009
      %v3271 = vrot.slane %v3270, 4
      %v3272 = vmax.f32 %v3270, %v3271
      %v3273 = vrot.slane %v3272, 2
      %v3274 = vmax.f32 %v3272, %v3273
      %v3275 = vrot.slane %v3274, 1
      %v3276 = vmax.f32 %v3274, %v3275
      %v3277 = vmax.f32 %v3014, %v3017
      %v3278 = vmax.f32 %v3277, %v3022
      %v3279 = vmax.f32 %v3278, %v3025
      %v3280 = vmax.f32 %v3279, %v3030
      %v3281 = vmax.f32 %v3280, %v3033
      %v3282 = vmax.f32 %v3281, %v3038
      %v3283 = vmax.f32 %v3282, %v3041
      %v3284 = vrot.slane %v3283, 4
      %v3285 = vmax.f32 %v3283, %v3284
      %v3286 = vrot.slane %v3285, 2
      %v3287 = vmax.f32 %v3285, %v3286
      %v3288 = vrot.slane %v3287, 1
      %v3289 = vmax.f32 %v3287, %v3288
      %v3290 = vmax.f32 %v3046, %v3049
      %v3291 = vmax.f32 %v3290, %v3054
      %v3292 = vmax.f32 %v3291, %v3057
      %v3293 = vmax.f32 %v3292, %v3062
      %v3294 = vmax.f32 %v3293, %v3065
      %v3295 = vmax.f32 %v3294, %v3070
      %v3296 = vmax.f32 %v3295, %v3073
      %v3297 = vrot.slane %v3296, 4
      %v3298 = vmax.f32 %v3296, %v3297
      %v3299 = vrot.slane %v3298, 2
      %v3300 = vmax.f32 %v3298, %v3299
      %v3301 = vrot.slane %v3300, 1
      %v3302 = vmax.f32 %v3300, %v3301
      %v3303 = vmax.f32 %v3078, %v3081
      %v3304 = vmax.f32 %v3303, %v3086
      %v3305 = vmax.f32 %v3304, %v3089
      %v3306 = vmax.f32 %v3305, %v3094
      %v3307 = vmax.f32 %v3306, %v3097
      %v3308 = vmax.f32 %v3307, %v3102
      %v3309 = vmax.f32 %v3308, %v3105
      %v3310 = vrot.slane %v3309, 4
      %v3311 = vmax.f32 %v3309, %v3310
      %v3312 = vrot.slane %v3311, 2
      %v3313 = vmax.f32 %v3311, %v3312
      %v3314 = vrot.slane %v3313, 1
      %v3315 = vmax.f32 %v3313, %v3314
      %v3316 = vsub.f32 %v2598, %v3120
      %v3317 = vsub.f32 %v2601, %v3120
      %v3318 = vsub.f32 %v2606, %v3120
      %v3319 = vsub.f32 %v2609, %v3120
      %v3320 = vsub.f32 %v2614, %v3120
      %v3321 = vsub.f32 %v2617, %v3120
      %v3322 = vsub.f32 %v2622, %v3120
      %v3323 = vsub.f32 %v2625, %v3120
      %v3324 = vsub.f32 %v2630, %v3133
      %v3325 = vsub.f32 %v2633, %v3133
      %v3326 = vsub.f32 %v2638, %v3133
      %v3327 = vsub.f32 %v2641, %v3133
      %v3328 = vsub.f32 %v2646, %v3133
      %v3329 = vsub.f32 %v2649, %v3133
      %v3330 = vsub.f32 %v2654, %v3133
      %v3331 = vsub.f32 %v2657, %v3133
      %v3332 = vsub.f32 %v2662, %v3146
      %v3333 = vsub.f32 %v2665, %v3146
      %v3334 = vsub.f32 %v2670, %v3146
      %v3335 = vsub.f32 %v2673, %v3146
      %v3336 = vsub.f32 %v2678, %v3146
      %v3337 = vsub.f32 %v2681, %v3146
      %v3338 = vsub.f32 %v2686, %v3146
      %v3339 = vsub.f32 %v2689, %v3146
      %v3340 = vsub.f32 %v2694, %v3159
      %v3341 = vsub.f32 %v2697, %v3159
      %v3342 = vsub.f32 %v2702, %v3159
      %v3343 = vsub.f32 %v2705, %v3159
      %v3344 = vsub.f32 %v2710, %v3159
      %v3345 = vsub.f32 %v2713, %v3159
      %v3346 = vsub.f32 %v2718, %v3159
      %v3347 = vsub.f32 %v2721, %v3159
      %v3348 = vsub.f32 %v2726, %v3172
      %v3349 = vsub.f32 %v2729, %v3172
      %v3350 = vsub.f32 %v2734, %v3172
      %v3351 = vsub.f32 %v2737, %v3172
      %v3352 = vsub.f32 %v2742, %v3172
      %v3353 = vsub.f32 %v2745, %v3172
      %v3354 = vsub.f32 %v2750, %v3172
      %v3355 = vsub.f32 %v2753, %v3172
      %v3356 = vsub.f32 %v2758, %v3185
      %v3357 = vsub.f32 %v2761, %v3185
      %v3358 = vsub.f32 %v2766, %v3185
      %v3359 = vsub.f32 %v2769, %v3185
      %v3360 = vsub.f32 %v2774, %v3185
      %v3361 = vsub.f32 %v2777, %v3185
      %v3362 = vsub.f32 %v2782, %v3185
      %v3363 = vsub.f32 %v2785, %v3185
      %v3364 = vsub.f32 %v2790, %v3198
      %v3365 = vsub.f32 %v2793, %v3198
      %v3366 = vsub.f32 %v2798, %v3198
      %v3367 = vsub.f32 %v2801, %v3198
      %v3368 = vsub.f32 %v2806, %v3198
      %v3369 = vsub.f32 %v2809, %v3198
      %v3370 = vsub.f32 %v2814, %v3198
      %v3371 = vsub.f32 %v2817, %v3198
      %v3372 = vsub.f32 %v2822, %v3211
      %v3373 = vsub.f32 %v2825, %v3211
      %v3374 = vsub.f32 %v2830, %v3211
      %v3375 = vsub.f32 %v2833, %v3211
      %v3376 = vsub.f32 %v2838, %v3211
      %v3377 = vsub.f32 %v2841, %v3211
      %v3378 = vsub.f32 %v2846, %v3211
      %v3379 = vsub.f32 %v2849, %v3211
      %v3380 = vsub.f32 %v2854, %v3224
      %v3381 = vsub.f32 %v2857, %v3224
      %v3382 = vsub.f32 %v2862, %v3224
      %v3383 = vsub.f32 %v2865, %v3224
      %v3384 = vsub.f32 %v2870, %v3224
      %v3385 = vsub.f32 %v2873, %v3224
      %v3386 = vsub.f32 %v2878, %v3224
      %v3387 = vsub.f32 %v2881, %v3224
      %v3388 = vsub.f32 %v2886, %v3237
      %v3389 = vsub.f32 %v2889, %v3237
      %v3390 = vsub.f32 %v2894, %v3237
      %v3391 = vsub.f32 %v2897, %v3237
      %v3392 = vsub.f32 %v2902, %v3237
      %v3393 = vsub.f32 %v2905, %v3237
      %v3394 = vsub.f32 %v2910, %v3237
      %v3395 = vsub.f32 %v2913, %v3237
      %v3396 = vsub.f32 %v2918, %v3250
      %v3397 = vsub.f32 %v2921, %v3250
      %v3398 = vsub.f32 %v2926, %v3250
      %v3399 = vsub.f32 %v2929, %v3250
      %v3400 = vsub.f32 %v2934, %v3250
      %v3401 = vsub.f32 %v2937, %v3250
      %v3402 = vsub.f32 %v2942, %v3250
      %v3403 = vsub.f32 %v2945, %v3250
      %v3404 = vsub.f32 %v2950, %v3263
      %v3405 = vsub.f32 %v2953, %v3263
      %v3406 = vsub.f32 %v2958, %v3263
      %v3407 = vsub.f32 %v2961, %v3263
      %v3408 = vsub.f32 %v2966, %v3263
      %v3409 = vsub.f32 %v2969, %v3263
      %v3410 = vsub.f32 %v2974, %v3263
      %v3411 = vsub.f32 %v2977, %v3263
      %v3412 = vsub.f32 %v2982, %v3276
      %v3413 = vsub.f32 %v2985, %v3276
      %v3414 = vsub.f32 %v2990, %v3276
      %v3415 = vsub.f32 %v2993, %v3276
      %v3416 = vsub.f32 %v2998, %v3276
      %v3417 = vsub.f32 %v3001, %v3276
      %v3418 = vsub.f32 %v3006, %v3276
      %v3419 = vsub.f32 %v3009, %v3276
      %v3420 = vsub.f32 %v3014, %v3289
      %v3421 = vsub.f32 %v3017, %v3289
      %v3422 = vsub.f32 %v3022, %v3289
      %v3423 = vsub.f32 %v3025, %v3289
      %v3424 = vsub.f32 %v3030, %v3289
      %v3425 = vsub.f32 %v3033, %v3289
      %v3426 = vsub.f32 %v3038, %v3289
      %v3427 = vsub.f32 %v3041, %v3289
      %v3428 = vsub.f32 %v3046, %v3302
      %v3429 = vsub.f32 %v3049, %v3302
      %v3430 = vsub.f32 %v3054, %v3302
      %v3431 = vsub.f32 %v3057, %v3302
      %v3432 = vsub.f32 %v3062, %v3302
      %v3433 = vsub.f32 %v3065, %v3302
      %v3434 = vsub.f32 %v3070, %v3302
      %v3435 = vsub.f32 %v3073, %v3302
      %v3436 = vsub.f32 %v3078, %v3315
      %v3437 = vsub.f32 %v3081, %v3315
      %v3438 = vsub.f32 %v3086, %v3315
      %v3439 = vsub.f32 %v3089, %v3315
      %v3440 = vsub.f32 %v3094, %v3315
      %v3441 = vsub.f32 %v3097, %v3315
      %v3442 = vsub.f32 %v3102, %v3315
      %v3443 = vsub.f32 %v3105, %v3315
      %v3444 = vmul.f32 %v3316, 1.442695
      %v3445 = vpow.pop %v3444
      %v3446 = vmul.f32 %v3317, 1.442695
      %v3447 = vpow.pop %v3446
      %v3448 = vmul.f32 %v3318, 1.442695
      %v3449 = vpow.pop %v3448
      %v3450 = vmul.f32 %v3319, 1.442695
      %v3451 = vpow.pop %v3450
      %v3452 = vmul.f32 %v3320, 1.442695
      %v3453 = vpow.pop %v3452
      %v3454 = vmul.f32 %v3321, 1.442695
      %v3455 = vpow.pop %v3454
      %v3456 = vmul.f32 %v3322, 1.442695
      %v3457 = vpow.pop %v3456
      %v3458 = vmul.f32 %v3323, 1.442695
      %v3459 = vpow.pop %v3458
      %v3460 = vmul.f32 %v3324, 1.442695
      %v3461 = vpow.pop %v3460
      %v3462 = vmul.f32 %v3325, 1.442695
      %v3463 = vpow.pop %v3462
      %v3464 = vmul.f32 %v3326, 1.442695
      %v3465 = vpow.pop %v3464
      %v3466 = vmul.f32 %v3327, 1.442695
      %v3467 = vpow.pop %v3466
      %v3468 = vmul.f32 %v3328, 1.442695
      %v3469 = vpow.pop %v3468
      %v3470 = vmul.f32 %v3329, 1.442695
      %v3471 = vpow.pop %v3470
      %v3472 = vmul.f32 %v3330, 1.442695
      %v3473 = vpow.pop %v3472
      %v3474 = vmul.f32 %v3331, 1.442695
      %v3475 = vpow.pop %v3474
      %v3476 = vmul.f32 %v3332, 1.442695
      %v3477 = vpow.pop %v3476
      %v3478 = vmul.f32 %v3333, 1.442695
      %v3479 = vpow.pop %v3478
      %v3480 = vmul.f32 %v3334, 1.442695
      %v3481 = vpow.pop %v3480
      %v3482 = vmul.f32 %v3335, 1.442695
      %v3483 = vpow.pop %v3482
      %v3484 = vmul.f32 %v3336, 1.442695
      %v3485 = vpow.pop %v3484
      %v3486 = vmul.f32 %v3337, 1.442695
      %v3487 = vpow.pop %v3486
      %v3488 = vmul.f32 %v3338, 1.442695
      %v3489 = vpow.pop %v3488
      %v3490 = vmul.f32 %v3339, 1.442695
      %v3491 = vpow.pop %v3490
      %v3492 = vmul.f32 %v3340, 1.442695
      %v3493 = vpow.pop %v3492
      %v3494 = vmul.f32 %v3341, 1.442695
      %v3495 = vpow.pop %v3494
      %v3496 = vmul.f32 %v3342, 1.442695
      %v3497 = vpow.pop %v3496
      %v3498 = vmul.f32 %v3343, 1.442695
      %v3499 = vpow.pop %v3498
      %v3500 = vmul.f32 %v3344, 1.442695
      %v3501 = vpow.pop %v3500
      %v3502 = vmul.f32 %v3345, 1.442695
      %v3503 = vpow.pop %v3502
      %v3504 = vmul.f32 %v3346, 1.442695
      %v3505 = vpow.pop %v3504
      %v3506 = vmul.f32 %v3347, 1.442695
      %v3507 = vpow.pop %v3506
      %v3508 = vmul.f32 %v3348, 1.442695
      %v3509 = vpow.pop %v3508
      %v3510 = vmul.f32 %v3349, 1.442695
      %v3511 = vpow.pop %v3510
      %v3512 = vmul.f32 %v3350, 1.442695
      %v3513 = vpow.pop %v3512
      %v3514 = vmul.f32 %v3351, 1.442695
      %v3515 = vpow.pop %v3514
      %v3516 = vmul.f32 %v3352, 1.442695
      %v3517 = vpow.pop %v3516
      %v3518 = vmul.f32 %v3353, 1.442695
      %v3519 = vpow.pop %v3518
      %v3520 = vmul.f32 %v3354, 1.442695
      %v3521 = vpow.pop %v3520
      %v3522 = vmul.f32 %v3355, 1.442695
      %v3523 = vpow.pop %v3522
      %v3524 = vmul.f32 %v3356, 1.442695
      %v3525 = vpow.pop %v3524
      %v3526 = vmul.f32 %v3357, 1.442695
      %v3527 = vpow.pop %v3526
      %v3528 = vmul.f32 %v3358, 1.442695
      %v3529 = vpow.pop %v3528
      %v3530 = vmul.f32 %v3359, 1.442695
      %v3531 = vpow.pop %v3530
      %v3532 = vmul.f32 %v3360, 1.442695
      %v3533 = vpow.pop %v3532
      %v3534 = vmul.f32 %v3361, 1.442695
      %v3535 = vpow.pop %v3534
      %v3536 = vmul.f32 %v3362, 1.442695
      %v3537 = vpow.pop %v3536
      %v3538 = vmul.f32 %v3363, 1.442695
      %v3539 = vpow.pop %v3538
      %v3540 = vmul.f32 %v3364, 1.442695
      %v3541 = vpow.pop %v3540
      %v3542 = vmul.f32 %v3365, 1.442695
      %v3543 = vpow.pop %v3542
      %v3544 = vmul.f32 %v3366, 1.442695
      %v3545 = vpow.pop %v3544
      %v3546 = vmul.f32 %v3367, 1.442695
      %v3547 = vpow.pop %v3546
      %v3548 = vmul.f32 %v3368, 1.442695
      %v3549 = vpow.pop %v3548
      %v3550 = vmul.f32 %v3369, 1.442695
      %v3551 = vpow.pop %v3550
      %v3552 = vmul.f32 %v3370, 1.442695
      %v3553 = vpow.pop %v3552
      %v3554 = vmul.f32 %v3371, 1.442695
      %v3555 = vpow.pop %v3554
      %v3556 = vmul.f32 %v3372, 1.442695
      %v3557 = vpow.pop %v3556
      %v3558 = vmul.f32 %v3373, 1.442695
      %v3559 = vpow.pop %v3558
      %v3560 = vmul.f32 %v3374, 1.442695
      %v3561 = vpow.pop %v3560
      %v3562 = vmul.f32 %v3375, 1.442695
      %v3563 = vpow.pop %v3562
      %v3564 = vmul.f32 %v3376, 1.442695
      %v3565 = vpow.pop %v3564
      %v3566 = vmul.f32 %v3377, 1.442695
      %v3567 = vpow.pop %v3566
      %v3568 = vmul.f32 %v3378, 1.442695
      %v3569 = vpow.pop %v3568
      %v3570 = vmul.f32 %v3379, 1.442695
      %v3571 = vpow.pop %v3570
      %v3572 = vmul.f32 %v3380, 1.442695
      %v3573 = vpow.pop %v3572
      %v3574 = vmul.f32 %v3381, 1.442695
      %v3575 = vpow.pop %v3574
      %v3576 = vmul.f32 %v3382, 1.442695
      %v3577 = vpow.pop %v3576
      %v3578 = vmul.f32 %v3383, 1.442695
      %v3579 = vpow.pop %v3578
      %v3580 = vmul.f32 %v3384, 1.442695
      %v3581 = vpow.pop %v3580
      %v3582 = vmul.f32 %v3385, 1.442695
      %v3583 = vpow.pop %v3582
      %v3584 = vmul.f32 %v3386, 1.442695
      %v3585 = vpow.pop %v3584
      %v3586 = vmul.f32 %v3387, 1.442695
      %v3587 = vpow.pop %v3586
      %v3588 = vmul.f32 %v3388, 1.442695
      %v3589 = vpow.pop %v3588
      %v3590 = vmul.f32 %v3389, 1.442695
      %v3591 = vpow.pop %v3590
      %v3592 = vmul.f32 %v3390, 1.442695
      %v3593 = vpow.pop %v3592
      %v3594 = vmul.f32 %v3391, 1.442695
      %v3595 = vpow.pop %v3594
      %v3596 = vmul.f32 %v3392, 1.442695
      %v3597 = vpow.pop %v3596
      %v3598 = vmul.f32 %v3393, 1.442695
      %v3599 = vpow.pop %v3598
      %v3600 = vmul.f32 %v3394, 1.442695
      %v3601 = vpow.pop %v3600
      %v3602 = vmul.f32 %v3395, 1.442695
      %v3603 = vpow.pop %v3602
      %v3604 = vmul.f32 %v3396, 1.442695
      %v3605 = vpow.pop %v3604
      %v3606 = vmul.f32 %v3397, 1.442695
      %v3607 = vpow.pop %v3606
      %v3608 = vmul.f32 %v3398, 1.442695
      %v3609 = vpow.pop %v3608
      %v3610 = vmul.f32 %v3399, 1.442695
      %v3611 = vpow.pop %v3610
      %v3612 = vmul.f32 %v3400, 1.442695
      %v3613 = vpow.pop %v3612
      %v3614 = vmul.f32 %v3401, 1.442695
      %v3615 = vpow.pop %v3614
      %v3616 = vmul.f32 %v3402, 1.442695
      %v3617 = vpow.pop %v3616
      %v3618 = vmul.f32 %v3403, 1.442695
      %v3619 = vpow.pop %v3618
      %v3620 = vmul.f32 %v3404, 1.442695
      %v3621 = vpow.pop %v3620
      %v3622 = vmul.f32 %v3405, 1.442695
      %v3623 = vpow.pop %v3622
      %v3624 = vmul.f32 %v3406, 1.442695
      %v3625 = vpow.pop %v3624
      %v3626 = vmul.f32 %v3407, 1.442695
      %v3627 = vpow.pop %v3626
      %v3628 = vmul.f32 %v3408, 1.442695
      %v3629 = vpow.pop %v3628
      %v3630 = vmul.f32 %v3409, 1.442695
      %v3631 = vpow.pop %v3630
      %v3632 = vmul.f32 %v3410, 1.442695
      %v3633 = vpow.pop %v3632
      %v3634 = vmul.f32 %v3411, 1.442695
      %v3635 = vpow.pop %v3634
      %v3636 = vmul.f32 %v3412, 1.442695
      %v3637 = vpow.pop %v3636
      %v3638 = vmul.f32 %v3413, 1.442695
      %v3639 = vpow.pop %v3638
      %v3640 = vmul.f32 %v3414, 1.442695
      %v3641 = vpow.pop %v3640
      %v3642 = vmul.f32 %v3415, 1.442695
      %v3643 = vpow.pop %v3642
      %v3644 = vmul.f32 %v3416, 1.442695
      %v3645 = vpow.pop %v3644
      %v3646 = vmul.f32 %v3417, 1.442695
      %v3647 = vpow.pop %v3646
      %v3648 = vmul.f32 %v3418, 1.442695
      %v3649 = vpow.pop %v3648
      %v3650 = vmul.f32 %v3419, 1.442695
      %v3651 = vpow.pop %v3650
      %v3652 = vmul.f32 %v3420, 1.442695
      %v3653 = vpow.pop %v3652
      %v3654 = vmul.f32 %v3421, 1.442695
      %v3655 = vpow.pop %v3654
      %v3656 = vmul.f32 %v3422, 1.442695
      %v3657 = vpow.pop %v3656
      %v3658 = vmul.f32 %v3423, 1.442695
      %v3659 = vpow.pop %v3658
      %v3660 = vmul.f32 %v3424, 1.442695
      %v3661 = vpow.pop %v3660
      %v3662 = vmul.f32 %v3425, 1.442695
      %v3663 = vpow.pop %v3662
      %v3664 = vmul.f32 %v3426, 1.442695
      %v3665 = vpow.pop %v3664
      %v3666 = vmul.f32 %v3427, 1.442695
      %v3667 = vpow.pop %v3666
      %v3668 = vmul.f32 %v3428, 1.442695
      %v3669 = vpow.pop %v3668
      %v3670 = vmul.f32 %v3429, 1.442695
      %v3671 = vpow.pop %v3670
      %v3672 = vmul.f32 %v3430, 1.442695
      %v3673 = vpow.pop %v3672
      %v3674 = vmul.f32 %v3431, 1.442695
      %v3675 = vpow.pop %v3674
      %v3676 = vmul.f32 %v3432, 1.442695
      %v3677 = vpow.pop %v3676
      %v3678 = vmul.f32 %v3433, 1.442695
      %v3679 = vpow.pop %v3678
      %v3680 = vmul.f32 %v3434, 1.442695
      %v3681 = vpow.pop %v3680
      %v3682 = vmul.f32 %v3435, 1.442695
      %v3683 = vpow.pop %v3682
      %v3684 = vmul.f32 %v3436, 1.442695
      %v3685 = vpow.pop %v3684
      %v3686 = vmul.f32 %v3437, 1.442695
      %v3687 = vpow.pop %v3686
      %v3688 = vmul.f32 %v3438, 1.442695
      %v3689 = vpow.pop %v3688
      %v3690 = vmul.f32 %v3439, 1.442695
      %v3691 = vpow.pop %v3690
      %v3692 = vmul.f32 %v3440, 1.442695
      %v3693 = vpow.pop %v3692
      %v3694 = vmul.f32 %v3441, 1.442695
      %v3695 = vpow.pop %v3694
      %v3696 = vmul.f32 %v3442, 1.442695
      %v3697 = vpow.pop %v3696
      %v3698 = vmul.f32 %v3443, 1.442695
      %v3699 = vpow.pop %v3698
      %v3700 = vadd.f32 %v3445, %v3447
      %v3701 = vadd.f32 %v3700, %v3449
      %v3702 = vadd.f32 %v3701, %v3451
      %v3703 = vadd.f32 %v3702, %v3453
      %v3704 = vadd.f32 %v3703, %v3455
      %v3705 = vadd.f32 %v3704, %v3457
      %v3706 = vadd.f32 %v3705, %v3459
      %v3707 = vrot.slane %v3706, 4
      %v3708 = vadd.f32 %v3706, %v3707
      %v3709 = vrot.slane %v3708, 2
      %v3710 = vadd.f32 %v3708, %v3709
      %v3711 = vrot.slane %v3710, 1
      %v3712 = vadd.f32 %v3710, %v3711
      %v3713 = vadd.f32 %v3461, %v3463
      %v3714 = vadd.f32 %v3713, %v3465
      %v3715 = vadd.f32 %v3714, %v3467
      %v3716 = vadd.f32 %v3715, %v3469
      %v3717 = vadd.f32 %v3716, %v3471
      %v3718 = vadd.f32 %v3717, %v3473
      %v3719 = vadd.f32 %v3718, %v3475
      %v3720 = vrot.slane %v3719, 4
      %v3721 = vadd.f32 %v3719, %v3720
      %v3722 = vrot.slane %v3721, 2
      %v3723 = vadd.f32 %v3721, %v3722
      %v3724 = vrot.slane %v3723, 1
      %v3725 = vadd.f32 %v3723, %v3724
      %v3726 = vadd.f32 %v3477, %v3479
      %v3727 = vadd.f32 %v3726, %v3481
      %v3728 = vadd.f32 %v3727, %v3483
      %v3729 = vadd.f32 %v3728, %v3485
      %v3730 = vadd.f32 %v3729, %v3487
      %v3731 = vadd.f32 %v3730, %v3489
      %v3732 = vadd.f32 %v3731, %v3491
      %v3733 = vrot.slane %v3732, 4
      %v3734 = vadd.f32 %v3732, %v3733
      %v3735 = vrot.slane %v3734, 2
      %v3736 = vadd.f32 %v3734, %v3735
      %v3737 = vrot.slane %v3736, 1
      %v3738 = vadd.f32 %v3736, %v3737
      %v3739 = vadd.f32 %v3493, %v3495
      %v3740 = vadd.f32 %v3739, %v3497
      %v3741 = vadd.f32 %v3740, %v3499
      %v3742 = vadd.f32 %v3741, %v3501
      %v3743 = vadd.f32 %v3742, %v3503
      %v3744 = vadd.f32 %v3743, %v3505
      %v3745 = vadd.f32 %v3744, %v3507
      %v3746 = vrot.slane %v3745, 4
      %v3747 = vadd.f32 %v3745, %v3746
      %v3748 = vrot.slane %v3747, 2
      %v3749 = vadd.f32 %v3747, %v3748
      %v3750 = vrot.slane %v3749, 1
      %v3751 = vadd.f32 %v3749, %v3750
      %v3752 = vadd.f32 %v3509, %v3511
      %v3753 = vadd.f32 %v3752, %v3513
      %v3754 = vadd.f32 %v3753, %v3515
      %v3755 = vadd.f32 %v3754, %v3517
      %v3756 = vadd.f32 %v3755, %v3519
      %v3757 = vadd.f32 %v3756, %v3521
      %v3758 = vadd.f32 %v3757, %v3523
      %v3759 = vrot.slane %v3758, 4
      %v3760 = vadd.f32 %v3758, %v3759
      %v3761 = vrot.slane %v3760, 2
      %v3762 = vadd.f32 %v3760, %v3761
      %v3763 = vrot.slane %v3762, 1
      %v3764 = vadd.f32 %v3762, %v3763
      %v3765 = vadd.f32 %v3525, %v3527
      %v3766 = vadd.f32 %v3765, %v3529
      %v3767 = vadd.f32 %v3766, %v3531
      %v3768 = vadd.f32 %v3767, %v3533
      %v3769 = vadd.f32 %v3768, %v3535
      %v3770 = vadd.f32 %v3769, %v3537
      %v3771 = vadd.f32 %v3770, %v3539
      %v3772 = vrot.slane %v3771, 4
      %v3773 = vadd.f32 %v3771, %v3772
      %v3774 = vrot.slane %v3773, 2
      %v3775 = vadd.f32 %v3773, %v3774
      %v3776 = vrot.slane %v3775, 1
      %v3777 = vadd.f32 %v3775, %v3776
      %v3778 = vadd.f32 %v3541, %v3543
      %v3779 = vadd.f32 %v3778, %v3545
      %v3780 = vadd.f32 %v3779, %v3547
      %v3781 = vadd.f32 %v3780, %v3549
      %v3782 = vadd.f32 %v3781, %v3551
      %v3783 = vadd.f32 %v3782, %v3553
      %v3784 = vadd.f32 %v3783, %v3555
      %v3785 = vrot.slane %v3784, 4
      %v3786 = vadd.f32 %v3784, %v3785
      %v3787 = vrot.slane %v3786, 2
      %v3788 = vadd.f32 %v3786, %v3787
      %v3789 = vrot.slane %v3788, 1
      %v3790 = vadd.f32 %v3788, %v3789
      %v3791 = vadd.f32 %v3557, %v3559
      %v3792 = vadd.f32 %v3791, %v3561
      %v3793 = vadd.f32 %v3792, %v3563
      %v3794 = vadd.f32 %v3793, %v3565
      %v3795 = vadd.f32 %v3794, %v3567
      %v3796 = vadd.f32 %v3795, %v3569
      %v3797 = vadd.f32 %v3796, %v3571
      %v3798 = vrot.slane %v3797, 4
      %v3799 = vadd.f32 %v3797, %v3798
      %v3800 = vrot.slane %v3799, 2
      %v3801 = vadd.f32 %v3799, %v3800
      %v3802 = vrot.slane %v3801, 1
      %v3803 = vadd.f32 %v3801, %v3802
      %v3804 = vadd.f32 %v3573, %v3575
      %v3805 = vadd.f32 %v3804, %v3577
      %v3806 = vadd.f32 %v3805, %v3579
      %v3807 = vadd.f32 %v3806, %v3581
      %v3808 = vadd.f32 %v3807, %v3583
      %v3809 = vadd.f32 %v3808, %v3585
      %v3810 = vadd.f32 %v3809, %v3587
      %v3811 = vrot.slane %v3810, 4
      %v3812 = vadd.f32 %v3810, %v3811
      %v3813 = vrot.slane %v3812, 2
      %v3814 = vadd.f32 %v3812, %v3813
      %v3815 = vrot.slane %v3814, 1
      %v3816 = vadd.f32 %v3814, %v3815
      %v3817 = vadd.f32 %v3589, %v3591
      %v3818 = vadd.f32 %v3817, %v3593
      %v3819 = vadd.f32 %v3818, %v3595
      %v3820 = vadd.f32 %v3819, %v3597
      %v3821 = vadd.f32 %v3820, %v3599
      %v3822 = vadd.f32 %v3821, %v3601
      %v3823 = vadd.f32 %v3822, %v3603
      %v3824 = vrot.slane %v3823, 4
      %v3825 = vadd.f32 %v3823, %v3824
      %v3826 = vrot.slane %v3825, 2
      %v3827 = vadd.f32 %v3825, %v3826
      %v3828 = vrot.slane %v3827, 1
      %v3829 = vadd.f32 %v3827, %v3828
      %v3830 = vadd.f32 %v3605, %v3607
      %v3831 = vadd.f32 %v3830, %v3609
      %v3832 = vadd.f32 %v3831, %v3611
      %v3833 = vadd.f32 %v3832, %v3613
      %v3834 = vadd.f32 %v3833, %v3615
      %v3835 = vadd.f32 %v3834, %v3617
      %v3836 = vadd.f32 %v3835, %v3619
      %v3837 = vrot.slane %v3836, 4
      %v3838 = vadd.f32 %v3836, %v3837
      %v3839 = vrot.slane %v3838, 2
      %v3840 = vadd.f32 %v3838, %v3839
      %v3841 = vrot.slane %v3840, 1
      %v3842 = vadd.f32 %v3840, %v3841
      %v3843 = vadd.f32 %v3621, %v3623
      %v3844 = vadd.f32 %v3843, %v3625
      %v3845 = vadd.f32 %v3844, %v3627
      %v3846 = vadd.f32 %v3845, %v3629
      %v3847 = vadd.f32 %v3846, %v3631
      %v3848 = vadd.f32 %v3847, %v3633
      %v3849 = vadd.f32 %v3848, %v3635
      %v3850 = vrot.slane %v3849, 4
      %v3851 = vadd.f32 %v3849, %v3850
      %v3852 = vrot.slane %v3851, 2
      %v3853 = vadd.f32 %v3851, %v3852
      %v3854 = vrot.slane %v3853, 1
      %v3855 = vadd.f32 %v3853, %v3854
      %v3856 = vadd.f32 %v3637, %v3639
      %v3857 = vadd.f32 %v3856, %v3641
      %v3858 = vadd.f32 %v3857, %v3643
      %v3859 = vadd.f32 %v3858, %v3645
      %v3860 = vadd.f32 %v3859, %v3647
      %v3861 = vadd.f32 %v3860, %v3649
      %v3862 = vadd.f32 %v3861, %v3651
      %v3863 = vrot.slane %v3862, 4
      %v3864 = vadd.f32 %v3862, %v3863
      %v3865 = vrot.slane %v3864, 2
      %v3866 = vadd.f32 %v3864, %v3865
      %v3867 = vrot.slane %v3866, 1
      %v3868 = vadd.f32 %v3866, %v3867
      %v3869 = vadd.f32 %v3653, %v3655
      %v3870 = vadd.f32 %v3869, %v3657
      %v3871 = vadd.f32 %v3870, %v3659
      %v3872 = vadd.f32 %v3871, %v3661
      %v3873 = vadd.f32 %v3872, %v3663
      %v3874 = vadd.f32 %v3873, %v3665
      %v3875 = vadd.f32 %v3874, %v3667
      %v3876 = vrot.slane %v3875, 4
      %v3877 = vadd.f32 %v3875, %v3876
      %v3878 = vrot.slane %v3877, 2
      %v3879 = vadd.f32 %v3877, %v3878
      %v3880 = vrot.slane %v3879, 1
      %v3881 = vadd.f32 %v3879, %v3880
      %v3882 = vadd.f32 %v3669, %v3671
      %v3883 = vadd.f32 %v3882, %v3673
      %v3884 = vadd.f32 %v3883, %v3675
      %v3885 = vadd.f32 %v3884, %v3677
      %v3886 = vadd.f32 %v3885, %v3679
      %v3887 = vadd.f32 %v3886, %v3681
      %v3888 = vadd.f32 %v3887, %v3683
      %v3889 = vrot.slane %v3888, 4
      %v3890 = vadd.f32 %v3888, %v3889
      %v3891 = vrot.slane %v3890, 2
      %v3892 = vadd.f32 %v3890, %v3891
      %v3893 = vrot.slane %v3892, 1
      %v3894 = vadd.f32 %v3892, %v3893
      %v3895 = vadd.f32 %v3685, %v3687
      %v3896 = vadd.f32 %v3895, %v3689
      %v3897 = vadd.f32 %v3896, %v3691
      %v3898 = vadd.f32 %v3897, %v3693
      %v3899 = vadd.f32 %v3898, %v3695
      %v3900 = vadd.f32 %v3899, %v3697
      %v3901 = vadd.f32 %v3900, %v3699
      %v3902 = vrot.slane %v3901, 4
      %v3903 = vadd.f32 %v3901, %v3902
      %v3904 = vrot.slane %v3903, 2
      %v3905 = vadd.f32 %v3903, %v3904
      %v3906 = vrot.slane %v3905, 1
      %v3907 = vadd.f32 %v3905, %v3906
      %v3908 = vrcp.pop %v3712
      %v3909 = vrcp.pop %v3725
      %v3910 = vrcp.pop %v3738
      %v3911 = vrcp.pop %v3751
      %v3912 = vrcp.pop %v3764
      %v3913 = vrcp.pop %v3777
      %v3914 = vrcp.pop %v3790
      %v3915 = vrcp.pop %v3803
      %v3916 = vrcp.pop %v3816
      %v3917 = vrcp.pop %v3829
      %v3918 = vrcp.pop %v3842
      %v3919 = vrcp.pop %v3855
      %v3920 = vrcp.pop %v3868
      %v3921 = vrcp.pop %v3881
      %v3922 = vrcp.pop %v3894
      %v3923 = vrcp.pop %v3907
      %v3924 = vmul.f32 %v3445, %v3908
      %v3925 = vmul.f32 %v3447, %v3908
      %v3926 = vmul.f32 %v3449, %v3908
      %v3927 = vmul.f32 %v3451, %v3908
      %v3928 = vmul.f32 %v3453, %v3908
      %v3929 = vmul.f32 %v3455, %v3908
      %v3930 = vmul.f32 %v3457, %v3908
      %v3931 = vmul.f32 %v3459, %v3908
      %v3932 = vmul.f32 %v3461, %v3909
      %v3933 = vmul.f32 %v3463, %v3909
      %v3934 = vmul.f32 %v3465, %v3909
      %v3935 = vmul.f32 %v3467, %v3909
      %v3936 = vmul.f32 %v3469, %v3909
      %v3937 = vmul.f32 %v3471, %v3909
      %v3938 = vmul.f32 %v3473, %v3909
      %v3939 = vmul.f32 %v3475, %v3909
      %v3940 = vmul.f32 %v3477, %v3910
      %v3941 = vmul.f32 %v3479, %v3910
      %v3942 = vmul.f32 %v3481, %v3910
      %v3943 = vmul.f32 %v3483, %v3910
      %v3944 = vmul.f32 %v3485, %v3910
      %v3945 = vmul.f32 %v3487, %v3910
      %v3946 = vmul.f32 %v3489, %v3910
      %v3947 = vmul.f32 %v3491, %v3910
      %v3948 = vmul.f32 %v3493, %v3911
      %v3949 = vmul.f32 %v3495, %v3911
      %v3950 = vmul.f32 %v3497, %v3911
      %v3951 = vmul.f32 %v3499, %v3911
      %v3952 = vmul.f32 %v3501, %v3911
      %v3953 = vmul.f32 %v3503, %v3911
      %v3954 = vmul.f32 %v3505, %v3911
      %v3955 = vmul.f32 %v3507, %v3911
      %v3956 = vmul.f32 %v3509, %v3912
      %v3957 = vmul.f32 %v3511, %v3912
      %v3958 = vmul.f32 %v3513, %v3912
      %v3959 = vmul.f32 %v3515, %v3912
      %v3960 = vmul.f32 %v3517, %v3912
      %v3961 = vmul.f32 %v3519, %v3912
      %v3962 = vmul.f32 %v3521, %v3912
      %v3963 = vmul.f32 %v3523, %v3912
      %v3964 = vmul.f32 %v3525, %v3913
      %v3965 = vmul.f32 %v3527, %v3913
      %v3966 = vmul.f32 %v3529, %v3913
      %v3967 = vmul.f32 %v3531, %v3913
      %v3968 = vmul.f32 %v3533, %v3913
      %v3969 = vmul.f32 %v3535, %v3913
      %v3970 = vmul.f32 %v3537, %v3913
      %v3971 = vmul.f32 %v3539, %v3913
      %v3972 = vmul.f32 %v3541, %v3914
      %v3973 = vmul.f32 %v3543, %v3914
      %v3974 = vmul.f32 %v3545, %v3914
      %v3975 = vmul.f32 %v3547, %v3914
      %v3976 = vmul.f32 %v3549, %v3914
      %v3977 = vmul.f32 %v3551, %v3914
      %v3978 = vmul.f32 %v3553, %v3914
      %v3979 = vmul.f32 %v3555, %v3914
      %v3980 = vmul.f32 %v3557, %v3915
      %v3981 = vmul.f32 %v3559, %v3915
      %v3982 = vmul.f32 %v3561, %v3915
      %v3983 = vmul.f32 %v3563, %v3915
      %v3984 = vmul.f32 %v3565, %v3915
      %v3985 = vmul.f32 %v3567, %v3915
      %v3986 = vmul.f32 %v3569, %v3915
      %v3987 = vmul.f32 %v3571, %v3915
      %v3988 = vmul.f32 %v3573, %v3916
      %v3989 = vmul.f32 %v3575, %v3916
      %v3990 = vmul.f32 %v3577, %v3916
      %v3991 = vmul.f32 %v3579, %v3916
      %v3992 = vmul.f32 %v3581, %v3916
      %v3993 = vmul.f32 %v3583, %v3916
      %v3994 = vmul.f32 %v3585, %v3916
      %v3995 = vmul.f32 %v3587, %v3916
      %v3996 = vmul.f32 %v3589, %v3917
      %v3997 = vmul.f32 %v3591, %v3917
      %v3998 = vmul.f32 %v3593, %v3917
      %v3999 = vmul.f32 %v3595, %v3917
      %v4000 = vmul.f32 %v3597, %v3917
      %v4001 = vmul.f32 %v3599, %v3917
      %v4002 = vmul.f32 %v3601, %v3917
      %v4003 = vmul.f32 %v3603, %v3917
      %v4004 = vmul.f32 %v3605, %v3918
      %v4005 = vmul.f32 %v3607, %v3918
      %v4006 = vmul.f32 %v3609, %v3918
      %v4007 = vmul.f32 %v3611, %v3918
      %v4008 = vmul.f32 %v3613, %v3918
      %v4009 = vmul.f32 %v3615, %v3918
      %v4010 = vmul.f32 %v3617, %v3918
      %v4011 = vmul.f32 %v3619, %v3918
      %v4012 = vmul.f32 %v3621, %v3919
      %v4013 = vmul.f32 %v3623, %v3919
      %v4014 = vmul.f32 %v3625, %v3919
      %v4015 = vmul.f32 %v3627, %v3919
      %v4016 = vmul.f32 %v3629, %v3919
      %v4017 = vmul.f32 %v3631, %v3919
      %v4018 = vmul.f32 %v3633, %v3919
      %v4019 = vmul.f32 %v3635, %v3919
      %v4020 = vmul.f32 %v3637, %v3920
      %v4021 = vmul.f32 %v3639, %v3920
      %v4022 = vmul.f32 %v3641, %v3920
      %v4023 = vmul.f32 %v3643, %v3920
      %v4024 = vmul.f32 %v3645, %v3920
      %v4025 = vmul.f32 %v3647, %v3920
      %v4026 = vmul.f32 %v3649, %v3920
      %v4027 = vmul.f32 %v3651, %v3920
      %v4028 = vmul.f32 %v3653, %v3921
      %v4029 = vmul.f32 %v3655, %v3921
      %v4030 = vmul.f32 %v3657, %v3921
      %v4031 = vmul.f32 %v3659, %v3921
      %v4032 = vmul.f32 %v3661, %v3921
      %v4033 = vmul.f32 %v3663, %v3921
      %v4034 = vmul.f32 %v3665, %v3921
      %v4035 = vmul.f32 %v3667, %v3921
      %v4036 = vmul.f32 %v3669, %v3922
      %v4037 = vmul.f32 %v3671, %v3922
      %v4038 = vmul.f32 %v3673, %v3922
      %v4039 = vmul.f32 %v3675, %v3922
      %v4040 = vmul.f32 %v3677, %v3922
      %v4041 = vmul.f32 %v3679, %v3922
      %v4042 = vmul.f32 %v3681, %v3922
      %v4043 = vmul.f32 %v3683, %v3922
      %v4044 = vmul.f32 %v3685, %v3923
      %v4045 = vmul.f32 %v3687, %v3923
      %v4046 = vmul.f32 %v3689, %v3923
      %v4047 = vmul.f32 %v3691, %v3923
      %v4048 = vmul.f32 %v3693, %v3923
      %v4049 = vmul.f32 %v3695, %v3923
      %v4050 = vmul.f32 %v3697, %v3923
      %v4051 = vmul.f32 %v3699, %v3923
      %v4052 = vadd.f32 %v665, %v1363
      %v4053 = vadd.f32 %v666, %v1367
      %v4054 = vadd.f32 %v667, %v1373
      %v4055 = vadd.f32 %v668, %v1377
      %v4056 = vadd.f32 %v669, %v1383
      %v4057 = vadd.f32 %v670, %v1387
      %v4058 = vadd.f32 %v671, %v1393
      %v4059 = vadd.f32 %v672, %v1397
      %v4060 = vadd.f32 %v665, %v1403
      %v4061 = vadd.f32 %v666, %v1407
      %v4062 = vadd.f32 %v667, %v1413
      %v4063 = vadd.f32 %v668, %v1417
      %v4064 = vadd.f32 %v669, %v1423
      %v4065 = vadd.f32 %v670, %v1427
      %v4066 = vadd.f32 %v671, %v1433
      %v4067 = vadd.f32 %v672, %v1437
      %v4068 = vadd.f32 %v665, %v1443
      %v4069 = vadd.f32 %v666, %v1447
      %v4070 = vadd.f32 %v667, %v1453
      %v4071 = vadd.f32 %v668, %v1457
      %v4072 = vadd.f32 %v669, %v1463
      %v4073 = vadd.f32 %v670, %v1467
      %v4074 = vadd.f32 %v671, %v1473
      %v4075 = vadd.f32 %v672, %v1477
      %v4076 = vadd.f32 %v665, %v1483
      %v4077 = vadd.f32 %v666, %v1487
      %v4078 = vadd.f32 %v667, %v1493
      %v4079 = vadd.f32 %v668, %v1497
      %v4080 = vadd.f32 %v669, %v1503
      %v4081 = vadd.f32 %v670, %v1507
      %v4082 = vadd.f32 %v671, %v1513
      %v4083 = vadd.f32 %v672, %v1517
      %v4084 = vadd.f32 %v665, %v1523
      %v4085 = vadd.f32 %v666, %v1527
      %v4086 = vadd.f32 %v667, %v1533
      %v4087 = vadd.f32 %v668, %v1537
      %v4088 = vadd.f32 %v669, %v1543
      %v4089 = vadd.f32 %v670, %v1547
      %v4090 = vadd.f32 %v671, %v1553
      %v4091 = vadd.f32 %v672, %v1557
      %v4092 = vadd.f32 %v665, %v1563
      %v4093 = vadd.f32 %v666, %v1567
      %v4094 = vadd.f32 %v667, %v1573
      %v4095 = vadd.f32 %v668, %v1577
      %v4096 = vadd.f32 %v669, %v1583
      %v4097 = vadd.f32 %v670, %v1587
      %v4098 = vadd.f32 %v671, %v1593
      %v4099 = vadd.f32 %v672, %v1597
      %v4100 = vadd.f32 %v665, %v1603
      %v4101 = vadd.f32 %v666, %v1607
      %v4102 = vadd.f32 %v667, %v1613
      %v4103 = vadd.f32 %v668, %v1617
      %v4104 = vadd.f32 %v669, %v1623
      %v4105 = vadd.f32 %v670, %v1627
      %v4106 = vadd.f32 %v671, %v1633
      %v4107 = vadd.f32 %v672, %v1637
      %v4108 = vadd.f32 %v665, %v1643
      %v4109 = vadd.f32 %v666, %v1647
      %v4110 = vadd.f32 %v667, %v1653
      %v4111 = vadd.f32 %v668, %v1657
      %v4112 = vadd.f32 %v669, %v1663
      %v4113 = vadd.f32 %v670, %v1667
      %v4114 = vadd.f32 %v671, %v1673
      %v4115 = vadd.f32 %v672, %v1677
      %v4116 = vadd.f32 %v665, %v1683
      %v4117 = vadd.f32 %v666, %v1687
      %v4118 = vadd.f32 %v667, %v1693
      %v4119 = vadd.f32 %v668, %v1697
      %v4120 = vadd.f32 %v669, %v1703
      %v4121 = vadd.f32 %v670, %v1707
      %v4122 = vadd.f32 %v671, %v1713
      %v4123 = vadd.f32 %v672, %v1717
      %v4124 = vadd.f32 %v665, %v1723
      %v4125 = vadd.f32 %v666, %v1727
      %v4126 = vadd.f32 %v667, %v1733
      %v4127 = vadd.f32 %v668, %v1737
      %v4128 = vadd.f32 %v669, %v1743
      %v4129 = vadd.f32 %v670, %v1747
      %v4130 = vadd.f32 %v671, %v1753
      %v4131 = vadd.f32 %v672, %v1757
      %v4132 = vadd.f32 %v665, %v1763
      %v4133 = vadd.f32 %v666, %v1767
      %v4134 = vadd.f32 %v667, %v1773
      %v4135 = vadd.f32 %v668, %v1777
      %v4136 = vadd.f32 %v669, %v1783
      %v4137 = vadd.f32 %v670, %v1787
      %v4138 = vadd.f32 %v671, %v1793
      %v4139 = vadd.f32 %v672, %v1797
      %v4140 = vadd.f32 %v665, %v1803
      %v4141 = vadd.f32 %v666, %v1807
      %v4142 = vadd.f32 %v667, %v1813
      %v4143 = vadd.f32 %v668, %v1817
      %v4144 = vadd.f32 %v669, %v1823
      %v4145 = vadd.f32 %v670, %v1827
      %v4146 = vadd.f32 %v671, %v1833
      %v4147 = vadd.f32 %v672, %v1837
      %v4148 = vadd.f32 %v665, %v1843
      %v4149 = vadd.f32 %v666, %v1847
      %v4150 = vadd.f32 %v667, %v1853
      %v4151 = vadd.f32 %v668, %v1857
      %v4152 = vadd.f32 %v669, %v1863
      %v4153 = vadd.f32 %v670, %v1867
      %v4154 = vadd.f32 %v671, %v1873
      %v4155 = vadd.f32 %v672, %v1877
      %v4156 = vadd.f32 %v665, %v1883
      %v4157 = vadd.f32 %v666, %v1887
      %v4158 = vadd.f32 %v667, %v1893
      %v4159 = vadd.f32 %v668, %v1897
      %v4160 = vadd.f32 %v669, %v1903
      %v4161 = vadd.f32 %v670, %v1907
      %v4162 = vadd.f32 %v671, %v1913
      %v4163 = vadd.f32 %v672, %v1917
      %v4164 = vadd.f32 %v665, %v1923
      %v4165 = vadd.f32 %v666, %v1927
      %v4166 = vadd.f32 %v667, %v1933
      %v4167 = vadd.f32 %v668, %v1937
      %v4168 = vadd.f32 %v669, %v1943
      %v4169 = vadd.f32 %v670, %v1947
      %v4170 = vadd.f32 %v671, %v1953
      %v4171 = vadd.f32 %v672, %v1957
      %v4172 = vadd.f32 %v665, %v1963
      %v4173 = vadd.f32 %v666, %v1967
      %v4174 = vadd.f32 %v667, %v1973
      %v4175 = vadd.f32 %v668, %v1977
      %v4176 = vadd.f32 %v669, %v1983
      %v4177 = vadd.f32 %v670, %v1987
      %v4178 = vadd.f32 %v671, %v1993
      %v4179 = vadd.f32 %v672, %v1997
      %v4180 = vmul.f32 %v3924, %v4052
      %v4181 = vmul.f32 %v3925, %v4053
      %v4182 = vmul.f32 %v3926, %v4054
      %v4183 = vmul.f32 %v3927, %v4055
      %v4184 = vmul.f32 %v3928, %v4056
      %v4185 = vmul.f32 %v3929, %v4057
      %v4186 = vmul.f32 %v3930, %v4058
      %v4187 = vmul.f32 %v3931, %v4059
      %v4188 = vmul.f32 %v3932, %v4060
      %v4189 = vmul.f32 %v3933, %v4061
      %v4190 = vmul.f32 %v3934, %v4062
      %v4191 = vmul.f32 %v3935, %v4063
      %v4192 = vmul.f32 %v3936, %v4064
      %v4193 = vmul.f32 %v3937, %v4065
      %v4194 = vmul.f32 %v3938, %v4066
      %v4195 = vmul.f32 %v3939, %v4067
      %v4196 = vmul.f32 %v3940, %v4068
      %v4197 = vmul.f32 %v3941, %v4069
      %v4198 = vmul.f32 %v3942, %v4070
      %v4199 = vmul.f32 %v3943, %v4071
      %v4200 = vmul.f32 %v3944, %v4072
      %v4201 = vmul.f32 %v3945, %v4073
      %v4202 = vmul.f32 %v3946, %v4074
      %v4203 = vmul.f32 %v3947, %v4075
      %v4204 = vmul.f32 %v3948, %v4076
      %v4205 = vmul.f32 %v3949, %v4077
      %v4206 = vmul.f32 %v3950, %v4078
      %v4207 = vmul.f32 %v3951, %v4079
      %v4208 = vmul.f32 %v3952, %v4080
      %v4209 = vmul.f32 %v3953, %v4081
      %v4210 = vmul.f32 %v3954, %v4082
      %v4211 = vmul.f32 %v3955, %v4083
      %v4212 = vmul.f32 %v3956, %v4084
      %v4213 = vmul.f32 %v3957, %v4085
      %v4214 = vmul.f32 %v3958, %v4086
      %v4215 = vmul.f32 %v3959, %v4087
      %v4216 = vmul.f32 %v3960, %v4088
      %v4217 = vmul.f32 %v3961, %v4089
      %v4218 = vmul.f32 %v3962, %v4090
      %v4219 = vmul.f32 %v3963, %v4091
      %v4220 = vmul.f32 %v3964, %v4092
      %v4221 = vmul.f32 %v3965, %v4093
      %v4222 = vmul.f32 %v3966, %v4094
      %v4223 = vmul.f32 %v3967, %v4095
      %v4224 = vmul.f32 %v3968, %v4096
      %v4225 = vmul.f32 %v3969, %v4097
      %v4226 = vmul.f32 %v3970, %v4098
      %v4227 = vmul.f32 %v3971, %v4099
      %v4228 = vmul.f32 %v3972, %v4100
      %v4229 = vmul.f32 %v3973, %v4101
      %v4230 = vmul.f32 %v3974, %v4102
      %v4231 = vmul.f32 %v3975, %v4103
      %v4232 = vmul.f32 %v3976, %v4104
      %v4233 = vmul.f32 %v3977, %v4105
      %v4234 = vmul.f32 %v3978, %v4106
      %v4235 = vmul.f32 %v3979, %v4107
      %v4236 = vmul.f32 %v3980, %v4108
      %v4237 = vmul.f32 %v3981, %v4109
      %v4238 = vmul.f32 %v3982, %v4110
      %v4239 = vmul.f32 %v3983, %v4111
      %v4240 = vmul.f32 %v3984, %v4112
      %v4241 = vmul.f32 %v3985, %v4113
      %v4242 = vmul.f32 %v3986, %v4114
      %v4243 = vmul.f32 %v3987, %v4115
      %v4244 = vmul.f32 %v3988, %v4116
      %v4245 = vmul.f32 %v3989, %v4117
      %v4246 = vmul.f32 %v3990, %v4118
      %v4247 = vmul.f32 %v3991, %v4119
      %v4248 = vmul.f32 %v3992, %v4120
      %v4249 = vmul.f32 %v3993, %v4121
      %v4250 = vmul.f32 %v3994, %v4122
      %v4251 = vmul.f32 %v3995, %v4123
      %v4252 = vmul.f32 %v3996, %v4124
      %v4253 = vmul.f32 %v3997, %v4125
      %v4254 = vmul.f32 %v3998, %v4126
      %v4255 = vmul.f32 %v3999, %v4127
      %v4256 = vmul.f32 %v4000, %v4128
      %v4257 = vmul.f32 %v4001, %v4129
      %v4258 = vmul.f32 %v4002, %v4130
      %v4259 = vmul.f32 %v4003, %v4131
      %v4260 = vmul.f32 %v4004, %v4132
      %v4261 = vmul.f32 %v4005, %v4133
      %v4262 = vmul.f32 %v4006, %v4134
      %v4263 = vmul.f32 %v4007, %v4135
      %v4264 = vmul.f32 %v4008, %v4136
      %v4265 = vmul.f32 %v4009, %v4137
      %v4266 = vmul.f32 %v4010, %v4138
      %v4267 = vmul.f32 %v4011, %v4139
      %v4268 = vmul.f32 %v4012, %v4140
      %v4269 = vmul.f32 %v4013, %v4141
      %v4270 = vmul.f32 %v4014, %v4142
      %v4271 = vmul.f32 %v4015, %v4143
      %v4272 = vmul.f32 %v4016, %v4144
      %v4273 = vmul.f32 %v4017, %v4145
      %v4274 = vmul.f32 %v4018, %v4146
      %v4275 = vmul.f32 %v4019, %v4147
      %v4276 = vmul.f32 %v4020, %v4148
      %v4277 = vmul.f32 %v4021, %v4149
      %v4278 = vmul.f32 %v4022, %v4150
      %v4279 = vmul.f32 %v4023, %v4151
      %v4280 = vmul.f32 %v4024, %v4152
      %v4281 = vmul.f32 %v4025, %v4153
      %v4282 = vmul.f32 %v4026, %v4154
      %v4283 = vmul.f32 %v4027, %v4155
      %v4284 = vmul.f32 %v4028, %v4156
      %v4285 = vmul.f32 %v4029, %v4157
      %v4286 = vmul.f32 %v4030, %v4158
      %v4287 = vmul.f32 %v4031, %v4159
      %v4288 = vmul.f32 %v4032, %v4160
      %v4289 = vmul.f32 %v4033, %v4161
      %v4290 = vmul.f32 %v4034, %v4162
      %v4291 = vmul.f32 %v4035, %v4163
      %v4292 = vmul.f32 %v4036, %v4164
      %v4293 = vmul.f32 %v4037, %v4165
      %v4294 = vmul.f32 %v4038, %v4166
      %v4295 = vmul.f32 %v4039, %v4167
      %v4296 = vmul.f32 %v4040, %v4168
      %v4297 = vmul.f32 %v4041, %v4169
      %v4298 = vmul.f32 %v4042, %v4170
      %v4299 = vmul.f32 %v4043, %v4171
      %v4300 = vmul.f32 %v4044, %v4172
      %v4301 = vmul.f32 %v4045, %v4173
      %v4302 = vmul.f32 %v4046, %v4174
      %v4303 = vmul.f32 %v4047, %v4175
      %v4304 = vmul.f32 %v4048, %v4176
      %v4305 = vmul.f32 %v4049, %v4177
      %v4306 = vmul.f32 %v4050, %v4178
      %v4307 = vmul.f32 %v4051, %v4179
      %v4308 = vadd.f32 %v4180, %v4181
      %v4309 = vadd.f32 %v4308, %v4182
      %v4310 = vadd.f32 %v4309, %v4183
      %v4311 = vadd.f32 %v4310, %v4184
      %v4312 = vadd.f32 %v4311, %v4185
      %v4313 = vadd.f32 %v4312, %v4186
      %v4314 = vadd.f32 %v4313, %v4187
      %v4315 = vrot.slane %v4314, 4
      %v4316 = vadd.f32 %v4314, %v4315
      %v4317 = vrot.slane %v4316, 2
      %v4318 = vadd.f32 %v4316, %v4317
      %v4319 = vrot.slane %v4318, 1
      %v4320 = vadd.f32 %v4318, %v4319
      %v4321 = vadd.f32 %v4188, %v4189
      %v4322 = vadd.f32 %v4321, %v4190
      %v4323 = vadd.f32 %v4322, %v4191
      %v4324 = vadd.f32 %v4323, %v4192
      %v4325 = vadd.f32 %v4324, %v4193
      %v4326 = vadd.f32 %v4325, %v4194
      %v4327 = vadd.f32 %v4326, %v4195
      %v4328 = vrot.slane %v4327, 4
      %v4329 = vadd.f32 %v4327, %v4328
      %v4330 = vrot.slane %v4329, 2
      %v4331 = vadd.f32 %v4329, %v4330
      %v4332 = vrot.slane %v4331, 1
      %v4333 = vadd.f32 %v4331, %v4332
      %v4334 = vadd.f32 %v4196, %v4197
      %v4335 = vadd.f32 %v4334, %v4198
      %v4336 = vadd.f32 %v4335, %v4199
      %v4337 = vadd.f32 %v4336, %v4200
      %v4338 = vadd.f32 %v4337, %v4201
      %v4339 = vadd.f32 %v4338, %v4202
      %v4340 = vadd.f32 %v4339, %v4203
      %v4341 = vrot.slane %v4340, 4
      %v4342 = vadd.f32 %v4340, %v4341
      %v4343 = vrot.slane %v4342, 2
      %v4344 = vadd.f32 %v4342, %v4343
      %v4345 = vrot.slane %v4344, 1
      %v4346 = vadd.f32 %v4344, %v4345
      %v4347 = vadd.f32 %v4204, %v4205
      %v4348 = vadd.f32 %v4347, %v4206
      %v4349 = vadd.f32 %v4348, %v4207
      %v4350 = vadd.f32 %v4349, %v4208
      %v4351 = vadd.f32 %v4350, %v4209
      %v4352 = vadd.f32 %v4351, %v4210
      %v4353 = vadd.f32 %v4352, %v4211
      %v4354 = vrot.slane %v4353, 4
      %v4355 = vadd.f32 %v4353, %v4354
      %v4356 = vrot.slane %v4355, 2
      %v4357 = vadd.f32 %v4355, %v4356
      %v4358 = vrot.slane %v4357, 1
      %v4359 = vadd.f32 %v4357, %v4358
      %v4360 = vadd.f32 %v4212, %v4213
      %v4361 = vadd.f32 %v4360, %v4214
      %v4362 = vadd.f32 %v4361, %v4215
      %v4363 = vadd.f32 %v4362, %v4216
      %v4364 = vadd.f32 %v4363, %v4217
      %v4365 = vadd.f32 %v4364, %v4218
      %v4366 = vadd.f32 %v4365, %v4219
      %v4367 = vrot.slane %v4366, 4
      %v4368 = vadd.f32 %v4366, %v4367
      %v4369 = vrot.slane %v4368, 2
      %v4370 = vadd.f32 %v4368, %v4369
      %v4371 = vrot.slane %v4370, 1
      %v4372 = vadd.f32 %v4370, %v4371
      %v4373 = vadd.f32 %v4220, %v4221
      %v4374 = vadd.f32 %v4373, %v4222
      %v4375 = vadd.f32 %v4374, %v4223
      %v4376 = vadd.f32 %v4375, %v4224
      %v4377 = vadd.f32 %v4376, %v4225
      %v4378 = vadd.f32 %v4377, %v4226
      %v4379 = vadd.f32 %v4378, %v4227
      %v4380 = vrot.slane %v4379, 4
      %v4381 = vadd.f32 %v4379, %v4380
      %v4382 = vrot.slane %v4381, 2
      %v4383 = vadd.f32 %v4381, %v4382
      %v4384 = vrot.slane %v4383, 1
      %v4385 = vadd.f32 %v4383, %v4384
      %v4386 = vadd.f32 %v4228, %v4229
      %v4387 = vadd.f32 %v4386, %v4230
      %v4388 = vadd.f32 %v4387, %v4231
      %v4389 = vadd.f32 %v4388, %v4232
      %v4390 = vadd.f32 %v4389, %v4233
      %v4391 = vadd.f32 %v4390, %v4234
      %v4392 = vadd.f32 %v4391, %v4235
      %v4393 = vrot.slane %v4392, 4
      %v4394 = vadd.f32 %v4392, %v4393
      %v4395 = vrot.slane %v4394, 2
      %v4396 = vadd.f32 %v4394, %v4395
      %v4397 = vrot.slane %v4396, 1
      %v4398 = vadd.f32 %v4396, %v4397
      %v4399 = vadd.f32 %v4236, %v4237
      %v4400 = vadd.f32 %v4399, %v4238
      %v4401 = vadd.f32 %v4400, %v4239
      %v4402 = vadd.f32 %v4401, %v4240
      %v4403 = vadd.f32 %v4402, %v4241
      %v4404 = vadd.f32 %v4403, %v4242
      %v4405 = vadd.f32 %v4404, %v4243
      %v4406 = vrot.slane %v4405, 4
      %v4407 = vadd.f32 %v4405, %v4406
      %v4408 = vrot.slane %v4407, 2
      %v4409 = vadd.f32 %v4407, %v4408
      %v4410 = vrot.slane %v4409, 1
      %v4411 = vadd.f32 %v4409, %v4410
      %v4412 = vadd.f32 %v4244, %v4245
      %v4413 = vadd.f32 %v4412, %v4246
      %v4414 = vadd.f32 %v4413, %v4247
      %v4415 = vadd.f32 %v4414, %v4248
      %v4416 = vadd.f32 %v4415, %v4249
      %v4417 = vadd.f32 %v4416, %v4250
      %v4418 = vadd.f32 %v4417, %v4251
      %v4419 = vrot.slane %v4418, 4
      %v4420 = vadd.f32 %v4418, %v4419
      %v4421 = vrot.slane %v4420, 2
      %v4422 = vadd.f32 %v4420, %v4421
      %v4423 = vrot.slane %v4422, 1
      %v4424 = vadd.f32 %v4422, %v4423
      %v4425 = vadd.f32 %v4252, %v4253
      %v4426 = vadd.f32 %v4425, %v4254
      %v4427 = vadd.f32 %v4426, %v4255
      %v4428 = vadd.f32 %v4427, %v4256
      %v4429 = vadd.f32 %v4428, %v4257
      %v4430 = vadd.f32 %v4429, %v4258
      %v4431 = vadd.f32 %v4430, %v4259
      %v4432 = vrot.slane %v4431, 4
      %v4433 = vadd.f32 %v4431, %v4432
      %v4434 = vrot.slane %v4433, 2
      %v4435 = vadd.f32 %v4433, %v4434
      %v4436 = vrot.slane %v4435, 1
      %v4437 = vadd.f32 %v4435, %v4436
      %v4438 = vadd.f32 %v4260, %v4261
      %v4439 = vadd.f32 %v4438, %v4262
      %v4440 = vadd.f32 %v4439, %v4263
      %v4441 = vadd.f32 %v4440, %v4264
      %v4442 = vadd.f32 %v4441, %v4265
      %v4443 = vadd.f32 %v4442, %v4266
      %v4444 = vadd.f32 %v4443, %v4267
      %v4445 = vrot.slane %v4444, 4
      %v4446 = vadd.f32 %v4444, %v4445
      %v4447 = vrot.slane %v4446, 2
      %v4448 = vadd.f32 %v4446, %v4447
      %v4449 = vrot.slane %v4448, 1
      %v4450 = vadd.f32 %v4448, %v4449
      %v4451 = vadd.f32 %v4268, %v4269
      %v4452 = vadd.f32 %v4451, %v4270
      %v4453 = vadd.f32 %v4452, %v4271
      %v4454 = vadd.f32 %v4453, %v4272
      %v4455 = vadd.f32 %v4454, %v4273
      %v4456 = vadd.f32 %v4455, %v4274
      %v4457 = vadd.f32 %v4456, %v4275
      %v4458 = vrot.slane %v4457, 4
      %v4459 = vadd.f32 %v4457, %v4458
      %v4460 = vrot.slane %v4459, 2
      %v4461 = vadd.f32 %v4459, %v4460
      %v4462 = vrot.slane %v4461, 1
      %v4463 = vadd.f32 %v4461, %v4462
      %v4464 = vadd.f32 %v4276, %v4277
      %v4465 = vadd.f32 %v4464, %v4278
      %v4466 = vadd.f32 %v4465, %v4279
      %v4467 = vadd.f32 %v4466, %v4280
      %v4468 = vadd.f32 %v4467, %v4281
      %v4469 = vadd.f32 %v4468, %v4282
      %v4470 = vadd.f32 %v4469, %v4283
      %v4471 = vrot.slane %v4470, 4
      %v4472 = vadd.f32 %v4470, %v4471
      %v4473 = vrot.slane %v4472, 2
      %v4474 = vadd.f32 %v4472, %v4473
      %v4475 = vrot.slane %v4474, 1
      %v4476 = vadd.f32 %v4474, %v4475
      %v4477 = vadd.f32 %v4284, %v4285
      %v4478 = vadd.f32 %v4477, %v4286
      %v4479 = vadd.f32 %v4478, %v4287
      %v4480 = vadd.f32 %v4479, %v4288
      %v4481 = vadd.f32 %v4480, %v4289
      %v4482 = vadd.f32 %v4481, %v4290
      %v4483 = vadd.f32 %v4482, %v4291
      %v4484 = vrot.slane %v4483, 4
      %v4485 = vadd.f32 %v4483, %v4484
      %v4486 = vrot.slane %v4485, 2
      %v4487 = vadd.f32 %v4485, %v4486
      %v4488 = vrot.slane %v4487, 1
      %v4489 = vadd.f32 %v4487, %v4488
      %v4490 = vadd.f32 %v4292, %v4293
      %v4491 = vadd.f32 %v4490, %v4294
      %v4492 = vadd.f32 %v4491, %v4295
      %v4493 = vadd.f32 %v4492, %v4296
      %v4494 = vadd.f32 %v4493, %v4297
      %v4495 = vadd.f32 %v4494, %v4298
      %v4496 = vadd.f32 %v4495, %v4299
      %v4497 = vrot.slane %v4496, 4
      %v4498 = vadd.f32 %v4496, %v4497
      %v4499 = vrot.slane %v4498, 2
      %v4500 = vadd.f32 %v4498, %v4499
      %v4501 = vrot.slane %v4500, 1
      %v4502 = vadd.f32 %v4500, %v4501
      %v4503 = vadd.f32 %v4300, %v4301
      %v4504 = vadd.f32 %v4503, %v4302
      %v4505 = vadd.f32 %v4504, %v4303
      %v4506 = vadd.f32 %v4505, %v4304
      %v4507 = vadd.f32 %v4506, %v4305
      %v4508 = vadd.f32 %v4507, %v4306
      %v4509 = vadd.f32 %v4508, %v4307
      %v4510 = vrot.slane %v4509, 4
      %v4511 = vadd.f32 %v4509, %v4510
      %v4512 = vrot.slane %v4511, 2
      %v4513 = vadd.f32 %v4511, %v4512
      %v4514 = vrot.slane %v4513, 1
      %v4515 = vadd.f32 %v4513, %v4514
      %v4516 = vpack.c.bf16 %v4320, %v4320
      %v4517 = vpack.c.bf16 %v4333, %v4333
      %v4518 = vpack.c.bf16 %v4346, %v4346
      %v4519 = vpack.c.bf16 %v4359, %v4359
      %v4520 = vpack.c.bf16 %v4372, %v4372
      %v4521 = vpack.c.bf16 %v4385, %v4385
      %v4522 = vpack.c.bf16 %v4398, %v4398
      %v4523 = vpack.c.bf16 %v4411, %v4411
      %v4524 = vpack.c.bf16 %v4424, %v4424
      %v4525 = vpack.c.bf16 %v4437, %v4437
      %v4526 = vpack.c.bf16 %v4450, %v4450
      %v4527 = vpack.c.bf16 %v4463, %v4463
      %v4528 = vpack.c.bf16 %v4476, %v4476
      %v4529 = vpack.c.bf16 %v4489, %v4489
      %v4530 = vpack.c.bf16 %v4502, %v4502
      %v4531 = vpack.c.bf16 %v4515, %v4515
      %v4532 = vld [vmem:[%s7] sm:$0xf]
      %v4533 = vld [vmem:[%s7 + $0x4] sm:$0xf]
      %v4534 = vld [vmem:[%s7 + $0x8] sm:$0xf]
      %v4535 = vld [vmem:[%s7 + $0xc] sm:$0xf]
      %v4536 = vld [vmem:[%s7 + $0x10] sm:$0xf]
      %v4537 = vld [vmem:[%s7 + $0x14] sm:$0xf]
      %v4538 = vld [vmem:[%s7 + $0x18] sm:$0xf]
      %v4539 = vld [vmem:[%s7 + $0x1c] sm:$0xf]
      %v4540 = vld [vmem:[%s7 + $0x20] sm:$0xf]
      %v4541 = vld [vmem:[%s7 + $0x24] sm:$0xf]
      %v4542 = vld [vmem:[%s7 + $0x28] sm:$0xf]
      %v4543 = vld [vmem:[%s7 + $0x2c] sm:$0xf]
      %v4544 = vld [vmem:[%s7 + $0x30] sm:$0xf]
      %v4545 = vld [vmem:[%s7 + $0x34] sm:$0xf]
      %v4546 = vld [vmem:[%s7 + $0x38] sm:$0xf]
      %v4547 = vld [vmem:[%s7 + $0x3c] sm:$0xf]
      %v4548 = vlaneseq
      %v4549 = vshrl.u32 %v4548, 7
      %v4550 = vsub.s32 3, %v4549
      %v4551 = vrot.slane %v459, %v4550
      %v4568 = vunpack.c.l.b16 %v4516
      %v4569 = vunpack.c.l.b16 %v4517
      %v4570 = vunpack.c.l.b16 %v4518
      %v4571 = vunpack.c.l.b16 %v4519
      %v4572 = vunpack.c.l.b16 %v4520
      %v4573 = vunpack.c.l.b16 %v4521
      %v4574 = vunpack.c.l.b16 %v4522
      %v4575 = vunpack.c.l.b16 %v4523
      %v4576 = vunpack.c.l.b16 %v4524
      %v4577 = vunpack.c.l.b16 %v4525
      %v4578 = vunpack.c.l.b16 %v4526
      %v4579 = vunpack.c.l.b16 %v4527
      %v4580 = vunpack.c.l.b16 %v4528
      %v4581 = vunpack.c.l.b16 %v4529
      %v4582 = vunpack.c.l.b16 %v4530
      %v4583 = vunpack.c.l.b16 %v4531
      %vm4584 = vcmask 1041409
      %v4585 = vsel %vm4584, %v4569, %v4568
      %vm4586 = vcmask 1042434
      %v4587 = vsel %vm4586, %v4570, %v4585
      %vm4588 = vcmask 1043459
      %v4589 = vsel %vm4588, %v4571, %v4587
      %vm4590 = vcmask 1044484
      %v4591 = vsel %vm4590, %v4572, %v4589
      %vm4592 = vcmask 1045509
      %v4593 = vsel %vm4592, %v4573, %v4591
      %vm4594 = vcmask 1046534
      %v4595 = vsel %vm4594, %v4574, %v4593
      %vm4596 = vcmask 1047559
      %v4597 = vsel %vm4596, %v4575, %v4595
      %v4598 = vsel %vm4584, %v4577, %v4576
      %v4599 = vsel %vm4586, %v4578, %v4598
      %v4600 = vsel %vm4588, %v4579, %v4599
      %v4601 = vsel %vm4590, %v4580, %v4600
      %v4602 = vsel %vm4592, %v4581, %v4601
      %v4603 = vsel %vm4594, %v4582, %v4602
      %v4604 = vsel %vm4596, %v4583, %v4603
      %v4605 = vpack.c.b16 %v4604, %v4597
      %v4623 = vunpack.c.l.b16 %v4532
      %v4624 = vunpack.c.l.b16 %v4533
      %v4625 = vunpack.c.l.b16 %v4534
      %v4626 = vunpack.c.l.b16 %v4535
      %v4627 = vunpack.c.l.b16 %v4536
      %v4628 = vunpack.c.l.b16 %v4537
      %v4629 = vunpack.c.l.b16 %v4538
      %v4630 = vunpack.c.l.b16 %v4539
      %v4631 = vunpack.c.l.b16 %v4540
      %v4632 = vunpack.c.l.b16 %v4541
      %v4633 = vunpack.c.l.b16 %v4542
      %v4634 = vunpack.c.l.b16 %v4543
      %v4635 = vunpack.c.l.b16 %v4544
      %v4636 = vunpack.c.l.b16 %v4545
      %v4637 = vunpack.c.l.b16 %v4546
      %v4638 = vunpack.c.l.b16 %v4547
      %v4639 = vpack.c.b16 %v4624, %v4623
      %v4640 = vpack.c.b16 %v4626, %v4625
      %v4641 = vpack.c.b16 %v4628, %v4627
      %v4642 = vpack.c.b16 %v4630, %v4629
      %v4643 = vpack.c.b16 %v4632, %v4631
      %v4644 = vpack.c.b16 %v4634, %v4633
      %v4645 = vpack.c.b16 %v4636, %v4635
      %v4646 = vpack.c.b16 %v4638, %v4637
      %4655 = vmatprep.subr.bf16.mxu0 0
      %4656 = vmatpush1.bf16.msra.mxu0 %v4646
      %4657 = vmatprep.subr.bf16.mxu0 0
      %4658 = vmatpush1.bf16.msra.mxu0 %v4645
      %4659 = vmatprep.subr.bf16.mxu0 0
      %4660 = vmatpush1.bf16.msra.mxu0 %v4644
      %4661 = vmatprep.subr.bf16.mxu0 0
      %4662 = vmatpush1.bf16.msra.mxu0 %v4643
      %4663 = vmatprep.subr.bf16.mxu0 0
      %4664 = vmatpush1.bf16.msra.mxu0 %v4642
      %4665 = vmatprep.subr.bf16.mxu0 0
      %4666 = vmatpush1.bf16.msra.mxu0 %v4641
      %4667 = vmatprep.subr.bf16.mxu0 0
      %4668 = vmatpush1.bf16.msra.mxu0 %v4640
      %4669 = vmatprep.subr.bf16.mxu0 0
      %4670 = vmatpush1.bf16.msra.mxu0 %v4639
      %4671 = vmatprep.subr.bf16.mxu0 0
      %4672 = vmatpush2.bf16.msra.mxu0 0
      %4673 = vmatprep.subr.bf16.mxu0 0
      %4674 = vmatpush2.bf16.msra.mxu0 0
      %4675 = vmatprep.subr.bf16.mxu0 0
      %4676 = vmatpush2.bf16.msra.mxu0 0
      %4677 = vmatprep.subr.bf16.mxu0 0
      %4678 = vmatpush2.bf16.msra.mxu0 0
      %4679 = vmatprep.subr.bf16.mxu0 0
      %4680 = vmatpush2.bf16.msra.mxu0 0
      %4681 = vmatprep.subr.bf16.mxu0 0
      %4682 = vmatpush2.bf16.msra.mxu0 0
      %4683 = vmatprep.subr.bf16.mxu0 0
      %4684 = vmatpush2.bf16.msra.mxu0 0
      %4685 = vmatprep.subr.bf16.mxu0 0
      %4686 = vmatpush2.bf16.msra.mxu0 0
      %4687 = vmatprep.mubr.bf16.mxu0 0
      %4688 = vmatmul.mubr.bf16.gmra.mxu0 %v4605
      %v4689 = vpop.f32.mrf.mxu0
      %v4690 = vadd.f32 %v4551, %v4689
      %v4691 = vpop.f32.mrf.mxu0
      %v4692 = vpop.f32.mrf.mxu0
      %v4693 = vadd.f32 %v4551, %v4692
      %v4694 = vpop.f32.mrf.mxu0
      %4695 = vdwg.mxu0
      %v4696 = vadd.f32 %v460, %v4690
      %v4697 = vadd.f32 %v461, %v4693
      %v4698 = vld [vmem:[%s8] sm:$0xf]
      %v4699 = vld [vmem:[%s8 + $0x4] sm:$0xf]
      %v4700 = vld [vmem:[%s8 + $0x8] sm:$0xf]
      %v4701 = vld [vmem:[%s8 + $0xc] sm:$0xf]
      %v4702 = vpack.c.bf16 %v4697, %v4696
      %v4703 = vlaneseq
      %v4704 = vshrl.u32 %v4703, 7
      %v4705 = vsub.s32 4, %v4704
      %v4706 = vrot.slane %v459, %v4705
      %v4711 = vunpack.c.l.b16 %v4698
      %v4712 = vunpack.c.l.b16 %v4699
      %v4713 = vunpack.c.l.b16 %v4700
      %v4714 = vunpack.c.l.b16 %v4701
      %v4715 = vpack.c.b16 %v4712, %v4711
      %v4716 = vpack.c.b16 %v4714, %v4713
      %v4720 = vsel %vm495, %v4702, 0
      %4722 = vmatprep.subr.bf16.mxu0 0
      %4723 = vmatpush1.bf16.msra.mxu0 0
      %4724 = vmatprep.subr.bf16.mxu0 0
      %4725 = vmatpush1.bf16.msra.mxu0 0
      %4726 = vmatprep.subr.bf16.mxu0 0
      %4727 = vmatpush1.bf16.msra.mxu0 0
      %4728 = vmatprep.subr.bf16.mxu0 0
      %4729 = vmatpush1.bf16.msra.mxu0 0
      %4730 = vmatprep.subr.bf16.mxu0 0
      %4731 = vmatpush1.bf16.msra.mxu0 0
      %4732 = vmatprep.subr.bf16.mxu0 0
      %4733 = vmatpush1.bf16.msra.mxu0 0
      %4734 = vmatprep.subr.bf16.mxu0 0
      %4735 = vmatpush1.bf16.msra.mxu0 %v4716
      %4736 = vmatprep.subr.bf16.mxu0 0
      %4737 = vmatpush1.bf16.msra.mxu0 %v4715
      %4738 = vmatprep.subr.bf16.mxu0 0
      %4739 = vmatpush2.bf16.msra.mxu0 0
      %4740 = vmatprep.subr.bf16.mxu0 0
      %4741 = vmatpush2.bf16.msra.mxu0 0
      %4742 = vmatprep.subr.bf16.mxu0 0
      %4743 = vmatpush2.bf16.msra.mxu0 0
      %4744 = vmatprep.subr.bf16.mxu0 0
      %4745 = vmatpush2.bf16.msra.mxu0 0
      %4746 = vmatprep.subr.bf16.mxu0 0
      %4747 = vmatpush2.bf16.msra.mxu0 0
      %4748 = vmatprep.subr.bf16.mxu0 0
      %4749 = vmatpush2.bf16.msra.mxu0 0
      %4750 = vmatprep.subr.bf16.mxu0 0
      %4751 = vmatpush2.bf16.msra.mxu0 0
      %4752 = vmatprep.subr.bf16.mxu0 0
      %4753 = vmatpush2.bf16.msra.mxu0 0
      %4754 = vmatprep.mubr.bf16.mxu0 0
      %4755 = vmatmul.mubr.bf16.gmra.mxu0 %v4720
      %v4756 = vpop.f32.mrf.mxu0
      %v4757 = vadd.f32 %v4706, %v4756
      %v4758 = vpop.f32.mrf.mxu0
      %v4759 = vpop.f32.mrf.mxu0
      %v4760 = vadd.f32 %v4706, %v4759
      %v4761 = vpop.f32.mrf.mxu0
      %4762 = vdwg.mxu0
      %v4763 = vmax.f32 %v4757, 0.0
      %v4764 = vmax.f32 %v4760, 0.0
      %v4765 = vpack.c.bf16 %v4764, %v4763
      %v4766 = vlaneseq
      %v4767 = vshrl.u32 %v4766, 7
      %v4768 = vsub.s32 5, %v4767
      %v4769 = vrot.slane %v459, %v4768
      %4770 = vrot.lane.b32.xlu0 %v4715, 96
      %v4771 = vpop.permute.xlu0 %4770
      %4772 = vrot.lane.b32.xlu0 %v4716, 96
      %v4773 = vpop.permute.xlu0 %4772
      %v4777 = vsel %vm495, %v4765, 0
      %4779 = vmatprep.subr.bf16.mxu0 0
      %4780 = vmatpush1.bf16.msra.mxu0 0
      %4781 = vmatprep.subr.bf16.mxu0 0
      %4782 = vmatpush1.bf16.msra.mxu0 0
      %4783 = vmatprep.subr.bf16.mxu0 0
      %4784 = vmatpush1.bf16.msra.mxu0 0
      %4785 = vmatprep.subr.bf16.mxu0 0
      %4786 = vmatpush1.bf16.msra.mxu0 0
      %4787 = vmatprep.subr.bf16.mxu0 0
      %4788 = vmatpush1.bf16.msra.mxu0 0
      %4789 = vmatprep.subr.bf16.mxu0 0
      %4790 = vmatpush1.bf16.msra.mxu0 0
      %4791 = vmatprep.subr.bf16.mxu0 0
      %4792 = vmatpush1.bf16.msra.mxu0 %v4773
      %4793 = vmatprep.subr.bf16.mxu0 0
      %4794 = vmatpush1.bf16.msra.mxu0 %v4771
      %4795 = vmatprep.subr.bf16.mxu0 0
      %4796 = vmatpush2.bf16.msra.mxu0 0
      %4797 = vmatprep.subr.bf16.mxu0 0
      %4798 = vmatpush2.bf16.msra.mxu0 0
      %4799 = vmatprep.subr.bf16.mxu0 0
      %4800 = vmatpush2.bf16.msra.mxu0 0
      %4801 = vmatprep.subr.bf16.mxu0 0
      %4802 = vmatpush2.bf16.msra.mxu0 0
      %4803 = vmatprep.subr.bf16.mxu0 0
      %4804 = vmatpush2.bf16.msra.mxu0 0
      %4805 = vmatprep.subr.bf16.mxu0 0
      %4806 = vmatpush2.bf16.msra.mxu0 0
      %4807 = vmatprep.subr.bf16.mxu0 0
      %4808 = vmatpush2.bf16.msra.mxu0 0
      %4809 = vmatprep.subr.bf16.mxu0 0
      %4810 = vmatpush2.bf16.msra.mxu0 0
      %4811 = vmatprep.mubr.bf16.mxu0 0
      %4812 = vmatmul.mubr.bf16.gmra.mxu0 %v4777
      %v4813 = vpop.f32.mrf.mxu0
      %v4814 = vadd.f32 %v4769, %v4813
      %v4815 = vpop.f32.mrf.mxu0
      %v4816 = vpop.f32.mrf.mxu0
      %v4817 = vadd.f32 %v4769, %v4816
      %v4818 = vpop.f32.mrf.mxu0
      %4819 = vdwg.mxu0
      %v4820 = vmax.f32 %v4814, 0.0
      %v4821 = vmax.f32 %v4817, 0.0
      %v4822 = vpack.c.bf16 %v4821, %v4820
      %v4823 = vlaneseq
      %v4824 = vshrl.u32 %v4823, 7
      %v4825 = vsub.s32 6, %v4824
      %v4826 = vrot.slane %v459, %v4825
      %4827 = vrot.lane.b32.xlu0 %v4715, 64
      %v4828 = vpop.permute.xlu0 %4827
      %4829 = vrot.lane.b32.xlu0 %v4716, 64
      %v4830 = vpop.permute.xlu0 %4829
      %v4834 = vsel %vm495, %v4822, 0
      %4836 = vmatprep.subr.bf16.mxu0 0
      %4837 = vmatpush1.bf16.msra.mxu0 0
      %4838 = vmatprep.subr.bf16.mxu0 0
      %4839 = vmatpush1.bf16.msra.mxu0 0
      %4840 = vmatprep.subr.bf16.mxu0 0
      %4841 = vmatpush1.bf16.msra.mxu0 0
      %4842 = vmatprep.subr.bf16.mxu0 0
      %4843 = vmatpush1.bf16.msra.mxu0 0
      %4844 = vmatprep.subr.bf16.mxu0 0
      %4845 = vmatpush1.bf16.msra.mxu0 0
      %4846 = vmatprep.subr.bf16.mxu0 0
      %4847 = vmatpush1.bf16.msra.mxu0 0
      %4848 = vmatprep.subr.bf16.mxu0 0
      %4849 = vmatpush1.bf16.msra.mxu0 %v4830
      %4850 = vmatprep.subr.bf16.mxu0 0
      %4851 = vmatpush1.bf16.msra.mxu0 %v4828
      %4852 = vmatprep.subr.bf16.mxu0 0
      %4853 = vmatpush2.bf16.msra.mxu0 0
      %4854 = vmatprep.subr.bf16.mxu0 0
      %4855 = vmatpush2.bf16.msra.mxu0 0
      %4856 = vmatprep.subr.bf16.mxu0 0
      %4857 = vmatpush2.bf16.msra.mxu0 0
      %4858 = vmatprep.subr.bf16.mxu0 0
      %4859 = vmatpush2.bf16.msra.mxu0 0
      %4860 = vmatprep.subr.bf16.mxu0 0
      %4861 = vmatpush2.bf16.msra.mxu0 0
      %4862 = vmatprep.subr.bf16.mxu0 0
      %4863 = vmatpush2.bf16.msra.mxu0 0
      %4864 = vmatprep.subr.bf16.mxu0 0
      %4865 = vmatpush2.bf16.msra.mxu0 0
      %4866 = vmatprep.subr.bf16.mxu0 0
      %4867 = vmatpush2.bf16.msra.mxu0 0
      %4868 = vmatprep.mubr.bf16.mxu0 0
      %4869 = vmatmul.mubr.bf16.gmra.mxu0 %v4834
      %v4870 = vpop.f32.mrf.mxu0
      %v4871 = vadd.f32 %v4826, %v4870
      %v4872 = vpop.f32.mrf.mxu0
      %v4873 = vpop.f32.mrf.mxu0
      %v4874 = vadd.f32 %v4826, %v4873
      %v4875 = vpop.f32.mrf.mxu0
      %4876 = vdwg.mxu0
      %v4877 = vmax.f32 %v4871, 0.0
      %v4878 = vmax.f32 %v4874, 0.0
      %v4879 = vpack.c.bf16 %v4878, %v4877
      %v4880 = vlaneseq
      %v4881 = vshrl.u32 %v4880, 7
      %v4882 = vsub.s32 7, %v4881
      %v4883 = vrot.slane %v459, %v4882
      %4884 = vrot.lane.b32.xlu0 %v4715, 32
      %v4885 = vpop.permute.xlu0 %4884
      %4886 = vrot.lane.b32.xlu0 %v4716, 32
      %v4887 = vpop.permute.xlu0 %4886
      %v4891 = vsel %vm495, %v4879, 0
      %4893 = vmatprep.subr.bf16.mxu0 0
      %4894 = vmatpush1.bf16.msra.mxu0 0
      %4895 = vmatprep.subr.bf16.mxu0 0
      %4896 = vmatpush1.bf16.msra.mxu0 0
      %4897 = vmatprep.subr.bf16.mxu0 0
      %4898 = vmatpush1.bf16.msra.mxu0 0
      %4899 = vmatprep.subr.bf16.mxu0 0
      %4900 = vmatpush1.bf16.msra.mxu0 0
      %4901 = vmatprep.subr.bf16.mxu0 0
      %4902 = vmatpush1.bf16.msra.mxu0 0
      %4903 = vmatprep.subr.bf16.mxu0 0
      %4904 = vmatpush1.bf16.msra.mxu0 0
      %4905 = vmatprep.subr.bf16.mxu0 0
      %4906 = vmatpush1.bf16.msra.mxu0 %v4887
      %4907 = vmatprep.subr.bf16.mxu0 0
      %4908 = vmatpush1.bf16.msra.mxu0 %v4885
      %4909 = vmatprep.subr.bf16.mxu0 0
      %4910 = vmatpush2.bf16.msra.mxu0 0
      %4911 = vmatprep.subr.bf16.mxu0 0
      %4912 = vmatpush2.bf16.msra.mxu0 0
      %4913 = vmatprep.subr.bf16.mxu0 0
      %4914 = vmatpush2.bf16.msra.mxu0 0
      %4915 = vmatprep.subr.bf16.mxu0 0
      %4916 = vmatpush2.bf16.msra.mxu0 0
      %4917 = vmatprep.subr.bf16.mxu0 0
      %4918 = vmatpush2.bf16.msra.mxu0 0
      %4919 = vmatprep.subr.bf16.mxu0 0
      %4920 = vmatpush2.bf16.msra.mxu0 0
      %4921 = vmatprep.subr.bf16.mxu0 0
      %4922 = vmatpush2.bf16.msra.mxu0 0
      %4923 = vmatprep.subr.bf16.mxu0 0
      %4924 = vmatpush2.bf16.msra.mxu0 0
      %4925 = vmatprep.mubr.bf16.mxu0 0
      %4926 = vmatmul.mubr.bf16.gmra.mxu0 %v4891
      %v4927 = vpop.f32.mrf.mxu0
      %v4928 = vadd.f32 %v4883, %v4927
      %v4929 = vpop.f32.mrf.mxu0
      %v4930 = vpop.f32.mrf.mxu0
      %v4931 = vadd.f32 %v4883, %v4930
      %v4932 = vpop.f32.mrf.mxu0
      %4933 = vdwg.mxu0
      %v4934 = vadd.f32 %v4696, %v4928
      %v4935 = vadd.f32 %v4697, %v4931
      %4936 = vst.msk [vmem:[%s456] sm:$0xff] %vm495, %v4934
      %4937 = vst.msk [vmem:[%s456 + $0x8] sm:$0xff] %vm495, %v4935
      %s4938 = smul.u32 2, %s26
      %p4939 = scmp.lt.s32.totalorder %s25, 1
      %s4940 = scalar_select %p4939, %s25, 1
      %p4941 = scmp.lt.s32.totalorder %s4938, 7
      %s4942 = scalar_select %p4941, %s4938, 7
      %s4943 = smul.addr %s4940, 8
      %s4944 = sadd.s32 %s4942, %s4943
      %s4945 = smul.addr %s4944, 8
      %s4946 = scalar_lea.vmem %s10, %s4945
      // Predicated region
      $region61: #{tpu_custom_call.1} parent=59 // pred_check
        %p4947 = pneg %p282
      $region62: #{tpu_custom_call.1} parent=59 // pred_check_branch
        %4949 = sbr.rel (%p4947) target = $region64
      $region63: #{tpu_custom_call.1} parent=59 // pred_region
        %s4950 = smul.u32 2, %s26
      $region64: #{tpu_custom_call.1} parent=59 // pred_fallthru
        _
    $region60: #{tpu_custom_call.1} parent=5 // pred_fallthru
      _
    %p4951 = scmp.le.s32.totalorder 2, %s16
    // Predicated region
    $region65: #{tpu_custom_call.1} parent=5 // pred_check
      %p4952 = pneg %p4951
    $region66: #{tpu_custom_call.1} parent=5 // pred_check_branch
      %4954 = sbr.rel (%p4952) target = $region68
    $region67: #{tpu_custom_call.1} parent=5 // pred_region
      %s4955 = ssub.s32 %s16, 2
      // Predicated region
      $region69: #{tpu_custom_call.1} parent=67 // pred_check
        %p4956 = pneg %p288
      $region70: #{tpu_custom_call.1} parent=67 // pred_check_branch
        %4958 = sbr.rel (%p4956) target = $region72
      $region71: #{tpu_custom_call.1} parent=67 // pred_region
        %s4959 = smul.u32 2, %s28
        %p4960 = scmp.lt.s32.totalorder %s27, 1
        %s4961 = scalar_select %p4960, %s27, 1
        %p4962 = scmp.lt.s32.totalorder %s4959, 7
        %s4963 = scalar_select %p4962, %s4959, 7
        %s4964 = smul.addr %s4961, 8
        %s4965 = sadd.s32 %s4963, %s4964
        %s4966 = smul.addr %s4965, 8
        %s4967 = scalar_lea.vmem %s10, %s4966
      $region72: #{tpu_custom_call.1} parent=67 // pred_fallthru
        _
    $region68: #{tpu_custom_call.1} parent=5 // pred_fallthru
      _
  $region6: #{tpu_custom_call.1} parent=0 // loop_footer
    %s20 = sadd.s32 1, %s16
  $region7: #{tpu_custom_call.1} parent=0 // loop_footer_branch
    %15 = sbr.rel target = $region3
  $region8: #{tpu_custom_call.1} parent=0 // loop_exit
    _

</llo_original>
